<compile_context>
chip_gen: v7x
topology: tpu7x:2x2x1
jax: 0.10.0
libtpu: 0.0.40
codegen_flags: <defaults>
</compile_context>

<pallas_src>
import functools

import jax
import jax.numpy as jnp
from jax import lax
from jax.experimental import pallas as pl
from jax.experimental.pallas import tpu as pltpu


def _vmem():
    return pl.BlockSpec(memory_space=pltpu.MemorySpace.VMEM)


def _smem():
    return pl.BlockSpec(memory_space=pltpu.MemorySpace.SMEM)


def _rup(n, m):
    return ((n + m - 1) // m) * m


def _pad2(x, rows, cols):
    return jnp.pad(x, ((0, rows - x.shape[0]), (0, cols - x.shape[1])))


def _pick_tb(bt, hw, row_target=2048):
    """Pick a sample-tile size TB dividing bt, layout-legal for f32/bf16 blocks."""
    cands = []
    for c in range(1, bt + 1):
        if bt % c:
            continue
        if c == bt or (c % 8 == 0 and (c * hw) % 16 == 0):
            cands.append(c)
    ok = [c for c in cands if c * hw <= row_target]
    return max(ok) if ok else min(cands)


# ----------------------------------------------------------------------------
# Kernel 1: fused encoder
#   conv3x3 (im2col matmul, bf16 MXU) + ReLU + global average pool
#   + classifier head + L2-normalized projection head
# Grid: one axis over groups of TB whole samples ("parallel" -> both TCs on v7x).
# ----------------------------------------------------------------------------
def _encoder_kernel(patch_ref, wconv_ref, bconv_ref, wcls_ref, bcls_ref,
                    wfeat_ref, bfeat_ref, logits_ref, feat_ref, pooled_ref,
                    *, tb, hw):
    wconv = wconv_ref[...]
    bconv = bconv_ref[...]
    # One sample (hw rows of the patch matrix) at a time: matmul + ReLU + sum-pool.
    for t in range(tb):
        a = patch_ref[pl.ds(t * hw, hw), :]                       # (hw, Kp) bf16
        c = jnp.dot(a, wconv, preferred_element_type=jnp.float32)  # (hw, Hp) f32
        c = jnp.maximum(c + bconv, 0.0)
        pooled_ref[pl.ds(t, 1), :] = jnp.sum(c, axis=0, keepdims=True)
    pooled = pooled_ref[...] * (1.0 / hw)                          # (TB, Hp) f32
    pooled_bf = pooled.astype(jnp.bfloat16)

    logits_ref[...] = (jnp.dot(pooled_bf, wcls_ref[...],
                               preferred_element_type=jnp.float32) + bcls_ref[...])

    f = (jnp.dot(pooled_bf, wfeat_ref[...],
                 preferred_element_type=jnp.float32) + bfeat_ref[...])
    ss = jnp.sum(f * f, axis=1, keepdims=True)
    feat_ref[...] = f * lax.rsqrt(jnp.maximum(ss, 1e-24))          # F.normalize(p=2)


def encoder_forward(imgs, params):
    d = params["dims"]
    Bt, _, H, W = imgs.shape
    HW = H * W
    K, Kp, Hp, NCp, LDp = d["K"], d["Kp"], d["Hp"], d["NCp"], d["LDp"]

    patches = im2col_3x3(imgs)                                     # (Bt*HW, K) f32
    patches = jnp.pad(patches, ((0, 0), (0, Kp - K))).astype(jnp.bfloat16)

    TB = _pick_tb(Bt, HW)
    grid = (Bt // TB,)
    kern = functools.partial(_encoder_kernel, tb=TB, hw=HW)

    logits, feat = pl.pallas_call(
        kern,
        out_shape=(jax.ShapeDtypeStruct((Bt, NCp), jnp.float32),
                   jax.ShapeDtypeStruct((Bt, LDp), jnp.float32)),
        grid=grid,
        in_specs=[
            pl.BlockSpec((TB * HW, Kp), lambda i: (i, 0)),   # patches (row tiles)
            pl.BlockSpec((Kp, Hp), lambda i: (0, 0)),        # conv weight (resident)
            pl.BlockSpec((1, Hp), lambda i: (0, 0)),         # conv bias
            pl.BlockSpec((Hp, NCp), lambda i: (0, 0)),       # classifier weight
            pl.BlockSpec((1, NCp), lambda i: (0, 0)),        # classifier bias
            pl.BlockSpec((Hp, LDp), lambda i: (0, 0)),       # projection weight
            pl.BlockSpec((1, LDp), lambda i: (0, 0)),        # projection bias
        ],
        out_specs=(pl.BlockSpec((TB, NCp), lambda i: (i, 0)),
                   pl.BlockSpec((TB, LDp), lambda i: (i, 0))),
        scratch_shapes=[pltpu.VMEM((TB, Hp), jnp.float32)],
        compiler_params=pltpu.CompilerParams(
            dimension_semantics=("parallel",),
            vmem_limit_bytes=32 * 1024 * 1024),
    )(patches, params["w_conv"], params["b_conv"],
      params["w_cls"], params["b_cls"], params["w_feat"], params["b_feat"])
    return logits, feat                                            # (output, q) padded


# ----------------------------------------------------------------------------
# Kernel 2: PaPi head
#   prototype logits for all four views in one stacked matmul + pseudo-labels
#   for q and k (argmax of exp(logit - max) * partial_Y; normalizations cancel).
# ----------------------------------------------------------------------------
def _papi_head_kernel(feat_ref, logits_ref, py_ref, proto_ref, lp_ref, lbl_ref):
    # (4B, LDp) x (NCp, LDp)^T -> (4B, NCp), lane-dense output.
    lp_ref[...] = lax.dot_general(feat_ref[...], proto_ref[...],
                                  (((1,), (1,)), ((), ())),
                                  preferred_element_type=jnp.float32)

    logits = logits_ref[...]                                        # (2B, NCp)
    py = py_ref[...]                                                # (2B, NCp), pad cols = 0
    m = jnp.max(logits, axis=1, keepdims=True)
    scores = jnp.exp(logits - m) * py                               # >0 exactly on candidates
    mx = jnp.max(scores, axis=1, keepdims=True)
    idx = lax.broadcasted_iota(jnp.int32, scores.shape, 1)
    cand = jnp.where(scores == mx, idx, scores.shape[1])            # first arg-max (torch.max)
    lbl_ref[...] = jnp.min(cand, axis=1, keepdims=True).astype(jnp.int32)


def papi_head(feat_all, logits_qk, py2, proto_pad):
    B4 = feat_all.shape[0]
    B2 = logits_qk.shape[0]
    NCp = proto_pad.shape[0]
    return pl.pallas_call(
        _papi_head_kernel,
        out_shape=(jax.ShapeDtypeStruct((B4, NCp), jnp.float32),
                   jax.ShapeDtypeStruct((B2, 1), jnp.int32)),
        in_specs=[_vmem(), _vmem(), _vmem(), _vmem()],
        out_specs=(_vmem(), _vmem()),
    )(feat_all, logits_qk, py2, proto_pad)


# ----------------------------------------------------------------------------
# Kernel 3: sequential prototype EMA update (q rows then k rows) + L2 renorm.
#   O(D) per sample: dynamic scalar label from SMEM, dynamic row load/store in VMEM.
# ----------------------------------------------------------------------------
def _proto_update_kernel(lbl_ref, w_ref, feat_ref, protoin_ref, out_ref, *, n):
    out_ref[...] = protoin_ref[...]
    w = w_ref[0]

    def body(i, carry):
        lbl = lbl_ref[i]                               # scalar label from SMEM
        fi = feat_ref[pl.ds(i, 1), :]                  # (1, LDp) feature row
        cur = out_ref[pl.ds(lbl, 1), :]                # current prototype row
        out_ref[pl.ds(lbl, 1), :] = w * cur + (1.0 - w) * fi
        return carry

    lax.fori_loop(0, n, body, 0, unroll=(n <= 64))

    p = out_ref[...]
    ss = jnp.sum(p * p, axis=1, keepdims=True)
    out_ref[...] = p * lax.rsqrt(jnp.maximum(ss, 1e-24))  # F.normalize(p=2, dim=1)


def proto_update(labels2, feats2, proto_pad, weight):
    NCp, LDp = proto_pad.shape
    n = feats2.shape[0]
    return pl.pallas_call(
        functools.partial(_proto_update_kernel, n=n),
        out_shape=jax.ShapeDtypeStruct((NCp, LDp), jnp.float32),
        in_specs=[_smem(), _smem(), _vmem(), _vmem()],
        out_specs=_vmem(),
    )(labels2, weight, feats2, proto_pad)


# ----------------------------------------------------------------------------
# Glue: im2col, full PaPi forward, param init
# ----------------------------------------------------------------------------
def im2col_3x3(x_nchw):
    B, C, H, W = x_nchw.shape
    xp = jnp.pad(x_nchw, ((0, 0), (0, 0), (1, 1), (1, 1)))
    cols = []
    for dy in range(3):
        for dx in range(3):
            cols.append(xp[:, :, dy:dy + H, dx:dx + W])
    cols = jnp.stack(cols, axis=0)                     # (9, B, C, H, W)
    cols = cols.transpose(1, 3, 4, 2, 0)               # (B, H, W, C, 9)
    return cols.reshape(B * H * W, C * 9)


def papi_forward(img_q, img_k, img_q_mix, img_k_mix, partial_Y, params,
                 prototypes, proto_weight):
    d = params["dims"]
    B = img_q.shape[0]
    nc, ld = d["num_class"], d["low_dim"]
    NCp, LDp = d["NCp"], d["LDp"]

    # Batch the four views -> one fused encoder pass.
    imgs = jnp.concatenate([img_q, img_k, img_q_mix, img_k_mix], axis=0)
    logits_all, feat_all = encoder_forward(imgs, params)           # (4B, NCp), (4B, LDp)

    py_pad = jnp.pad(partial_Y.astype(jnp.float32), ((0, 0), (0, NCp - nc)))
    py2 = jnp.concatenate([py_pad, py_pad], axis=0)                 # (2B, NCp) for q and k
    proto_pad = jnp.pad(prototypes.astype(jnp.float32),
                        ((0, NCp - nc), (0, LDp - ld)))             # (NCp, LDp)

    lp_all, lbl2 = papi_head(feat_all, logits_all[:2 * B], py2, proto_pad)

    new_proto_pad = proto_update(lbl2.reshape(2 * B), feat_all[:2 * B], proto_pad,
                                 jnp.asarray([proto_weight], jnp.float32))
    new_prototypes = new_proto_pad[:nc, :ld]

    output_q = logits_all[:B, :nc]
    output_k = logits_all[B:2 * B, :nc]
    lp_q = lp_all[:B, :nc]
    lp_k = lp_all[B:2 * B, :nc]
    lp_qm = lp_all[2 * B:3 * B, :nc]
    lp_km = lp_all[3 * B:, :nc]

    # matches torch return + the (normally in-place) updated prototype buffer
    return output_q, output_k, lp_q, lp_k, lp_qm, lp_km, new_prototypes


def init_params(key, in_ch, hidden, num_class, low_dim):
    ks = jax.random.split(key, 4)
    w_conv = jax.random.normal(ks[0], (hidden, in_ch, 3, 3), jnp.float32) * 0.1
    b_conv = jax.random.normal(ks[1], (hidden,), jnp.float32) * 0.01
    w_cls = jax.random.normal(ks[2], (hidden, num_class), jnp.float32) * 0.1
    w_feat = jax.random.normal(ks[3], (hidden, low_dim), jnp.float32) * 0.1

    K = in_ch * 9
    Kp = _rup(K, 8)                 # 27 -> 32 contraction padding
    Hp = _rup(hidden, 128)          # lane-dense hidden
    NCp = _rup(num_class, 128)      # lane-dense classes
    LDp = _rup(low_dim, 128)        # lane-dense projection dim

    w_conv_flat = w_conv.reshape(hidden, K).T           # (K, hidden), matches im2col order
    return dict(
        dims=dict(K=K, Kp=Kp, Hp=Hp, NCp=NCp, LDp=LDp,
                  hidden=hidden, num_class=num_class, low_dim=low_dim),
        w_conv=_pad2(w_conv_flat, Kp, Hp).astype(jnp.bfloat16),
        b_conv=_pad2(b_conv.reshape(1, hidden), 1, Hp),
        w_cls=_pad2(w_cls, Hp, NCp).astype(jnp.bfloat16),
        b_cls=jnp.zeros((1, NCp), jnp.float32),
        w_feat=_pad2(w_feat, Hp, LDp).astype(jnp.bfloat16),
        b_feat=jnp.zeros((1, LDp), jnp.float32),
    )


if __name__ == "__main__":
    B, Cimg, H, W = 8, 3, 16, 16
    num_class, low_dim, hidden = 10, 16, 32
    proto_m = 0.99  # args.proto_m

    key = jax.random.PRNGKey(0)
    k_img, k_par, k_lbl, k_extra = jax.random.split(key, 4)
    kq, kk, kqm, kkm = jax.random.split(k_img, 4)
    img_q = jax.random.normal(kq, (B, Cimg, H, W), jnp.float32)
    img_k = jax.random.normal(kk, (B, Cimg, H, W), jnp.float32)
    img_q_mix = jax.random.normal(kqm, (B, Cimg, H, W), jnp.float32)
    img_k_mix = jax.random.normal(kkm, (B, Cimg, H, W), jnp.float32)

    y_true = jax.random.randint(k_lbl, (B,), 0, num_class)
    extra = (jax.random.uniform(k_extra, (B, num_class)) < 0.3).astype(jnp.float32)
    partial_Y = jnp.clip(
        jax.nn.one_hot(y_true, num_class, dtype=jnp.float32) + extra, 0.0, 1.0)

    params = init_params(k_par, Cimg, hidden, num_class, low_dim)
    prototypes = jnp.zeros((num_class, low_dim), jnp.float32)  # register_buffer init

    outs = papi_forward(img_q, img_k, img_q_mix, img_k_mix, partial_Y,
                        params, prototypes, proto_m)
    jax.block_until_ready(outs)
    print("KERNEL_OK")
</pallas_src>

<mosaic_0001>
module attributes {stable_mosaic.version = 11 : i64} {
  func.func @_encoder_kernel(%arg0: i32, %arg1: memref<2048x32xbf16, #tpu.memory_space<vmem>>, %arg2: memref<32x128xbf16, #tpu.memory_space<vmem>>, %arg3: memref<1x128xf32, #tpu.memory_space<vmem>>, %arg4: memref<128x128xbf16, #tpu.memory_space<vmem>>, %arg5: memref<1x128xf32, #tpu.memory_space<vmem>>, %arg6: memref<128x128xbf16, #tpu.memory_space<vmem>>, %arg7: memref<1x128xf32, #tpu.memory_space<vmem>>, %arg8: memref<8x128xf32, #tpu.memory_space<vmem>>, %arg9: memref<8x128xf32, #tpu.memory_space<vmem>>, %arg10: memref<8x128xf32, #tpu.memory_space<vmem>>) attributes {dimension_semantics = [#tpu.dimension_semantics<parallel>], iteration_bounds = array<i64: 4>, scalar_prefetch = 0 : i64, scratch_operands = 1 : i64, tpu.core_type = #tpu.core_type<tc>, window_params = [{transform_indices = @transform_0, window_bounds = array<i64: 2048, 32>}, {pipeline_mode = #tpu.pipeline_mode<synchronous>, transform_indices = @transform_1, window_bounds = array<i64: 32, 128>}, {pipeline_mode = #tpu.pipeline_mode<synchronous>, transform_indices = @transform_2, window_bounds = array<i64: 1, 128>}, {pipeline_mode = #tpu.pipeline_mode<synchronous>, transform_indices = @transform_3, window_bounds = array<i64: 128, 128>}, {pipeline_mode = #tpu.pipeline_mode<synchronous>, transform_indices = @transform_4, window_bounds = array<i64: 1, 128>}, {pipeline_mode = #tpu.pipeline_mode<synchronous>, transform_indices = @transform_5, window_bounds = array<i64: 128, 128>}, {pipeline_mode = #tpu.pipeline_mode<synchronous>, transform_indices = @transform_6, window_bounds = array<i64: 1, 128>}, {transform_indices = @transform_7, window_bounds = array<i64: 8, 128>}, {transform_indices = @transform_8, window_bounds = array<i64: 8, 128>}]} {
    %c0 = arith.constant 0 : index
    %c0_0 = arith.constant 0 : index
    %0 = vector.load %arg2[%c0, %c0_0] : memref<32x128xbf16, #tpu.memory_space<vmem>>, vector<32x128xbf16>
    %c0_1 = arith.constant 0 : index
    %c0_2 = arith.constant 0 : index
    %1 = vector.load %arg3[%c0_1, %c0_2] : memref<1x128xf32, #tpu.memory_space<vmem>>, vector<1x128xf32>
    %c0_3 = arith.constant 0 : index
    %c0_4 = arith.constant 0 : index
    %2 = vector.load %arg1[%c0_3, %c0_4] : memref<2048x32xbf16, #tpu.memory_space<vmem>>, vector<256x32xbf16>
    %cst = arith.constant dense<0.000000e+00> : vector<256x128xf32>
    %3 = tpu.matmul %2, %0, %cst {dimension_numbers = #tpu.dot_dimension_numbers<[1], [0], [0], [1], [0, 0, 1, 1], [], []>} : vector<256x32xbf16>, vector<32x128xbf16>, vector<256x128xf32> -> vector<256x128xf32>
    %4 = vector.broadcast %1 : vector<1x128xf32> to vector<256x128xf32>
    %5 = arith.addf %3, %4 : vector<256x128xf32>
    %cst_5 = arith.constant 0.000000e+00 : f32
    %6 = vector.broadcast %cst_5 : f32 to vector<256x128xf32>
    %7 = arith.maximumf %5, %6 : vector<256x128xf32>
    %cst_6 = arith.constant dense<0.000000e+00> : vector<128xf32>
    %8 = vector.multi_reduction <add>, %7, %cst_6 [0] : vector<256x128xf32> to vector<128xf32>
    %9 = vector.shape_cast %8 : vector<128xf32> to vector<1x128xf32>
    %c0_7 = arith.constant 0 : index
    %c0_8 = arith.constant 0 : index
    %10 = vector.load %arg10[%c0_7, %c0_8] : memref<8x128xf32, #tpu.memory_space<vmem>>, vector<1x128xf32>
    tpu.vector_store %arg10[%c0_7, %c0_8], %9 {strides = array<i32>} : memref<8x128xf32, #tpu.memory_space<vmem>>, vector<1x128xf32>,
    %c256 = arith.constant 256 : index
    %c0_9 = arith.constant 0 : index
    %11 = vector.load %arg1[%c256, %c0_9] : memref<2048x32xbf16, #tpu.memory_space<vmem>>, vector<256x32xbf16>
    %cst_10 = arith.constant dense<0.000000e+00> : vector<256x128xf32>
    %12 = tpu.matmul %11, %0, %cst_10 {dimension_numbers = #tpu.dot_dimension_numbers<[1], [0], [0], [1], [0, 0, 1, 1], [], []>} : vector<256x32xbf16>, vector<32x128xbf16>, vector<256x128xf32> -> vector<256x128xf32>
    %13 = vector.broadcast %1 : vector<1x128xf32> to vector<256x128xf32>
    %14 = arith.addf %12, %13 : vector<256x128xf32>
    %cst_11 = arith.constant 0.000000e+00 : f32
    %15 = vector.broadcast %cst_11 : f32 to vector<256x128xf32>
    %16 = arith.maximumf %14, %15 : vector<256x128xf32>
    %cst_12 = arith.constant dense<0.000000e+00> : vector<128xf32>
    %17 = vector.multi_reduction <add>, %16, %cst_12 [0] : vector<256x128xf32> to vector<128xf32>
    %18 = vector.shape_cast %17 : vector<128xf32> to vector<1x128xf32>
    %c1 = arith.constant 1 : index
    %c0_13 = arith.constant 0 : index
    %19 = vector.load %arg10[%c1, %c0_13] : memref<8x128xf32, #tpu.memory_space<vmem>>, vector<1x128xf32>
    tpu.vector_store %arg10[%c1, %c0_13], %18 {strides = array<i32>} : memref<8x128xf32, #tpu.memory_space<vmem>>, vector<1x128xf32>,
    %c512 = arith.constant 512 : index
    %c0_14 = arith.constant 0 : index
    %20 = vector.load %arg1[%c512, %c0_14] : memref<2048x32xbf16, #tpu.memory_space<vmem>>, vector<256x32xbf16>
    %cst_15 = arith.constant dense<0.000000e+00> : vector<256x128xf32>
    %21 = tpu.matmul %20, %0, %cst_15 {dimension_numbers = #tpu.dot_dimension_numbers<[1], [0], [0], [1], [0, 0, 1, 1], [], []>} : vector<256x32xbf16>, vector<32x128xbf16>, vector<256x128xf32> -> vector<256x128xf32>
    %22 = vector.broadcast %1 : vector<1x128xf32> to vector<256x128xf32>
    %23 = arith.addf %21, %22 : vector<256x128xf32>
    %cst_16 = arith.constant 0.000000e+00 : f32
    %24 = vector.broadcast %cst_16 : f32 to vector<256x128xf32>
    %25 = arith.maximumf %23, %24 : vector<256x128xf32>
    %cst_17 = arith.constant dense<0.000000e+00> : vector<128xf32>
    %26 = vector.multi_reduction <add>, %25, %cst_17 [0] : vector<256x128xf32> to vector<128xf32>
    %27 = vector.shape_cast %26 : vector<128xf32> to vector<1x128xf32>
    %c2 = arith.constant 2 : index
    %c0_18 = arith.constant 0 : index
    %28 = vector.load %arg10[%c2, %c0_18] : memref<8x128xf32, #tpu.memory_space<vmem>>, vector<1x128xf32>
    tpu.vector_store %arg10[%c2, %c0_18], %27 {strides = array<i32>} : memref<8x128xf32, #tpu.memory_space<vmem>>, vector<1x128xf32>,
    %c768 = arith.constant 768 : index
    %c0_19 = arith.constant 0 : index
    %29 = vector.load %arg1[%c768, %c0_19] : memref<2048x32xbf16, #tpu.memory_space<vmem>>, vector<256x32xbf16>
    %cst_20 = arith.constant dense<0.000000e+00> : vector<256x128xf32>
    %30 = tpu.matmul %29, %0, %cst_20 {dimension_numbers = #tpu.dot_dimension_numbers<[1], [0], [0], [1], [0, 0, 1, 1], [], []>} : vector<256x32xbf16>, vector<32x128xbf16>, vector<256x128xf32> -> vector<256x128xf32>
    %31 = vector.broadcast %1 : vector<1x128xf32> to vector<256x128xf32>
    %32 = arith.addf %30, %31 : vector<256x128xf32>
    %cst_21 = arith.constant 0.000000e+00 : f32
    %33 = vector.broadcast %cst_21 : f32 to vector<256x128xf32>
    %34 = arith.maximumf %32, %33 : vector<256x128xf32>
    %cst_22 = arith.constant dense<0.000000e+00> : vector<128xf32>
    %35 = vector.multi_reduction <add>, %34, %cst_22 [0] : vector<256x128xf32> to vector<128xf32>
    %36 = vector.shape_cast %35 : vector<128xf32> to vector<1x128xf32>
    %c3 = arith.constant 3 : index
    %c0_23 = arith.constant 0 : index
    %37 = vector.load %arg10[%c3, %c0_23] : memref<8x128xf32, #tpu.memory_space<vmem>>, vector<1x128xf32>
    tpu.vector_store %arg10[%c3, %c0_23], %36 {strides = array<i32>} : memref<8x128xf32, #tpu.memory_space<vmem>>, vector<1x128xf32>,
    %c1024 = arith.constant 1024 : index
    %c0_24 = arith.constant 0 : index
    %38 = vector.load %arg1[%c1024, %c0_24] : memref<2048x32xbf16, #tpu.memory_space<vmem>>, vector<256x32xbf16>
    %cst_25 = arith.constant dense<0.000000e+00> : vector<256x128xf32>
    %39 = tpu.matmul %38, %0, %cst_25 {dimension_numbers = #tpu.dot_dimension_numbers<[1], [0], [0], [1], [0, 0, 1, 1], [], []>} : vector<256x32xbf16>, vector<32x128xbf16>, vector<256x128xf32> -> vector<256x128xf32>
    %40 = vector.broadcast %1 : vector<1x128xf32> to vector<256x128xf32>
    %41 = arith.addf %39, %40 : vector<256x128xf32>
    %cst_26 = arith.constant 0.000000e+00 : f32
    %42 = vector.broadcast %cst_26 : f32 to vector<256x128xf32>
    %43 = arith.maximumf %41, %42 : vector<256x128xf32>
    %cst_27 = arith.constant dense<0.000000e+00> : vector<128xf32>
    %44 = vector.multi_reduction <add>, %43, %cst_27 [0] : vector<256x128xf32> to vector<128xf32>
    %45 = vector.shape_cast %44 : vector<128xf32> to vector<1x128xf32>
    %c4 = arith.constant 4 : index
    %c0_28 = arith.constant 0 : index
    %46 = vector.load %arg10[%c4, %c0_28] : memref<8x128xf32, #tpu.memory_space<vmem>>, vector<1x128xf32>
    tpu.vector_store %arg10[%c4, %c0_28], %45 {strides = array<i32>} : memref<8x128xf32, #tpu.memory_space<vmem>>, vector<1x128xf32>,
    %c1280 = arith.constant 1280 : index
    %c0_29 = arith.constant 0 : index
    %47 = vector.load %arg1[%c1280, %c0_29] : memref<2048x32xbf16, #tpu.memory_space<vmem>>, vector<256x32xbf16>
    %cst_30 = arith.constant dense<0.000000e+00> : vector<256x128xf32>
    %48 = tpu.matmul %47, %0, %cst_30 {dimension_numbers = #tpu.dot_dimension_numbers<[1], [0], [0], [1], [0, 0, 1, 1], [], []>} : vector<256x32xbf16>, vector<32x128xbf16>, vector<256x128xf32> -> vector<256x128xf32>
    %49 = vector.broadcast %1 : vector<1x128xf32> to vector<256x128xf32>
    %50 = arith.addf %48, %49 : vector<256x128xf32>
    %cst_31 = arith.constant 0.000000e+00 : f32
    %51 = vector.broadcast %cst_31 : f32 to vector<256x128xf32>
    %52 = arith.maximumf %50, %51 : vector<256x128xf32>
    %cst_32 = arith.constant dense<0.000000e+00> : vector<128xf32>
    %53 = vector.multi_reduction <add>, %52, %cst_32 [0] : vector<256x128xf32> to vector<128xf32>
    %54 = vector.shape_cast %53 : vector<128xf32> to vector<1x128xf32>
    %c5 = arith.constant 5 : index
    %c0_33 = arith.constant 0 : index
    %55 = vector.load %arg10[%c5, %c0_33] : memref<8x128xf32, #tpu.memory_space<vmem>>, vector<1x128xf32>
    tpu.vector_store %arg10[%c5, %c0_33], %54 {strides = array<i32>} : memref<8x128xf32, #tpu.memory_space<vmem>>, vector<1x128xf32>,
    %c1536 = arith.constant 1536 : index
    %c0_34 = arith.constant 0 : index
    %56 = vector.load %arg1[%c1536, %c0_34] : memref<2048x32xbf16, #tpu.memory_space<vmem>>, vector<256x32xbf16>
    %cst_35 = arith.constant dense<0.000000e+00> : vector<256x128xf32>
    %57 = tpu.matmul %56, %0, %cst_35 {dimension_numbers = #tpu.dot_dimension_numbers<[1], [0], [0], [1], [0, 0, 1, 1], [], []>} : vector<256x32xbf16>, vector<32x128xbf16>, vector<256x128xf32> -> vector<256x128xf32>
    %58 = vector.broadcast %1 : vector<1x128xf32> to vector<256x128xf32>
    %59 = arith.addf %57, %58 : vector<256x128xf32>
    %cst_36 = arith.constant 0.000000e+00 : f32
    %60 = vector.broadcast %cst_36 : f32 to vector<256x128xf32>
    %61 = arith.maximumf %59, %60 : vector<256x128xf32>
    %cst_37 = arith.constant dense<0.000000e+00> : vector<128xf32>
    %62 = vector.multi_reduction <add>, %61, %cst_37 [0] : vector<256x128xf32> to vector<128xf32>
    %63 = vector.shape_cast %62 : vector<128xf32> to vector<1x128xf32>
    %c6 = arith.constant 6 : index
    %c0_38 = arith.constant 0 : index
    %64 = vector.load %arg10[%c6, %c0_38] : memref<8x128xf32, #tpu.memory_space<vmem>>, vector<1x128xf32>
    tpu.vector_store %arg10[%c6, %c0_38], %63 {strides = array<i32>} : memref<8x128xf32, #tpu.memory_space<vmem>>, vector<1x128xf32>,
    %c1792 = arith.constant 1792 : index
    %c0_39 = arith.constant 0 : index
    %65 = vector.load %arg1[%c1792, %c0_39] : memref<2048x32xbf16, #tpu.memory_space<vmem>>, vector<256x32xbf16>
    %cst_40 = arith.constant dense<0.000000e+00> : vector<256x128xf32>
    %66 = tpu.matmul %65, %0, %cst_40 {dimension_numbers = #tpu.dot_dimension_numbers<[1], [0], [0], [1], [0, 0, 1, 1], [], []>} : vector<256x32xbf16>, vector<32x128xbf16>, vector<256x128xf32> -> vector<256x128xf32>
    %67 = vector.broadcast %1 : vector<1x128xf32> to vector<256x128xf32>
    %68 = arith.addf %66, %67 : vector<256x128xf32>
    %cst_41 = arith.constant 0.000000e+00 : f32
    %69 = vector.broadcast %cst_41 : f32 to vector<256x128xf32>
    %70 = arith.maximumf %68, %69 : vector<256x128xf32>
    %cst_42 = arith.constant dense<0.000000e+00> : vector<128xf32>
    %71 = vector.multi_reduction <add>, %70, %cst_42 [0] : vector<256x128xf32> to vector<128xf32>
    %72 = vector.shape_cast %71 : vector<128xf32> to vector<1x128xf32>
    %c7 = arith.constant 7 : index
    %c0_43 = arith.constant 0 : index
    %73 = vector.load %arg10[%c7, %c0_43] : memref<8x128xf32, #tpu.memory_space<vmem>>, vector<1x128xf32>
    tpu.vector_store %arg10[%c7, %c0_43], %72 {strides = array<i32>} : memref<8x128xf32, #tpu.memory_space<vmem>>, vector<1x128xf32>,
    %c0_44 = arith.constant 0 : index
    %c0_45 = arith.constant 0 : index
    %74 = vector.load %arg10[%c0_44, %c0_45] : memref<8x128xf32, #tpu.memory_space<vmem>>, vector<8x128xf32>
    %cst_46 = arith.constant 3.906250e-03 : f32
    %75 = vector.broadcast %cst_46 : f32 to vector<8x128xf32>
    %76 = arith.mulf %74, %75 : vector<8x128xf32>
    %77 = arith.truncf %76 : vector<8x128xf32> to vector<8x128xbf16>
    %c0_47 = arith.constant 0 : index
    %c0_48 = arith.constant 0 : index
    %78 = vector.load %arg4[%c0_47, %c0_48] : memref<128x128xbf16, #tpu.memory_space<vmem>>, vector<128x128xbf16>
    %cst_49 = arith.constant dense<0.000000e+00> : vector<8x128xf32>
    %79 = tpu.matmul %77, %78, %cst_49 {dimension_numbers = #tpu.dot_dimension_numbers<[1], [0], [0], [1], [0, 0, 1, 1], [], []>} : vector<8x128xbf16>, vector<128x128xbf16>, vector<8x128xf32> -> vector<8x128xf32>
    %c0_50 = arith.constant 0 : index
    %c0_51 = arith.constant 0 : index
    %80 = vector.load %arg5[%c0_50, %c0_51] : memref<1x128xf32, #tpu.memory_space<vmem>>, vector<1x128xf32>
    %81 = vector.broadcast %80 : vector<1x128xf32> to vector<8x128xf32>
    %82 = arith.addf %79, %81 : vector<8x128xf32>
    %c0_52 = arith.constant 0 : index
    %c0_53 = arith.constant 0 : index
    %83 = vector.load %arg8[%c0_52, %c0_53] : memref<8x128xf32, #tpu.memory_space<vmem>>, vector<8x128xf32>
    tpu.vector_store %arg8[%c0_52, %c0_53], %82 {strides = array<i32>} : memref<8x128xf32, #tpu.memory_space<vmem>>, vector<8x128xf32>,
    %c0_54 = arith.constant 0 : index
    %c0_55 = arith.constant 0 : index
    %84 = vector.load %arg6[%c0_54, %c0_55] : memref<128x128xbf16, #tpu.memory_space<vmem>>, vector<128x128xbf16>
    %cst_56 = arith.constant dense<0.000000e+00> : vector<8x128xf32>
    %85 = tpu.matmul %77, %84, %cst_56 {dimension_numbers = #tpu.dot_dimension_numbers<[1], [0], [0], [1], [0, 0, 1, 1], [], []>} : vector<8x128xbf16>, vector<128x128xbf16>, vector<8x128xf32> -> vector<8x128xf32>
    %c0_57 = arith.constant 0 : index
    %c0_58 = arith.constant 0 : index
    %86 = vector.load %arg7[%c0_57, %c0_58] : memref<1x128xf32, #tpu.memory_space<vmem>>, vector<1x128xf32>
    %87 = vector.broadcast %86 : vector<1x128xf32> to vector<8x128xf32>
    %88 = arith.addf %85, %87 : vector<8x128xf32>
    %89 = arith.mulf %88, %88 : vector<8x128xf32>
    %cst_59 = arith.constant dense<0.000000e+00> : vector<8xf32>
    %90 = vector.multi_reduction <add>, %89, %cst_59 [1] : vector<8x128xf32> to vector<8xf32>
    %91 = vector.shape_cast %90 : vector<8xf32> to vector<8x1xf32>
    %cst_60 = arith.constant 1.000000e-24 : f32
    %92 = vector.broadcast %cst_60 : f32 to vector<8x1xf32>
    %93 = arith.maximumf %91, %92 : vector<8x1xf32>
    %94 = math.rsqrt %93 : vector<8x1xf32>
    %95 = vector.broadcast %94 : vector<8x1xf32> to vector<8x128xf32>
    %96 = arith.mulf %88, %95 : vector<8x128xf32>
    %c0_61 = arith.constant 0 : index
    %c0_62 = arith.constant 0 : index
    %97 = vector.load %arg9[%c0_61, %c0_62] : memref<8x128xf32, #tpu.memory_space<vmem>>, vector<8x128xf32>
    tpu.vector_store %arg9[%c0_61, %c0_62], %96 {strides = array<i32>} : memref<8x128xf32, #tpu.memory_space<vmem>>, vector<8x128xf32>,
    return
  }
  func.func @transform_0(%arg0: i32) -> (i32, i32) {
    %c0_i32 = arith.constant 0 : i32
    %c0_i32_0 = arith.constant 0 : i32
    return %arg0, %c0_i32 : i32, i32
  }
  func.func @transform_1(%arg0: i32) -> (i32, i32) {
    %c0_i32 = arith.constant 0 : i32
    %c0_i32_0 = arith.constant 0 : i32
    %c0_i32_1 = arith.constant 0 : i32
    return %c0_i32, %c0_i32_0 : i32, i32
  }
  func.func @transform_2(%arg0: i32) -> (i32, i32) {
    %c0_i32 = arith.constant 0 : i32
    %c0_i32_0 = arith.constant 0 : i32
    %c0_i32_1 = arith.constant 0 : i32
    return %c0_i32, %c0_i32_0 : i32, i32
  }
  func.func @transform_3(%arg0: i32) -> (i32, i32) {
    %c0_i32 = arith.constant 0 : i32
    %c0_i32_0 = arith.constant 0 : i32
    %c0_i32_1 = arith.constant 0 : i32
    return %c0_i32, %c0_i32_0 : i32, i32
  }
  func.func @transform_4(%arg0: i32) -> (i32, i32) {
    %c0_i32 = arith.constant 0 : i32
    %c0_i32_0 = arith.constant 0 : i32
    %c0_i32_1 = arith.constant 0 : i32
    return %c0_i32, %c0_i32_0 : i32, i32
  }
  func.func @transform_5(%arg0: i32) -> (i32, i32) {
    %c0_i32 = arith.constant 0 : i32
    %c0_i32_0 = arith.constant 0 : i32
    %c0_i32_1 = arith.constant 0 : i32
    return %c0_i32, %c0_i32_0 : i32, i32
  }
  func.func @transform_6(%arg0: i32) -> (i32, i32) {
    %c0_i32 = arith.constant 0 : i32
    %c0_i32_0 = arith.constant 0 : i32
    %c0_i32_1 = arith.constant 0 : i32
    return %c0_i32, %c0_i32_0 : i32, i32
  }
  func.func @transform_7(%arg0: i32) -> (i32, i32) {
    %c0_i32 = arith.constant 0 : i32
    %c0_i32_0 = arith.constant 0 : i32
    return %arg0, %c0_i32 : i32, i32
  }
  func.func @transform_8(%arg0: i32) -> (i32, i32) {
    %c0_i32 = arith.constant 0 : i32
    %c0_i32_0 = arith.constant 0 : i32
    return %arg0, %c0_i32 : i32, i32
  }
}

</mosaic_0001>

<llo_original>
// kernel: tpu_custom_call.1
$region0: #{tpu_custom_call.1}
  #allocation0 [shape = 'u32[]', space=smem, size = 0x4, offset = 0x4, fixed_abs, tag = 'smem constant byte address 0x4 - core index']
  #allocation1 [shape = 'u32[144,128]{1,0:T(1,128)}', space=vmem, size = 0x12000, scoped, tag = 'internal scratch']
  #allocation2 [shape = 'f32[8,128]{1,0:T(8,128)}', space=vmem, size = 0x1000, scoped, tag = 'scratch operand']
  %s0 = inlined_call_operand.vmem [shape: bf16[8192,32], index: 0, kind: input, shape index: {}]
  %s1 = inlined_call_operand.vmem [shape: bf16[32,128], index: 1, kind: input, shape index: {}]
  %s2 = inlined_call_operand.vmem [shape: f32[1,128], index: 2, kind: input, shape index: {}]
  %s3 = inlined_call_operand.vmem [shape: bf16[128,128], index: 3, kind: input, shape index: {}]
  %s4 = inlined_call_operand.vmem [shape: f32[1,128], index: 4, kind: input, shape index: {}]
  %s5 = inlined_call_operand.vmem [shape: bf16[128,128], index: 5, kind: input, shape index: {}]
  %s6 = inlined_call_operand.vmem [shape: f32[1,128], index: 6, kind: input, shape index: {}]
  %s7 = inlined_call_operand.hbm [shape: f32[32,128], index: 7, kind: output, shape index: {0}]
  %s8 = inlined_call_operand.hbm [shape: f32[32,128], index: 8, kind: output, shape index: {1}]
  %9 = xla_tuple %s7, %s8
  %s10 = sld [smem:[#allocation0]]
  $region69: #{tpu_custom_call.1} parent=0
    _
  %s12 = ssub.s32 1, %s10
  %s13 = scalar_select 0, %s12, %s10
  $region1: #{tpu_custom_call.1} parent=0
    #allocation3 [shape = 'u8[8192]{0}', space=vmem, size = 0x2000, scoped, tag = 'output window, operand 0']
    #allocation4 [shape = 's32[2]{0}', space=sflag, size = 0x8, scoped, tag = 'scoped memory for tpu_custom_call.1']
    #allocation5 [shape = 'u8[8192]{0}', space=vmem, size = 0x2000, scoped, tag = 'output window, operand 1']
    #allocation6 [shape = 's32[2]{0}', space=sflag, size = 0x8, scoped, tag = 'scoped memory for tpu_custom_call.1']
    %14 = vsyncpa [#allocation4], 0
    %s15 = scalar_lea.sflag [#allocation4], 1
    %16 = vsyncpa %s15, 0
    %17 = vsyncpa [#allocation6], 0
    %s18 = scalar_lea.sflag [#allocation6], 1
    %19 = vsyncpa %s18, 0
    loop: start=0, step=1, limit=6
    $region2: #{tpu_custom_call.1} parent=1 // loop_pre_header
      _
    $region3: #{tpu_custom_call.1} parent=1 // loop_header
      %s21 = sphi 0, %s25
      %p22 = scmp.ge.s32.totalorder %s21, 6
      %s31 = sphi 0, %s33
      %s34 = sphi 0, %s31
      %s35 = sphi 0, %s34
      %s51 = sphi 0, %s35
      %s55 = sphi 0, %s55
      %s57 = sphi 0, %s55
      %s58 = sphi 0, %s57
      %s72 = sphi 0, %s58
      %s76 = sphi 0, %s76
      %s78 = sphi 0, %s76
      %s79 = sphi 0, %s78
      %s93 = sphi 0, %s79
      %s97 = sphi 0, %s97
      %s99 = sphi 0, %s97
      %s100 = sphi 0, %s99
      %s114 = sphi 0, %s100
      %s118 = sphi 0, %s118
      %s120 = sphi 0, %s118
      %s121 = sphi 0, %s120
      %s135 = sphi 0, %s121
      %s139 = sphi 0, %s139
      %s141 = sphi 0, %s139
      %s142 = sphi 0, %s141
      %s156 = sphi 0, %s142
      %s160 = sphi 0, %s160
      %s162 = sphi 0, %s160
      %s163 = sphi 0, %s162
      %s177 = sphi 0, %s163
      %s183 = sphi 0, %s185
      %s186 = sphi 0, %s183
      %s187 = sphi 0, %s186
      %s203 = sphi 0, %s187
      %s209 = sphi 0, %s211
      %s212 = sphi 0, %s209
      %s213 = sphi 0, %s212
      %s229 = sphi 0, %s213
    $region4: #{tpu_custom_call.1} parent=1 // loop_header_branch
      %24 = sbr.rel (%p22) target = $region8
    $region5: #{tpu_custom_call.1} parent=1 // loop_body
      %s26 = ssub.s32 %s21, 1
      %s27 = ssub.s32 %s21, 2
      %s28 = sadd.s32 %s21, 1
      %s29 = ssub.s32 %s21, %s28
      %p30 = scmp.eq.s32.totalorder %s29, 0
      %s32 = sadd.s32 %s31, 1
      %s33 = scalar_select %p30, %s31, %s32
      %p36 = pneg %p30
      %p37 = scmp.eq.s32.totalorder %s21, 3
      %p38 = por %p36, %p37
      %p39 = scmp.ne.s32.totalorder %s31, %s34
      %p40 = scmp.eq.s32.totalorder %s21, 0
      %p41 = por %p39, %p40
      %p42 = scmp.ne.s32.totalorder %s31, %s34
      %p43 = scmp.eq.s32.totalorder %s26, 3
      %p44 = por %p42, %p43
      %p45 = scmp.ne.s32.totalorder %s34, %s35
      %p46 = scmp.eq.s32.totalorder %s26, 0
      %p47 = por %p45, %p46
      %p48 = scmp.ne.s32.totalorder %s34, %s35
      %p49 = scmp.eq.s32.totalorder %s27, 3
      %p50 = por %p48, %p49
      %p52 = scmp.ne.s32.totalorder %s35, %s51
      %p53 = scmp.eq.s32.totalorder %s27, 0
      %p54 = por %p52, %p53
      %s56 = sadd.s32 %s55, 1
      %p59 = scmp.eq.s32.totalorder %s21, 3
      %p60 = scmp.ne.s32.totalorder %s55, %s57
      %p61 = scmp.eq.s32.totalorder %s21, 0
      %p62 = por %p60, %p61
      %p63 = scmp.ne.s32.totalorder %s55, %s57
      %p64 = scmp.eq.s32.totalorder %s26, 3
      %p65 = por %p63, %p64
      %p66 = scmp.ne.s32.totalorder %s57, %s58
      %p67 = scmp.eq.s32.totalorder %s26, 0
      %p68 = por %p66, %p67
      %p69 = scmp.ne.s32.totalorder %s57, %s58
      %p70 = scmp.eq.s32.totalorder %s27, 3
      %p71 = por %p69, %p70
      %p73 = scmp.ne.s32.totalorder %s58, %s72
      %p74 = scmp.eq.s32.totalorder %s27, 0
      %p75 = por %p73, %p74
      %s77 = sadd.s32 %s76, 1
      %p80 = scmp.eq.s32.totalorder %s21, 3
      %p81 = scmp.ne.s32.totalorder %s76, %s78
      %p82 = scmp.eq.s32.totalorder %s21, 0
      %p83 = por %p81, %p82
      %p84 = scmp.ne.s32.totalorder %s76, %s78
      %p85 = scmp.eq.s32.totalorder %s26, 3
      %p86 = por %p84, %p85
      %p87 = scmp.ne.s32.totalorder %s78, %s79
      %p88 = scmp.eq.s32.totalorder %s26, 0
      %p89 = por %p87, %p88
      %p90 = scmp.ne.s32.totalorder %s78, %s79
      %p91 = scmp.eq.s32.totalorder %s27, 3
      %p92 = por %p90, %p91
      %p94 = scmp.ne.s32.totalorder %s79, %s93
      %p95 = scmp.eq.s32.totalorder %s27, 0
      %p96 = por %p94, %p95
      %s98 = sadd.s32 %s97, 1
      %p101 = scmp.eq.s32.totalorder %s21, 3
      %p102 = scmp.ne.s32.totalorder %s97, %s99
      %p103 = scmp.eq.s32.totalorder %s21, 0
      %p104 = por %p102, %p103
      %p105 = scmp.ne.s32.totalorder %s97, %s99
      %p106 = scmp.eq.s32.totalorder %s26, 3
      %p107 = por %p105, %p106
      %p108 = scmp.ne.s32.totalorder %s99, %s100
      %p109 = scmp.eq.s32.totalorder %s26, 0
      %p110 = por %p108, %p109
      %p111 = scmp.ne.s32.totalorder %s99, %s100
      %p112 = scmp.eq.s32.totalorder %s27, 3
      %p113 = por %p111, %p112
      %p115 = scmp.ne.s32.totalorder %s100, %s114
      %p116 = scmp.eq.s32.totalorder %s27, 0
      %p117 = por %p115, %p116
      %s119 = sadd.s32 %s118, 1
      %p122 = scmp.eq.s32.totalorder %s21, 3
      %p123 = scmp.ne.s32.totalorder %s118, %s120
      %p124 = scmp.eq.s32.totalorder %s21, 0
      %p125 = por %p123, %p124
      %p126 = scmp.ne.s32.totalorder %s118, %s120
      %p127 = scmp.eq.s32.totalorder %s26, 3
      %p128 = por %p126, %p127
      %p129 = scmp.ne.s32.totalorder %s120, %s121
      %p130 = scmp.eq.s32.totalorder %s26, 0
      %p131 = por %p129, %p130
      %p132 = scmp.ne.s32.totalorder %s120, %s121
      %p133 = scmp.eq.s32.totalorder %s27, 3
      %p134 = por %p132, %p133
      %p136 = scmp.ne.s32.totalorder %s121, %s135
      %p137 = scmp.eq.s32.totalorder %s27, 0
      %p138 = por %p136, %p137
      %s140 = sadd.s32 %s139, 1
      %p143 = scmp.eq.s32.totalorder %s21, 3
      %p144 = scmp.ne.s32.totalorder %s139, %s141
      %p145 = scmp.eq.s32.totalorder %s21, 0
      %p146 = por %p144, %p145
      %p147 = scmp.ne.s32.totalorder %s139, %s141
      %p148 = scmp.eq.s32.totalorder %s26, 3
      %p149 = por %p147, %p148
      %p150 = scmp.ne.s32.totalorder %s141, %s142
      %p151 = scmp.eq.s32.totalorder %s26, 0
      %p152 = por %p150, %p151
      %p153 = scmp.ne.s32.totalorder %s141, %s142
      %p154 = scmp.eq.s32.totalorder %s27, 3
      %p155 = por %p153, %p154
      %p157 = scmp.ne.s32.totalorder %s142, %s156
      %p158 = scmp.eq.s32.totalorder %s27, 0
      %p159 = por %p157, %p158
      %s161 = sadd.s32 %s160, 1
      %p164 = scmp.eq.s32.totalorder %s21, 3
      %p165 = scmp.ne.s32.totalorder %s160, %s162
      %p166 = scmp.eq.s32.totalorder %s21, 0
      %p167 = por %p165, %p166
      %p168 = scmp.ne.s32.totalorder %s160, %s162
      %p169 = scmp.eq.s32.totalorder %s26, 3
      %p170 = por %p168, %p169
      %p171 = scmp.ne.s32.totalorder %s162, %s163
      %p172 = scmp.eq.s32.totalorder %s26, 0
      %p173 = por %p171, %p172
      %p174 = scmp.ne.s32.totalorder %s162, %s163
      %p175 = scmp.eq.s32.totalorder %s27, 3
      %p176 = por %p174, %p175
      %p178 = scmp.ne.s32.totalorder %s163, %s177
      %p179 = scmp.eq.s32.totalorder %s27, 0
      %p180 = por %p178, %p179
      %s181 = ssub.s32 %s21, %s28
      %p182 = scmp.eq.s32.totalorder %s181, 0
      %s184 = sadd.s32 %s183, 1
      %s185 = scalar_select %p182, %s183, %s184
      %p188 = pneg %p182
      %p189 = scmp.eq.s32.totalorder %s21, 3
      %p190 = por %p188, %p189
      %p191 = scmp.ne.s32.totalorder %s183, %s186
      %p192 = scmp.eq.s32.totalorder %s21, 0
      %p193 = por %p191, %p192
      %p194 = scmp.ne.s32.totalorder %s183, %s186
      %p195 = scmp.eq.s32.totalorder %s26, 3
      %p196 = por %p194, %p195
      %p197 = scmp.ne.s32.totalorder %s186, %s187
      %p198 = scmp.eq.s32.totalorder %s26, 0
      %p199 = por %p197, %p198
      %p200 = scmp.ne.s32.totalorder %s186, %s187
      %p201 = scmp.eq.s32.totalorder %s27, 3
      %p202 = por %p200, %p201
      %p204 = scmp.ne.s32.totalorder %s187, %s203
      %p205 = scmp.eq.s32.totalorder %s27, 0
      %p206 = por %p204, %p205
      %s207 = ssub.s32 %s21, %s28
      %p208 = scmp.eq.s32.totalorder %s207, 0
      %s210 = sadd.s32 %s209, 1
      %s211 = scalar_select %p208, %s209, %s210
      %p214 = pneg %p208
      %p215 = scmp.eq.s32.totalorder %s21, 3
      %p216 = por %p214, %p215
      %p217 = scmp.ne.s32.totalorder %s209, %s212
      %p218 = scmp.eq.s32.totalorder %s21, 0
      %p219 = por %p217, %p218
      %p220 = scmp.ne.s32.totalorder %s209, %s212
      %p221 = scmp.eq.s32.totalorder %s26, 3
      %p222 = por %p220, %p221
      %p223 = scmp.ne.s32.totalorder %s212, %s213
      %p224 = scmp.eq.s32.totalorder %s26, 0
      %p225 = por %p223, %p224
      %p226 = scmp.ne.s32.totalorder %s212, %s213
      %p227 = scmp.eq.s32.totalorder %s27, 3
      %p228 = por %p226, %p227
      %p230 = scmp.ne.s32.totalorder %s213, %s229
      %p231 = scmp.eq.s32.totalorder %s27, 0
      %p232 = por %p230, %p231
      %p233 = scmp.le.s32.totalorder 1, %s21
      %p234 = scmp.lt.s32.totalorder %s21, 5
      %p235 = pnand %p233, %p234
      %p236 = pneg %p235
      // Predicated region
      $region9: #{tpu_custom_call.1} parent=5 // pred_check
        _
      $region10: #{tpu_custom_call.1} parent=5 // pred_check_branch
        %238 = sbr.rel (%p235) target = $region12
      $region11: #{tpu_custom_call.1} parent=5 // pred_region
        %s239 = ssub.s32 %s21, 1
        // Predicated region
        $region13: #{tpu_custom_call.1} parent=11 // pred_check
          %p240 = pneg %p68
        $region14: #{tpu_custom_call.1} parent=11 // pred_check_branch
          %242 = sbr.rel (%p240) target = $region16
        $region15: #{tpu_custom_call.1} parent=11 // pred_region
          _
        $region16: #{tpu_custom_call.1} parent=11 // pred_fallthru
          _
        // Predicated region
        $region17: #{tpu_custom_call.1} parent=11 // pred_check
          %p243 = pneg %p89
        $region18: #{tpu_custom_call.1} parent=11 // pred_check_branch
          %245 = sbr.rel (%p243) target = $region20
        $region19: #{tpu_custom_call.1} parent=11 // pred_region
          _
        $region20: #{tpu_custom_call.1} parent=11 // pred_fallthru
          _
        // Predicated region
        $region21: #{tpu_custom_call.1} parent=11 // pred_check
          %p246 = pneg %p110
        $region22: #{tpu_custom_call.1} parent=11 // pred_check_branch
          %248 = sbr.rel (%p246) target = $region24
        $region23: #{tpu_custom_call.1} parent=11 // pred_region
          _
        $region24: #{tpu_custom_call.1} parent=11 // pred_fallthru
          _
        // Predicated region
        $region25: #{tpu_custom_call.1} parent=11 // pred_check
          %p249 = pneg %p131
        $region26: #{tpu_custom_call.1} parent=11 // pred_check_branch
          %251 = sbr.rel (%p249) target = $region28
        $region27: #{tpu_custom_call.1} parent=11 // pred_region
          _
        $region28: #{tpu_custom_call.1} parent=11 // pred_fallthru
          _
        // Predicated region
        $region29: #{tpu_custom_call.1} parent=11 // pred_check
          %p252 = pneg %p152
        $region30: #{tpu_custom_call.1} parent=11 // pred_check_branch
          %254 = sbr.rel (%p252) target = $region32
        $region31: #{tpu_custom_call.1} parent=11 // pred_region
          _
        $region32: #{tpu_custom_call.1} parent=11 // pred_fallthru
          _
        // Predicated region
        $region33: #{tpu_custom_call.1} parent=11 // pred_check
          %p255 = pneg %p173
        $region34: #{tpu_custom_call.1} parent=11 // pred_check_branch
          %257 = sbr.rel (%p255) target = $region36
        $region35: #{tpu_custom_call.1} parent=11 // pred_region
          _
        $region36: #{tpu_custom_call.1} parent=11 // pred_fallthru
          _
      $region12: #{tpu_custom_call.1} parent=5 // pred_fallthru
        _
      %p258 = scmp.lt.s32.totalorder %s21, 4
      // Predicated region
      $region37: #{tpu_custom_call.1} parent=5 // pred_check
        %p259 = pneg %p258
      $region38: #{tpu_custom_call.1} parent=5 // pred_check_branch
        %261 = sbr.rel (%p259) target = $region40
      $region39: #{tpu_custom_call.1} parent=5 // pred_region
        // Predicated region
        $region41: #{tpu_custom_call.1} parent=39 // pred_check
          %p262 = pneg %p41
        $region42: #{tpu_custom_call.1} parent=39 // pred_check_branch
          %264 = sbr.rel (%p262) target = $region44
        $region43: #{tpu_custom_call.1} parent=39 // pred_region
          %s265 = smul.u32 256, %s21
          %p266 = scmp.lt.s32.totalorder %s265, 1023
          %s267 = scalar_select %p266, %s265, 1023
          %s268 = smul.addr %s267, 4
          %s269 = scalar_lea.vmem %s0, %s268
          %s270 = smul.u32 256, %s21
        $region44: #{tpu_custom_call.1} parent=39 // pred_fallthru
          _
      $region40: #{tpu_custom_call.1} parent=5 // pred_fallthru
        _
      %p271 = scmp.le.s32.totalorder 1, %s21
      %p272 = scmp.lt.s32.totalorder %s21, 5
      %p273 = pnand %p271, %p272
      %p274 = pneg %p273
      // Predicated region
      $region45: #{tpu_custom_call.1} parent=5 // pred_check
        _
      $region46: #{tpu_custom_call.1} parent=5 // pred_check_branch
        %276 = sbr.rel (%p273) target = $region48
      $region47: #{tpu_custom_call.1} parent=5 // pred_region
        %s277 = ssub.s32 %s21, 1
        %s278 = smul.u32 256, %s26
        %p279 = scmp.lt.s32.totalorder %s278, 1023
        %s280 = scalar_select %p279, %s278, 1023
        %s281 = smul.addr %s280, 4
        %s282 = scalar_lea.vmem %s0, %s281
        %p283 = pneg %p47
        %p284 = pneg %p44
        %p285 = pneg %p68
        %p286 = pneg %p65
        %p287 = pneg %p89
        %p288 = pneg %p86
        %p289 = pneg %p110
        %p290 = pneg %p107
        %p291 = pneg %p131
        %p292 = pneg %p128
        %p293 = pneg %p152
        %p294 = pneg %p149
        %p295 = pneg %p173
        %p296 = pneg %p170
        %p297 = pneg %p199
        %p298 = pneg %p196
        %s299 = sand.u32 %s186, 1
        %s300 = scalar_lea.sflag [#allocation4], %s299
        %s301 = sand.u32 %s186, 1
        %s302 = smul.addr %s301, 8
        %s303 = scalar_lea.vmem [#allocation3], %s302
        %p304 = pneg %p225
        %p305 = pneg %p222
        %s306 = sand.u32 %s212, 1
        %s307 = scalar_lea.sflag [#allocation6], %s306
        %s308 = sand.u32 %s212, 1
        %s309 = smul.addr %s308, 8
        %s310 = scalar_lea.vmem [#allocation5], %s309
        %s311 = smul.u32 256, %s26
        %p312 = scmp.lt.s32.totalorder %s311, 1023
        %s313 = scalar_select %p312, %s311, 1023
        %s314 = smul.addr %s313, 4
        %s315 = scalar_lea.vmem %s0, %s314
        %s316 = smul.u32 256, %s26
        %v318 = vld [vmem:[%s1] sm:$0xf]
        %v319 = vld [vmem:[%s1 + $0x4] sm:$0xf]
        %v320 = vld [vmem:[%s1 + $0x8] sm:$0xf]
        %v321 = vld [vmem:[%s1 + $0xc] sm:$0xf]
        %v322 = vld [vmem:[%s2] sm:$0x1]
        %v323 = vld [vmem:[%s315] sm:$0xf]
        %v324 = vld [vmem:[%s315 + $0x4] sm:$0xf]
        %v325 = vld [vmem:[%s315 + $0x8] sm:$0xf]
        %v326 = vld [vmem:[%s315 + $0xc] sm:$0xf]
        %v327 = vld [vmem:[%s315 + $0x10] sm:$0xf]
        %v328 = vld [vmem:[%s315 + $0x14] sm:$0xf]
        %v329 = vld [vmem:[%s315 + $0x18] sm:$0xf]
        %v330 = vld [vmem:[%s315 + $0x1c] sm:$0xf]
        %v331 = vld [vmem:[%s315 + $0x20] sm:$0xf]
        %v332 = vld [vmem:[%s315 + $0x24] sm:$0xf]
        %v333 = vld [vmem:[%s315 + $0x28] sm:$0xf]
        %v334 = vld [vmem:[%s315 + $0x2c] sm:$0xf]
        %v335 = vld [vmem:[%s315 + $0x30] sm:$0xf]
        %v336 = vld [vmem:[%s315 + $0x34] sm:$0xf]
        %v337 = vld [vmem:[%s315 + $0x38] sm:$0xf]
        %v338 = vld [vmem:[%s315 + $0x3c] sm:$0xf]
        %v339 = vld [vmem:[%s315 + $0x40] sm:$0xf]
        %v340 = vld [vmem:[%s315 + $0x44] sm:$0xf]
        %v341 = vld [vmem:[%s315 + $0x48] sm:$0xf]
        %v342 = vld [vmem:[%s315 + $0x4c] sm:$0xf]
        %v343 = vld [vmem:[%s315 + $0x50] sm:$0xf]
        %v344 = vld [vmem:[%s315 + $0x54] sm:$0xf]
        %v345 = vld [vmem:[%s315 + $0x58] sm:$0xf]
        %v346 = vld [vmem:[%s315 + $0x5c] sm:$0xf]
        %v347 = vld [vmem:[%s315 + $0x60] sm:$0xf]
        %v348 = vld [vmem:[%s315 + $0x64] sm:$0xf]
        %v349 = vld [vmem:[%s315 + $0x68] sm:$0xf]
        %v350 = vld [vmem:[%s315 + $0x6c] sm:$0xf]
        %v351 = vld [vmem:[%s315 + $0x70] sm:$0xf]
        %v352 = vld [vmem:[%s315 + $0x74] sm:$0xf]
        %v353 = vld [vmem:[%s315 + $0x78] sm:$0xf]
        %v354 = vld [vmem:[%s315 + $0x7c] sm:$0xf]
        %v356 = vlaneseq
        %v357 = vshrl.u32 %v356, 7
        %v358 = vsub.s32 0, %v357
        %v359 = vrot.slane %v322, %v358
        %v393 = vunpack.c.l.b16 %v323
        %v394 = vunpack.c.l.b16 %v324
        %v395 = vunpack.c.l.b16 %v325
        %v396 = vunpack.c.l.b16 %v326
        %v397 = vunpack.c.l.b16 %v327
        %v398 = vunpack.c.l.b16 %v328
        %v399 = vunpack.c.l.b16 %v329
        %v400 = vunpack.c.l.b16 %v330
        %v401 = vunpack.c.l.b16 %v331
        %v402 = vunpack.c.l.b16 %v332
        %v403 = vunpack.c.l.b16 %v333
        %v404 = vunpack.c.l.b16 %v334
        %v405 = vunpack.c.l.b16 %v335
        %v406 = vunpack.c.l.b16 %v336
        %v407 = vunpack.c.l.b16 %v337
        %v408 = vunpack.c.l.b16 %v338
        %v409 = vunpack.c.l.b16 %v339
        %v410 = vunpack.c.l.b16 %v340
        %v411 = vunpack.c.l.b16 %v341
        %v412 = vunpack.c.l.b16 %v342
        %v413 = vunpack.c.l.b16 %v343
        %v414 = vunpack.c.l.b16 %v344
        %v415 = vunpack.c.l.b16 %v345
        %v416 = vunpack.c.l.b16 %v346
        %v417 = vunpack.c.l.b16 %v347
        %v418 = vunpack.c.l.b16 %v348
        %v419 = vunpack.c.l.b16 %v349
        %v420 = vunpack.c.l.b16 %v350
        %v421 = vunpack.c.l.b16 %v351
        %v422 = vunpack.c.l.b16 %v352
        %v423 = vunpack.c.l.b16 %v353
        %v424 = vunpack.c.l.b16 %v354
        %v425 = vpack.c.b16 %v394, %v393
        %v426 = vpack.c.b16 %v396, %v395
        %v427 = vpack.c.b16 %v398, %v397
        %v428 = vpack.c.b16 %v400, %v399
        %v429 = vpack.c.b16 %v402, %v401
        %v430 = vpack.c.b16 %v404, %v403
        %v431 = vpack.c.b16 %v406, %v405
        %v432 = vpack.c.b16 %v408, %v407
        %v433 = vpack.c.b16 %v410, %v409
        %v434 = vpack.c.b16 %v412, %v411
        %v435 = vpack.c.b16 %v414, %v413
        %v436 = vpack.c.b16 %v416, %v415
        %v437 = vpack.c.b16 %v418, %v417
        %v438 = vpack.c.b16 %v420, %v419
        %v439 = vpack.c.b16 %v422, %v421
        %v440 = vpack.c.b16 %v424, %v423
        %v445 = vunpack.c.l.b16 %v318
        %v446 = vunpack.c.l.b16 %v319
        %v447 = vunpack.c.l.b16 %v320
        %v448 = vunpack.c.l.b16 %v321
        %v449 = vpack.c.b16 %v446, %v445
        %v450 = vpack.c.b16 %v448, %v447
        %vm453 = vcmask 261120
        %v455 = vsel %vm453, %v425, 0
        %v458 = vsel %vm453, %v426, 0
        %v461 = vsel %vm453, %v427, 0
        %v464 = vsel %vm453, %v428, 0
        %v467 = vsel %vm453, %v429, 0
        %v470 = vsel %vm453, %v430, 0
        %v473 = vsel %vm453, %v431, 0
        %v476 = vsel %vm453, %v432, 0
        %v479 = vsel %vm453, %v433, 0
        %v482 = vsel %vm453, %v434, 0
        %v485 = vsel %vm453, %v435, 0
        %v488 = vsel %vm453, %v436, 0
        %v491 = vsel %vm453, %v437, 0
        %v494 = vsel %vm453, %v438, 0
        %v497 = vsel %vm453, %v439, 0
        %v500 = vsel %vm453, %v440, 0
        %502 = vmatprep.subr.bf16.mxu0 0
        %503 = vmatpush1.bf16.msra.mxu0 %v449
        %504 = vmatprep.subr.bf16.mxu0 0
        %505 = vmatpush1.bf16.msra.mxu0 %v450
        %506 = vmatprep.subr.bf16.mxu0 0
        %507 = vmatpush1.bf16.msra.mxu0 0
        %508 = vmatprep.subr.bf16.mxu0 0
        %509 = vmatpush1.bf16.msra.mxu0 0
        %510 = vmatprep.subr.bf16.mxu0 0
        %511 = vmatpush1.bf16.msra.mxu0 0
        %512 = vmatprep.subr.bf16.mxu0 0
        %513 = vmatpush1.bf16.msra.mxu0 0
        %514 = vmatprep.subr.bf16.mxu0 0
        %515 = vmatpush1.bf16.msra.mxu0 0
        %516 = vmatprep.subr.bf16.mxu0 0
        %517 = vmatpush1.bf16.msra.mxu0 0
        %518 = vmatprep.subr.bf16.mxu0 0
        %519 = vmatpush1.bf16.msra.mxu0 0
        %520 = vmatprep.subr.bf16.mxu0 0
        %521 = vmatpush1.bf16.msra.mxu0 0
        %522 = vmatprep.subr.bf16.mxu0 0
        %523 = vmatpush1.bf16.msra.mxu0 0
        %524 = vmatprep.subr.bf16.mxu0 0
        %525 = vmatpush1.bf16.msra.mxu0 0
        %526 = vmatprep.subr.bf16.mxu0 0
        %527 = vmatpush1.bf16.msra.mxu0 0
        %528 = vmatprep.subr.bf16.mxu0 0
        %529 = vmatpush1.bf16.msra.mxu0 0
        %530 = vmatprep.subr.bf16.mxu0 0
        %531 = vmatpush1.bf16.msra.mxu0 0
        %532 = vmatprep.subr.bf16.mxu0 0
        %533 = vmatpush1.bf16.msra.mxu0 0
        %534 = vmatprep.mubr.bf16.mxu0 0
        %535 = vmatmul.mubr.bf16.gmra.mrb[0].mxu0 %v455
        %v536 = vpop.f32.mrb[0].mxu0
        %v537 = vadd.f32 %v359, %v536
        %v538 = vpop.f32.mrb[0].mxu0
        %v539 = vpop.f32.mrb[0].mxu0
        %v540 = vadd.f32 %v359, %v539
        %v541 = vpop.f32.mrb[0].mxu0
        %542 = vmatprep.mubr.bf16.mxu0 0
        %543 = vmatmul.mubr.bf16.gmra.mrb[0].mxu0 %v458
        %v544 = vpop.f32.mrb[0].mxu0
        %v545 = vadd.f32 %v359, %v544
        %v546 = vpop.f32.mrb[0].mxu0
        %v547 = vpop.f32.mrb[0].mxu0
        %v548 = vadd.f32 %v359, %v547
        %v549 = vpop.f32.mrb[0].mxu0
        %550 = vmatprep.mubr.bf16.mxu0 0
        %551 = vmatmul.mubr.bf16.gmra.mrb[0].mxu0 %v461
        %v552 = vpop.f32.mrb[0].mxu0
        %v553 = vadd.f32 %v359, %v552
        %v554 = vpop.f32.mrb[0].mxu0
        %v555 = vpop.f32.mrb[0].mxu0
        %v556 = vadd.f32 %v359, %v555
        %v557 = vpop.f32.mrb[0].mxu0
        %558 = vmatprep.mubr.bf16.mxu0 0
        %559 = vmatmul.mubr.bf16.gmra.mrb[0].mxu0 %v464
        %v560 = vpop.f32.mrb[0].mxu0
        %v561 = vadd.f32 %v359, %v560
        %v562 = vpop.f32.mrb[0].mxu0
        %v563 = vpop.f32.mrb[0].mxu0
        %v564 = vadd.f32 %v359, %v563
        %v565 = vpop.f32.mrb[0].mxu0
        %566 = vmatprep.mubr.bf16.mxu0 0
        %567 = vmatmul.mubr.bf16.gmra.mrb[0].mxu0 %v467
        %v568 = vpop.f32.mrb[0].mxu0
        %v569 = vadd.f32 %v359, %v568
        %v570 = vpop.f32.mrb[0].mxu0
        %v571 = vpop.f32.mrb[0].mxu0
        %v572 = vadd.f32 %v359, %v571
        %v573 = vpop.f32.mrb[0].mxu0
        %574 = vmatprep.mubr.bf16.mxu0 0
        %575 = vmatmul.mubr.bf16.gmra.mrb[0].mxu0 %v470
        %v576 = vpop.f32.mrb[0].mxu0
        %v577 = vadd.f32 %v359, %v576
        %v578 = vpop.f32.mrb[0].mxu0
        %v579 = vpop.f32.mrb[0].mxu0
        %v580 = vadd.f32 %v359, %v579
        %v581 = vpop.f32.mrb[0].mxu0
        %582 = vmatprep.mubr.bf16.mxu0 0
        %583 = vmatmul.mubr.bf16.gmra.mrb[0].mxu0 %v473
        %v584 = vpop.f32.mrb[0].mxu0
        %v585 = vadd.f32 %v359, %v584
        %v586 = vpop.f32.mrb[0].mxu0
        %v587 = vpop.f32.mrb[0].mxu0
        %v588 = vadd.f32 %v359, %v587
        %v589 = vpop.f32.mrb[0].mxu0
        %590 = vmatprep.mubr.bf16.mxu0 0
        %591 = vmatmul.mubr.bf16.gmra.mrb[0].mxu0 %v476
        %v592 = vpop.f32.mrb[0].mxu0
        %v593 = vadd.f32 %v359, %v592
        %v594 = vpop.f32.mrb[0].mxu0
        %v595 = vpop.f32.mrb[0].mxu0
        %v596 = vadd.f32 %v359, %v595
        %v597 = vpop.f32.mrb[0].mxu0
        %598 = vmatprep.mubr.bf16.mxu0 0
        %599 = vmatmul.mubr.bf16.gmra.mrb[0].mxu0 %v479
        %v600 = vpop.f32.mrb[0].mxu0
        %v601 = vadd.f32 %v359, %v600
        %v602 = vpop.f32.mrb[0].mxu0
        %v603 = vpop.f32.mrb[0].mxu0
        %v604 = vadd.f32 %v359, %v603
        %v605 = vpop.f32.mrb[0].mxu0
        %606 = vmatprep.mubr.bf16.mxu0 0
        %607 = vmatmul.mubr.bf16.gmra.mrb[0].mxu0 %v482
        %v608 = vpop.f32.mrb[0].mxu0
        %v609 = vadd.f32 %v359, %v608
        %v610 = vpop.f32.mrb[0].mxu0
        %v611 = vpop.f32.mrb[0].mxu0
        %v612 = vadd.f32 %v359, %v611
        %v613 = vpop.f32.mrb[0].mxu0
        %614 = vmatprep.mubr.bf16.mxu0 0
        %615 = vmatmul.mubr.bf16.gmra.mrb[0].mxu0 %v485
        %v616 = vpop.f32.mrb[0].mxu0
        %v617 = vadd.f32 %v359, %v616
        %v618 = vpop.f32.mrb[0].mxu0
        %v619 = vpop.f32.mrb[0].mxu0
        %v620 = vadd.f32 %v359, %v619
        %v621 = vpop.f32.mrb[0].mxu0
        %622 = vmatprep.mubr.bf16.mxu0 0
        %623 = vmatmul.mubr.bf16.gmra.mrb[0].mxu0 %v488
        %v624 = vpop.f32.mrb[0].mxu0
        %v625 = vadd.f32 %v359, %v624
        %v626 = vpop.f32.mrb[0].mxu0
        %v627 = vpop.f32.mrb[0].mxu0
        %v628 = vadd.f32 %v359, %v627
        %v629 = vpop.f32.mrb[0].mxu0
        %630 = vmatprep.mubr.bf16.mxu0 0
        %631 = vmatmul.mubr.bf16.gmra.mrb[0].mxu0 %v491
        %v632 = vpop.f32.mrb[0].mxu0
        %v633 = vadd.f32 %v359, %v632
        %v634 = vpop.f32.mrb[0].mxu0
        %v635 = vpop.f32.mrb[0].mxu0
        %v636 = vadd.f32 %v359, %v635
        %v637 = vpop.f32.mrb[0].mxu0
        %638 = vmatprep.mubr.bf16.mxu0 0
        %639 = vmatmul.mubr.bf16.gmra.mrb[0].mxu0 %v494
        %v640 = vpop.f32.mrb[0].mxu0
        %v641 = vadd.f32 %v359, %v640
        %v642 = vpop.f32.mrb[0].mxu0
        %v643 = vpop.f32.mrb[0].mxu0
        %v644 = vadd.f32 %v359, %v643
        %v645 = vpop.f32.mrb[0].mxu0
        %646 = vmatprep.mubr.bf16.mxu0 0
        %647 = vmatmul.mubr.bf16.gmra.mrb[0].mxu0 %v497
        %v648 = vpop.f32.mrb[0].mxu0
        %v649 = vadd.f32 %v359, %v648
        %v650 = vpop.f32.mrb[0].mxu0
        %v651 = vpop.f32.mrb[0].mxu0
        %v652 = vadd.f32 %v359, %v651
        %v653 = vpop.f32.mrb[0].mxu0
        %654 = vmatprep.mubr.bf16.mxu0 0
        %655 = vmatmul.mubr.bf16.gmra.mrb[0].mxu0 %v500
        %v656 = vpop.f32.mrb[0].mxu0
        %v657 = vadd.f32 %v359, %v656
        %v658 = vpop.f32.mrb[0].mxu0
        %v659 = vpop.f32.mrb[0].mxu0
        %v660 = vadd.f32 %v359, %v659
        %v661 = vpop.f32.mrb[0].mxu0
        %662 = vdwg.mxu0
        %v663 = vmax.f32 %v537, 0.0
        %v664 = vmax.f32 %v540, 0.0
        %v665 = vmax.f32 %v545, 0.0
        %v666 = vmax.f32 %v548, 0.0
        %v667 = vmax.f32 %v553, 0.0
        %v668 = vmax.f32 %v556, 0.0
        %v669 = vmax.f32 %v561, 0.0
        %v670 = vmax.f32 %v564, 0.0
        %v671 = vmax.f32 %v569, 0.0
        %v672 = vmax.f32 %v572, 0.0
        %v673 = vmax.f32 %v577, 0.0
        %v674 = vmax.f32 %v580, 0.0
        %v675 = vmax.f32 %v585, 0.0
        %v676 = vmax.f32 %v588, 0.0
        %v677 = vmax.f32 %v593, 0.0
        %v678 = vmax.f32 %v596, 0.0
        %v679 = vmax.f32 %v601, 0.0
        %v680 = vmax.f32 %v604, 0.0
        %v681 = vmax.f32 %v609, 0.0
        %v682 = vmax.f32 %v612, 0.0
        %v683 = vmax.f32 %v617, 0.0
        %v684 = vmax.f32 %v620, 0.0
        %v685 = vmax.f32 %v625, 0.0
        %v686 = vmax.f32 %v628, 0.0
        %v687 = vmax.f32 %v633, 0.0
        %v688 = vmax.f32 %v636, 0.0
        %v689 = vmax.f32 %v641, 0.0
        %v690 = vmax.f32 %v644, 0.0
        %v691 = vmax.f32 %v649, 0.0
        %v692 = vmax.f32 %v652, 0.0
        %v693 = vmax.f32 %v657, 0.0
        %v694 = vmax.f32 %v660, 0.0
        %v695 = vadd.f32 %v663, %v664
        %v696 = vadd.f32 %v695, %v665
        %v697 = vadd.f32 %v696, %v666
        %v698 = vadd.f32 %v697, %v667
        %v699 = vadd.f32 %v698, %v668
        %v700 = vadd.f32 %v699, %v669
        %v701 = vadd.f32 %v700, %v670
        %v702 = vadd.f32 %v701, %v671
        %v703 = vadd.f32 %v702, %v672
        %v704 = vadd.f32 %v703, %v673
        %v705 = vadd.f32 %v704, %v674
        %v706 = vadd.f32 %v705, %v675
        %v707 = vadd.f32 %v706, %v676
        %v708 = vadd.f32 %v707, %v677
        %v709 = vadd.f32 %v708, %v678
        %v710 = vadd.f32 %v709, %v679
        %v711 = vadd.f32 %v710, %v680
        %v712 = vadd.f32 %v711, %v681
        %v713 = vadd.f32 %v712, %v682
        %v714 = vadd.f32 %v713, %v683
        %v715 = vadd.f32 %v714, %v684
        %v716 = vadd.f32 %v715, %v685
        %v717 = vadd.f32 %v716, %v686
        %v718 = vadd.f32 %v717, %v687
        %v719 = vadd.f32 %v718, %v688
        %v720 = vadd.f32 %v719, %v689
        %v721 = vadd.f32 %v720, %v690
        %v722 = vadd.f32 %v721, %v691
        %v723 = vadd.f32 %v722, %v692
        %v724 = vadd.f32 %v723, %v693
        %v725 = vadd.f32 %v724, %v694
        %v726 = vrot.slane %v725, 4
        %v727 = vadd.f32 %v725, %v726
        %v728 = vrot.slane %v727, 2
        %v729 = vadd.f32 %v727, %v728
        %v730 = vrot.slane %v729, 1
        %v731 = vadd.f32 %v729, %v730
        %732 = vst [vmem:[#allocation2] sm:$0x1] %v731
        %v733 = vld [vmem:[%s315 + $0x80] sm:$0xf]
        %v734 = vld [vmem:[%s315 + $0x84] sm:$0xf]
        %v735 = vld [vmem:[%s315 + $0x88] sm:$0xf]
        %v736 = vld [vmem:[%s315 + $0x8c] sm:$0xf]
        %v737 = vld [vmem:[%s315 + $0x90] sm:$0xf]
        %v738 = vld [vmem:[%s315 + $0x94] sm:$0xf]
        %v739 = vld [vmem:[%s315 + $0x98] sm:$0xf]
        %v740 = vld [vmem:[%s315 + $0x9c] sm:$0xf]
        %v741 = vld [vmem:[%s315 + $0xa0] sm:$0xf]
        %v742 = vld [vmem:[%s315 + $0xa4] sm:$0xf]
        %v743 = vld [vmem:[%s315 + $0xa8] sm:$0xf]
        %v744 = vld [vmem:[%s315 + $0xac] sm:$0xf]
        %v745 = vld [vmem:[%s315 + $0xb0] sm:$0xf]
        %v746 = vld [vmem:[%s315 + $0xb4] sm:$0xf]
        %v747 = vld [vmem:[%s315 + $0xb8] sm:$0xf]
        %v748 = vld [vmem:[%s315 + $0xbc] sm:$0xf]
        %v749 = vld [vmem:[%s315 + $0xc0] sm:$0xf]
        %v750 = vld [vmem:[%s315 + $0xc4] sm:$0xf]
        %v751 = vld [vmem:[%s315 + $0xc8] sm:$0xf]
        %v752 = vld [vmem:[%s315 + $0xcc] sm:$0xf]
        %v753 = vld [vmem:[%s315 + $0xd0] sm:$0xf]
        %v754 = vld [vmem:[%s315 + $0xd4] sm:$0xf]
        %v755 = vld [vmem:[%s315 + $0xd8] sm:$0xf]
        %v756 = vld [vmem:[%s315 + $0xdc] sm:$0xf]
        %v757 = vld [vmem:[%s315 + $0xe0] sm:$0xf]
        %v758 = vld [vmem:[%s315 + $0xe4] sm:$0xf]
        %v759 = vld [vmem:[%s315 + $0xe8] sm:$0xf]
        %v760 = vld [vmem:[%s315 + $0xec] sm:$0xf]
        %v761 = vld [vmem:[%s315 + $0xf0] sm:$0xf]
        %v762 = vld [vmem:[%s315 + $0xf4] sm:$0xf]
        %v763 = vld [vmem:[%s315 + $0xf8] sm:$0xf]
        %v764 = vld [vmem:[%s315 + $0xfc] sm:$0xf]
        %v797 = vunpack.c.l.b16 %v733
        %v798 = vunpack.c.l.b16 %v734
        %v799 = vunpack.c.l.b16 %v735
        %v800 = vunpack.c.l.b16 %v736
        %v801 = vunpack.c.l.b16 %v737
        %v802 = vunpack.c.l.b16 %v738
        %v803 = vunpack.c.l.b16 %v739
        %v804 = vunpack.c.l.b16 %v740
        %v805 = vunpack.c.l.b16 %v741
        %v806 = vunpack.c.l.b16 %v742
        %v807 = vunpack.c.l.b16 %v743
        %v808 = vunpack.c.l.b16 %v744
        %v809 = vunpack.c.l.b16 %v745
        %v810 = vunpack.c.l.b16 %v746
        %v811 = vunpack.c.l.b16 %v747
        %v812 = vunpack.c.l.b16 %v748
        %v813 = vunpack.c.l.b16 %v749
        %v814 = vunpack.c.l.b16 %v750
        %v815 = vunpack.c.l.b16 %v751
        %v816 = vunpack.c.l.b16 %v752
        %v817 = vunpack.c.l.b16 %v753
        %v818 = vunpack.c.l.b16 %v754
        %v819 = vunpack.c.l.b16 %v755
        %v820 = vunpack.c.l.b16 %v756
        %v821 = vunpack.c.l.b16 %v757
        %v822 = vunpack.c.l.b16 %v758
        %v823 = vunpack.c.l.b16 %v759
        %v824 = vunpack.c.l.b16 %v760
        %v825 = vunpack.c.l.b16 %v761
        %v826 = vunpack.c.l.b16 %v762
        %v827 = vunpack.c.l.b16 %v763
        %v828 = vunpack.c.l.b16 %v764
        %v829 = vpack.c.b16 %v798, %v797
        %v830 = vpack.c.b16 %v800, %v799
        %v831 = vpack.c.b16 %v802, %v801
        %v832 = vpack.c.b16 %v804, %v803
        %v833 = vpack.c.b16 %v806, %v805
        %v834 = vpack.c.b16 %v808, %v807
        %v835 = vpack.c.b16 %v810, %v809
        %v836 = vpack.c.b16 %v812, %v811
        %v837 = vpack.c.b16 %v814, %v813
        %v838 = vpack.c.b16 %v816, %v815
        %v839 = vpack.c.b16 %v818, %v817
        %v840 = vpack.c.b16 %v820, %v819
        %v841 = vpack.c.b16 %v822, %v821
        %v842 = vpack.c.b16 %v824, %v823
        %v843 = vpack.c.b16 %v826, %v825
        %v844 = vpack.c.b16 %v828, %v827
        %v846 = vsel %vm453, %v829, 0
        %v849 = vsel %vm453, %v830, 0
        %v852 = vsel %vm453, %v831, 0
        %v855 = vsel %vm453, %v832, 0
        %v858 = vsel %vm453, %v833, 0
        %v861 = vsel %vm453, %v834, 0
        %v864 = vsel %vm453, %v835, 0
        %v867 = vsel %vm453, %v836, 0
        %v870 = vsel %vm453, %v837, 0
        %v873 = vsel %vm453, %v838, 0
        %v876 = vsel %vm453, %v839, 0
        %v879 = vsel %vm453, %v840, 0
        %v882 = vsel %vm453, %v841, 0
        %v885 = vsel %vm453, %v842, 0
        %v888 = vsel %vm453, %v843, 0
        %v891 = vsel %vm453, %v844, 0
        %893 = vmatprep.subr.bf16.mxu0 0
        %894 = vmatpush1.bf16.msra.mxu0 %v449
        %895 = vmatprep.subr.bf16.mxu0 0
        %896 = vmatpush1.bf16.msra.mxu0 %v450
        %897 = vmatprep.subr.bf16.mxu0 0
        %898 = vmatpush1.bf16.msra.mxu0 0
        %899 = vmatprep.subr.bf16.mxu0 0
        %900 = vmatpush1.bf16.msra.mxu0 0
        %901 = vmatprep.subr.bf16.mxu0 0
        %902 = vmatpush1.bf16.msra.mxu0 0
        %903 = vmatprep.subr.bf16.mxu0 0
        %904 = vmatpush1.bf16.msra.mxu0 0
        %905 = vmatprep.subr.bf16.mxu0 0
        %906 = vmatpush1.bf16.msra.mxu0 0
        %907 = vmatprep.subr.bf16.mxu0 0
        %908 = vmatpush1.bf16.msra.mxu0 0
        %909 = vmatprep.subr.bf16.mxu0 0
        %910 = vmatpush1.bf16.msra.mxu0 0
        %911 = vmatprep.subr.bf16.mxu0 0
        %912 = vmatpush1.bf16.msra.mxu0 0
        %913 = vmatprep.subr.bf16.mxu0 0
        %914 = vmatpush1.bf16.msra.mxu0 0
        %915 = vmatprep.subr.bf16.mxu0 0
        %916 = vmatpush1.bf16.msra.mxu0 0
        %917 = vmatprep.subr.bf16.mxu0 0
        %918 = vmatpush1.bf16.msra.mxu0 0
        %919 = vmatprep.subr.bf16.mxu0 0
        %920 = vmatpush1.bf16.msra.mxu0 0
        %921 = vmatprep.subr.bf16.mxu0 0
        %922 = vmatpush1.bf16.msra.mxu0 0
        %923 = vmatprep.subr.bf16.mxu0 0
        %924 = vmatpush1.bf16.msra.mxu0 0
        %925 = vmatprep.mubr.bf16.mxu0 0
        %926 = vmatmul.mubr.bf16.gmra.mrb[0].mxu0 %v846
        %v927 = vpop.f32.mrb[0].mxu0
        %v928 = vadd.f32 %v359, %v927
        %v929 = vpop.f32.mrb[0].mxu0
        %v930 = vpop.f32.mrb[0].mxu0
        %v931 = vadd.f32 %v359, %v930
        %v932 = vpop.f32.mrb[0].mxu0
        %933 = vmatprep.mubr.bf16.mxu0 0
        %934 = vmatmul.mubr.bf16.gmra.mrb[0].mxu0 %v849
        %v935 = vpop.f32.mrb[0].mxu0
        %v936 = vadd.f32 %v359, %v935
        %v937 = vpop.f32.mrb[0].mxu0
        %v938 = vpop.f32.mrb[0].mxu0
        %v939 = vadd.f32 %v359, %v938
        %v940 = vpop.f32.mrb[0].mxu0
        %941 = vmatprep.mubr.bf16.mxu0 0
        %942 = vmatmul.mubr.bf16.gmra.mrb[0].mxu0 %v852
        %v943 = vpop.f32.mrb[0].mxu0
        %v944 = vadd.f32 %v359, %v943
        %v945 = vpop.f32.mrb[0].mxu0
        %v946 = vpop.f32.mrb[0].mxu0
        %v947 = vadd.f32 %v359, %v946
        %v948 = vpop.f32.mrb[0].mxu0
        %949 = vmatprep.mubr.bf16.mxu0 0
        %950 = vmatmul.mubr.bf16.gmra.mrb[0].mxu0 %v855
        %v951 = vpop.f32.mrb[0].mxu0
        %v952 = vadd.f32 %v359, %v951
        %v953 = vpop.f32.mrb[0].mxu0
        %v954 = vpop.f32.mrb[0].mxu0
        %v955 = vadd.f32 %v359, %v954
        %v956 = vpop.f32.mrb[0].mxu0
        %957 = vmatprep.mubr.bf16.mxu0 0
        %958 = vmatmul.mubr.bf16.gmra.mrb[0].mxu0 %v858
        %v959 = vpop.f32.mrb[0].mxu0
        %v960 = vadd.f32 %v359, %v959
        %v961 = vpop.f32.mrb[0].mxu0
        %v962 = vpop.f32.mrb[0].mxu0
        %v963 = vadd.f32 %v359, %v962
        %v964 = vpop.f32.mrb[0].mxu0
        %965 = vmatprep.mubr.bf16.mxu0 0
        %966 = vmatmul.mubr.bf16.gmra.mrb[0].mxu0 %v861
        %v967 = vpop.f32.mrb[0].mxu0
        %v968 = vadd.f32 %v359, %v967
        %v969 = vpop.f32.mrb[0].mxu0
        %v970 = vpop.f32.mrb[0].mxu0
        %v971 = vadd.f32 %v359, %v970
        %v972 = vpop.f32.mrb[0].mxu0
        %973 = vmatprep.mubr.bf16.mxu0 0
        %974 = vmatmul.mubr.bf16.gmra.mrb[0].mxu0 %v864
        %v975 = vpop.f32.mrb[0].mxu0
        %v976 = vadd.f32 %v359, %v975
        %v977 = vpop.f32.mrb[0].mxu0
        %v978 = vpop.f32.mrb[0].mxu0
        %v979 = vadd.f32 %v359, %v978
        %v980 = vpop.f32.mrb[0].mxu0
        %981 = vmatprep.mubr.bf16.mxu0 0
        %982 = vmatmul.mubr.bf16.gmra.mrb[0].mxu0 %v867
        %v983 = vpop.f32.mrb[0].mxu0
        %v984 = vadd.f32 %v359, %v983
        %v985 = vpop.f32.mrb[0].mxu0
        %v986 = vpop.f32.mrb[0].mxu0
        %v987 = vadd.f32 %v359, %v986
        %v988 = vpop.f32.mrb[0].mxu0
        %989 = vmatprep.mubr.bf16.mxu0 0
        %990 = vmatmul.mubr.bf16.gmra.mrb[0].mxu0 %v870
        %v991 = vpop.f32.mrb[0].mxu0
        %v992 = vadd.f32 %v359, %v991
        %v993 = vpop.f32.mrb[0].mxu0
        %v994 = vpop.f32.mrb[0].mxu0
        %v995 = vadd.f32 %v359, %v994
        %v996 = vpop.f32.mrb[0].mxu0
        %997 = vmatprep.mubr.bf16.mxu0 0
        %998 = vmatmul.mubr.bf16.gmra.mrb[0].mxu0 %v873
        %v999 = vpop.f32.mrb[0].mxu0
        %v1000 = vadd.f32 %v359, %v999
        %v1001 = vpop.f32.mrb[0].mxu0
        %v1002 = vpop.f32.mrb[0].mxu0
        %v1003 = vadd.f32 %v359, %v1002
        %v1004 = vpop.f32.mrb[0].mxu0
        %1005 = vmatprep.mubr.bf16.mxu0 0
        %1006 = vmatmul.mubr.bf16.gmra.mrb[0].mxu0 %v876
        %v1007 = vpop.f32.mrb[0].mxu0
        %v1008 = vadd.f32 %v359, %v1007
        %v1009 = vpop.f32.mrb[0].mxu0
        %v1010 = vpop.f32.mrb[0].mxu0
        %v1011 = vadd.f32 %v359, %v1010
        %v1012 = vpop.f32.mrb[0].mxu0
        %1013 = vmatprep.mubr.bf16.mxu0 0
        %1014 = vmatmul.mubr.bf16.gmra.mrb[0].mxu0 %v879
        %v1015 = vpop.f32.mrb[0].mxu0
        %v1016 = vadd.f32 %v359, %v1015
        %v1017 = vpop.f32.mrb[0].mxu0
        %v1018 = vpop.f32.mrb[0].mxu0
        %v1019 = vadd.f32 %v359, %v1018
        %v1020 = vpop.f32.mrb[0].mxu0
        %1021 = vmatprep.mubr.bf16.mxu0 0
        %1022 = vmatmul.mubr.bf16.gmra.mrb[0].mxu0 %v882
        %v1023 = vpop.f32.mrb[0].mxu0
        %v1024 = vadd.f32 %v359, %v1023
        %v1025 = vpop.f32.mrb[0].mxu0
        %v1026 = vpop.f32.mrb[0].mxu0
        %v1027 = vadd.f32 %v359, %v1026
        %v1028 = vpop.f32.mrb[0].mxu0
        %1029 = vmatprep.mubr.bf16.mxu0 0
        %1030 = vmatmul.mubr.bf16.gmra.mrb[0].mxu0 %v885
        %v1031 = vpop.f32.mrb[0].mxu0
        %v1032 = vadd.f32 %v359, %v1031
        %v1033 = vpop.f32.mrb[0].mxu0
        %v1034 = vpop.f32.mrb[0].mxu0
        %v1035 = vadd.f32 %v359, %v1034
        %v1036 = vpop.f32.mrb[0].mxu0
        %1037 = vmatprep.mubr.bf16.mxu0 0
        %1038 = vmatmul.mubr.bf16.gmra.mrb[0].mxu0 %v888
        %v1039 = vpop.f32.mrb[0].mxu0
        %v1040 = vadd.f32 %v359, %v1039
        %v1041 = vpop.f32.mrb[0].mxu0
        %v1042 = vpop.f32.mrb[0].mxu0
        %v1043 = vadd.f32 %v359, %v1042
        %v1044 = vpop.f32.mrb[0].mxu0
        %1045 = vmatprep.mubr.bf16.mxu0 0
        %1046 = vmatmul.mubr.bf16.gmra.mrb[0].mxu0 %v891
        %v1047 = vpop.f32.mrb[0].mxu0
        %v1048 = vadd.f32 %v359, %v1047
        %v1049 = vpop.f32.mrb[0].mxu0
        %v1050 = vpop.f32.mrb[0].mxu0
        %v1051 = vadd.f32 %v359, %v1050
        %v1052 = vpop.f32.mrb[0].mxu0
        %1053 = vdwg.mxu0
        %v1054 = vmax.f32 %v928, 0.0
        %v1055 = vmax.f32 %v931, 0.0
        %v1056 = vmax.f32 %v936, 0.0
        %v1057 = vmax.f32 %v939, 0.0
        %v1058 = vmax.f32 %v944, 0.0
        %v1059 = vmax.f32 %v947, 0.0
        %v1060 = vmax.f32 %v952, 0.0
        %v1061 = vmax.f32 %v955, 0.0
        %v1062 = vmax.f32 %v960, 0.0
        %v1063 = vmax.f32 %v963, 0.0
        %v1064 = vmax.f32 %v968, 0.0
        %v1065 = vmax.f32 %v971, 0.0
        %v1066 = vmax.f32 %v976, 0.0
        %v1067 = vmax.f32 %v979, 0.0
        %v1068 = vmax.f32 %v984, 0.0
        %v1069 = vmax.f32 %v987, 0.0
        %v1070 = vmax.f32 %v992, 0.0
        %v1071 = vmax.f32 %v995, 0.0
        %v1072 = vmax.f32 %v1000, 0.0
        %v1073 = vmax.f32 %v1003, 0.0
        %v1074 = vmax.f32 %v1008, 0.0
        %v1075 = vmax.f32 %v1011, 0.0
        %v1076 = vmax.f32 %v1016, 0.0
        %v1077 = vmax.f32 %v1019, 0.0
        %v1078 = vmax.f32 %v1024, 0.0
        %v1079 = vmax.f32 %v1027, 0.0
        %v1080 = vmax.f32 %v1032, 0.0
        %v1081 = vmax.f32 %v1035, 0.0
        %v1082 = vmax.f32 %v1040, 0.0
        %v1083 = vmax.f32 %v1043, 0.0
        %v1084 = vmax.f32 %v1048, 0.0
        %v1085 = vmax.f32 %v1051, 0.0
        %v1086 = vadd.f32 %v1054, %v1055
        %v1087 = vadd.f32 %v1086, %v1056
        %v1088 = vadd.f32 %v1087, %v1057
        %v1089 = vadd.f32 %v1088, %v1058
        %v1090 = vadd.f32 %v1089, %v1059
        %v1091 = vadd.f32 %v1090, %v1060
        %v1092 = vadd.f32 %v1091, %v1061
        %v1093 = vadd.f32 %v1092, %v1062
        %v1094 = vadd.f32 %v1093, %v1063
        %v1095 = vadd.f32 %v1094, %v1064
        %v1096 = vadd.f32 %v1095, %v1065
        %v1097 = vadd.f32 %v1096, %v1066
        %v1098 = vadd.f32 %v1097, %v1067
        %v1099 = vadd.f32 %v1098, %v1068
        %v1100 = vadd.f32 %v1099, %v1069
        %v1101 = vadd.f32 %v1100, %v1070
        %v1102 = vadd.f32 %v1101, %v1071
        %v1103 = vadd.f32 %v1102, %v1072
        %v1104 = vadd.f32 %v1103, %v1073
        %v1105 = vadd.f32 %v1104, %v1074
        %v1106 = vadd.f32 %v1105, %v1075
        %v1107 = vadd.f32 %v1106, %v1076
        %v1108 = vadd.f32 %v1107, %v1077
        %v1109 = vadd.f32 %v1108, %v1078
        %v1110 = vadd.f32 %v1109, %v1079
        %v1111 = vadd.f32 %v1110, %v1080
        %v1112 = vadd.f32 %v1111, %v1081
        %v1113 = vadd.f32 %v1112, %v1082
        %v1114 = vadd.f32 %v1113, %v1083
        %v1115 = vadd.f32 %v1114, %v1084
        %v1116 = vadd.f32 %v1115, %v1085
        %v1117 = vrot.slane %v1116, 4
        %v1118 = vadd.f32 %v1116, %v1117
        %v1119 = vrot.slane %v1118, 2
        %v1120 = vadd.f32 %v1118, %v1119
        %v1121 = vrot.slane %v1120, 1
        %v1122 = vadd.f32 %v1120, %v1121
        %1123 = vst [vmem:[#allocation2 + $0x1] sm:$0x1] %v1122
        %v1124 = vld [vmem:[%s315 + $0x100] sm:$0xf]
        %v1125 = vld [vmem:[%s315 + $0x104] sm:$0xf]
        %v1126 = vld [vmem:[%s315 + $0x108] sm:$0xf]
        %v1127 = vld [vmem:[%s315 + $0x10c] sm:$0xf]
        %v1128 = vld [vmem:[%s315 + $0x110] sm:$0xf]
        %v1129 = vld [vmem:[%s315 + $0x114] sm:$0xf]
        %v1130 = vld [vmem:[%s315 + $0x118] sm:$0xf]
        %v1131 = vld [vmem:[%s315 + $0x11c] sm:$0xf]
        %v1132 = vld [vmem:[%s315 + $0x120] sm:$0xf]
        %v1133 = vld [vmem:[%s315 + $0x124] sm:$0xf]
        %v1134 = vld [vmem:[%s315 + $0x128] sm:$0xf]
        %v1135 = vld [vmem:[%s315 + $0x12c] sm:$0xf]
        %v1136 = vld [vmem:[%s315 + $0x130] sm:$0xf]
        %v1137 = vld [vmem:[%s315 + $0x134] sm:$0xf]
        %v1138 = vld [vmem:[%s315 + $0x138] sm:$0xf]
        %v1139 = vld [vmem:[%s315 + $0x13c] sm:$0xf]
        %v1140 = vld [vmem:[%s315 + $0x140] sm:$0xf]
        %v1141 = vld [vmem:[%s315 + $0x144] sm:$0xf]
        %v1142 = vld [vmem:[%s315 + $0x148] sm:$0xf]
        %v1143 = vld [vmem:[%s315 + $0x14c] sm:$0xf]
        %v1144 = vld [vmem:[%s315 + $0x150] sm:$0xf]
        %v1145 = vld [vmem:[%s315 + $0x154] sm:$0xf]
        %v1146 = vld [vmem:[%s315 + $0x158] sm:$0xf]
        %v1147 = vld [vmem:[%s315 + $0x15c] sm:$0xf]
        %v1148 = vld [vmem:[%s315 + $0x160] sm:$0xf]
        %v1149 = vld [vmem:[%s315 + $0x164] sm:$0xf]
        %v1150 = vld [vmem:[%s315 + $0x168] sm:$0xf]
        %v1151 = vld [vmem:[%s315 + $0x16c] sm:$0xf]
        %v1152 = vld [vmem:[%s315 + $0x170] sm:$0xf]
        %v1153 = vld [vmem:[%s315 + $0x174] sm:$0xf]
        %v1154 = vld [vmem:[%s315 + $0x178] sm:$0xf]
        %v1155 = vld [vmem:[%s315 + $0x17c] sm:$0xf]
        %v1188 = vunpack.c.l.b16 %v1124
        %v1189 = vunpack.c.l.b16 %v1125
        %v1190 = vunpack.c.l.b16 %v1126
        %v1191 = vunpack.c.l.b16 %v1127
        %v1192 = vunpack.c.l.b16 %v1128
        %v1193 = vunpack.c.l.b16 %v1129
        %v1194 = vunpack.c.l.b16 %v1130
        %v1195 = vunpack.c.l.b16 %v1131
        %v1196 = vunpack.c.l.b16 %v1132
        %v1197 = vunpack.c.l.b16 %v1133
        %v1198 = vunpack.c.l.b16 %v1134
        %v1199 = vunpack.c.l.b16 %v1135
        %v1200 = vunpack.c.l.b16 %v1136
        %v1201 = vunpack.c.l.b16 %v1137
        %v1202 = vunpack.c.l.b16 %v1138
        %v1203 = vunpack.c.l.b16 %v1139
        %v1204 = vunpack.c.l.b16 %v1140
        %v1205 = vunpack.c.l.b16 %v1141
        %v1206 = vunpack.c.l.b16 %v1142
        %v1207 = vunpack.c.l.b16 %v1143
        %v1208 = vunpack.c.l.b16 %v1144
        %v1209 = vunpack.c.l.b16 %v1145
        %v1210 = vunpack.c.l.b16 %v1146
        %v1211 = vunpack.c.l.b16 %v1147
        %v1212 = vunpack.c.l.b16 %v1148
        %v1213 = vunpack.c.l.b16 %v1149
        %v1214 = vunpack.c.l.b16 %v1150
        %v1215 = vunpack.c.l.b16 %v1151
        %v1216 = vunpack.c.l.b16 %v1152
        %v1217 = vunpack.c.l.b16 %v1153
        %v1218 = vunpack.c.l.b16 %v1154
        %v1219 = vunpack.c.l.b16 %v1155
        %v1220 = vpack.c.b16 %v1189, %v1188
        %v1221 = vpack.c.b16 %v1191, %v1190
        %v1222 = vpack.c.b16 %v1193, %v1192
        %v1223 = vpack.c.b16 %v1195, %v1194
        %v1224 = vpack.c.b16 %v1197, %v1196
        %v1225 = vpack.c.b16 %v1199, %v1198
        %v1226 = vpack.c.b16 %v1201, %v1200
        %v1227 = vpack.c.b16 %v1203, %v1202
        %v1228 = vpack.c.b16 %v1205, %v1204
        %v1229 = vpack.c.b16 %v1207, %v1206
        %v1230 = vpack.c.b16 %v1209, %v1208
        %v1231 = vpack.c.b16 %v1211, %v1210
        %v1232 = vpack.c.b16 %v1213, %v1212
        %v1233 = vpack.c.b16 %v1215, %v1214
        %v1234 = vpack.c.b16 %v1217, %v1216
        %v1235 = vpack.c.b16 %v1219, %v1218
        %v1237 = vsel %vm453, %v1220, 0
        %v1240 = vsel %vm453, %v1221, 0
        %v1243 = vsel %vm453, %v1222, 0
        %v1246 = vsel %vm453, %v1223, 0
        %v1249 = vsel %vm453, %v1224, 0
        %v1252 = vsel %vm453, %v1225, 0
        %v1255 = vsel %vm453, %v1226, 0
        %v1258 = vsel %vm453, %v1227, 0
        %v1261 = vsel %vm453, %v1228, 0
        %v1264 = vsel %vm453, %v1229, 0
        %v1267 = vsel %vm453, %v1230, 0
        %v1270 = vsel %vm453, %v1231, 0
        %v1273 = vsel %vm453, %v1232, 0
        %v1276 = vsel %vm453, %v1233, 0
        %v1279 = vsel %vm453, %v1234, 0
        %v1282 = vsel %vm453, %v1235, 0
        %1284 = vmatprep.subr.bf16.mxu0 0
        %1285 = vmatpush1.bf16.msra.mxu0 %v449
        %1286 = vmatprep.subr.bf16.mxu0 0
        %1287 = vmatpush1.bf16.msra.mxu0 %v450
        %1288 = vmatprep.subr.bf16.mxu0 0
        %1289 = vmatpush1.bf16.msra.mxu0 0
        %1290 = vmatprep.subr.bf16.mxu0 0
        %1291 = vmatpush1.bf16.msra.mxu0 0
        %1292 = vmatprep.subr.bf16.mxu0 0
        %1293 = vmatpush1.bf16.msra.mxu0 0
        %1294 = vmatprep.subr.bf16.mxu0 0
        %1295 = vmatpush1.bf16.msra.mxu0 0
        %1296 = vmatprep.subr.bf16.mxu0 0
        %1297 = vmatpush1.bf16.msra.mxu0 0
        %1298 = vmatprep.subr.bf16.mxu0 0
        %1299 = vmatpush1.bf16.msra.mxu0 0
        %1300 = vmatprep.subr.bf16.mxu0 0
        %1301 = vmatpush1.bf16.msra.mxu0 0
        %1302 = vmatprep.subr.bf16.mxu0 0
        %1303 = vmatpush1.bf16.msra.mxu0 0
        %1304 = vmatprep.subr.bf16.mxu0 0
        %1305 = vmatpush1.bf16.msra.mxu0 0
        %1306 = vmatprep.subr.bf16.mxu0 0
        %1307 = vmatpush1.bf16.msra.mxu0 0
        %1308 = vmatprep.subr.bf16.mxu0 0
        %1309 = vmatpush1.bf16.msra.mxu0 0
        %1310 = vmatprep.subr.bf16.mxu0 0
        %1311 = vmatpush1.bf16.msra.mxu0 0
        %1312 = vmatprep.subr.bf16.mxu0 0
        %1313 = vmatpush1.bf16.msra.mxu0 0
        %1314 = vmatprep.subr.bf16.mxu0 0
        %1315 = vmatpush1.bf16.msra.mxu0 0
        %1316 = vmatprep.mubr.bf16.mxu0 0
        %1317 = vmatmul.mubr.bf16.gmra.mrb[0].mxu0 %v1237
        %v1318 = vpop.f32.mrb[0].mxu0
        %v1319 = vadd.f32 %v359, %v1318
        %v1320 = vpop.f32.mrb[0].mxu0
        %v1321 = vpop.f32.mrb[0].mxu0
        %v1322 = vadd.f32 %v359, %v1321
        %v1323 = vpop.f32.mrb[0].mxu0
        %1324 = vmatprep.mubr.bf16.mxu0 0
        %1325 = vmatmul.mubr.bf16.gmra.mrb[0].mxu0 %v1240
        %v1326 = vpop.f32.mrb[0].mxu0
        %v1327 = vadd.f32 %v359, %v1326
        %v1328 = vpop.f32.mrb[0].mxu0
        %v1329 = vpop.f32.mrb[0].mxu0
        %v1330 = vadd.f32 %v359, %v1329
        %v1331 = vpop.f32.mrb[0].mxu0
        %1332 = vmatprep.mubr.bf16.mxu0 0
        %1333 = vmatmul.mubr.bf16.gmra.mrb[0].mxu0 %v1243
        %v1334 = vpop.f32.mrb[0].mxu0
        %v1335 = vadd.f32 %v359, %v1334
        %v1336 = vpop.f32.mrb[0].mxu0
        %v1337 = vpop.f32.mrb[0].mxu0
        %v1338 = vadd.f32 %v359, %v1337
        %v1339 = vpop.f32.mrb[0].mxu0
        %1340 = vmatprep.mubr.bf16.mxu0 0
        %1341 = vmatmul.mubr.bf16.gmra.mrb[0].mxu0 %v1246
        %v1342 = vpop.f32.mrb[0].mxu0
        %v1343 = vadd.f32 %v359, %v1342
        %v1344 = vpop.f32.mrb[0].mxu0
        %v1345 = vpop.f32.mrb[0].mxu0
        %v1346 = vadd.f32 %v359, %v1345
        %v1347 = vpop.f32.mrb[0].mxu0
        %1348 = vmatprep.mubr.bf16.mxu0 0
        %1349 = vmatmul.mubr.bf16.gmra.mrb[0].mxu0 %v1249
        %v1350 = vpop.f32.mrb[0].mxu0
        %v1351 = vadd.f32 %v359, %v1350
        %v1352 = vpop.f32.mrb[0].mxu0
        %v1353 = vpop.f32.mrb[0].mxu0
        %v1354 = vadd.f32 %v359, %v1353
        %v1355 = vpop.f32.mrb[0].mxu0
        %1356 = vmatprep.mubr.bf16.mxu0 0
        %1357 = vmatmul.mubr.bf16.gmra.mrb[0].mxu0 %v1252
        %v1358 = vpop.f32.mrb[0].mxu0
        %v1359 = vadd.f32 %v359, %v1358
        %v1360 = vpop.f32.mrb[0].mxu0
        %v1361 = vpop.f32.mrb[0].mxu0
        %v1362 = vadd.f32 %v359, %v1361
        %v1363 = vpop.f32.mrb[0].mxu0
        %1364 = vmatprep.mubr.bf16.mxu0 0
        %1365 = vmatmul.mubr.bf16.gmra.mrb[0].mxu0 %v1255
        %v1366 = vpop.f32.mrb[0].mxu0
        %v1367 = vadd.f32 %v359, %v1366
        %v1368 = vpop.f32.mrb[0].mxu0
        %v1369 = vpop.f32.mrb[0].mxu0
        %v1370 = vadd.f32 %v359, %v1369
        %v1371 = vpop.f32.mrb[0].mxu0
        %1372 = vmatprep.mubr.bf16.mxu0 0
        %1373 = vmatmul.mubr.bf16.gmra.mrb[0].mxu0 %v1258
        %v1374 = vpop.f32.mrb[0].mxu0
        %v1375 = vadd.f32 %v359, %v1374
        %v1376 = vpop.f32.mrb[0].mxu0
        %v1377 = vpop.f32.mrb[0].mxu0
        %v1378 = vadd.f32 %v359, %v1377
        %v1379 = vpop.f32.mrb[0].mxu0
        %1380 = vmatprep.mubr.bf16.mxu0 0
        %1381 = vmatmul.mubr.bf16.gmra.mrb[0].mxu0 %v1261
        %v1382 = vpop.f32.mrb[0].mxu0
        %v1383 = vadd.f32 %v359, %v1382
        %v1384 = vpop.f32.mrb[0].mxu0
        %v1385 = vpop.f32.mrb[0].mxu0
        %v1386 = vadd.f32 %v359, %v1385
        %v1387 = vpop.f32.mrb[0].mxu0
        %1388 = vmatprep.mubr.bf16.mxu0 0
        %1389 = vmatmul.mubr.bf16.gmra.mrb[0].mxu0 %v1264
        %v1390 = vpop.f32.mrb[0].mxu0
        %v1391 = vadd.f32 %v359, %v1390
        %v1392 = vpop.f32.mrb[0].mxu0
        %v1393 = vpop.f32.mrb[0].mxu0
        %v1394 = vadd.f32 %v359, %v1393
        %v1395 = vpop.f32.mrb[0].mxu0
        %1396 = vmatprep.mubr.bf16.mxu0 0
        %1397 = vmatmul.mubr.bf16.gmra.mrb[0].mxu0 %v1267
        %v1398 = vpop.f32.mrb[0].mxu0
        %v1399 = vadd.f32 %v359, %v1398
        %v1400 = vpop.f32.mrb[0].mxu0
        %v1401 = vpop.f32.mrb[0].mxu0
        %v1402 = vadd.f32 %v359, %v1401
        %v1403 = vpop.f32.mrb[0].mxu0
        %1404 = vmatprep.mubr.bf16.mxu0 0
        %1405 = vmatmul.mubr.bf16.gmra.mrb[0].mxu0 %v1270
        %v1406 = vpop.f32.mrb[0].mxu0
        %v1407 = vadd.f32 %v359, %v1406
        %v1408 = vpop.f32.mrb[0].mxu0
        %v1409 = vpop.f32.mrb[0].mxu0
        %v1410 = vadd.f32 %v359, %v1409
        %v1411 = vpop.f32.mrb[0].mxu0
        %1412 = vmatprep.mubr.bf16.mxu0 0
        %1413 = vmatmul.mubr.bf16.gmra.mrb[0].mxu0 %v1273
        %v1414 = vpop.f32.mrb[0].mxu0
        %v1415 = vadd.f32 %v359, %v1414
        %v1416 = vpop.f32.mrb[0].mxu0
        %v1417 = vpop.f32.mrb[0].mxu0
        %v1418 = vadd.f32 %v359, %v1417
        %v1419 = vpop.f32.mrb[0].mxu0
        %1420 = vmatprep.mubr.bf16.mxu0 0
        %1421 = vmatmul.mubr.bf16.gmra.mrb[0].mxu0 %v1276
        %v1422 = vpop.f32.mrb[0].mxu0
        %v1423 = vadd.f32 %v359, %v1422
        %v1424 = vpop.f32.mrb[0].mxu0
        %v1425 = vpop.f32.mrb[0].mxu0
        %v1426 = vadd.f32 %v359, %v1425
        %v1427 = vpop.f32.mrb[0].mxu0
        %1428 = vmatprep.mubr.bf16.mxu0 0
        %1429 = vmatmul.mubr.bf16.gmra.mrb[0].mxu0 %v1279
        %v1430 = vpop.f32.mrb[0].mxu0
        %v1431 = vadd.f32 %v359, %v1430
        %v1432 = vpop.f32.mrb[0].mxu0
        %v1433 = vpop.f32.mrb[0].mxu0
        %v1434 = vadd.f32 %v359, %v1433
        %v1435 = vpop.f32.mrb[0].mxu0
        %1436 = vmatprep.mubr.bf16.mxu0 0
        %1437 = vmatmul.mubr.bf16.gmra.mrb[0].mxu0 %v1282
        %v1438 = vpop.f32.mrb[0].mxu0
        %v1439 = vadd.f32 %v359, %v1438
        %v1440 = vpop.f32.mrb[0].mxu0
        %v1441 = vpop.f32.mrb[0].mxu0
        %v1442 = vadd.f32 %v359, %v1441
        %v1443 = vpop.f32.mrb[0].mxu0
        %1444 = vdwg.mxu0
        %v1445 = vmax.f32 %v1319, 0.0
        %v1446 = vmax.f32 %v1322, 0.0
        %v1447 = vmax.f32 %v1327, 0.0
        %v1448 = vmax.f32 %v1330, 0.0
        %v1449 = vmax.f32 %v1335, 0.0
        %v1450 = vmax.f32 %v1338, 0.0
        %v1451 = vmax.f32 %v1343, 0.0
        %v1452 = vmax.f32 %v1346, 0.0
        %v1453 = vmax.f32 %v1351, 0.0
        %v1454 = vmax.f32 %v1354, 0.0
        %v1455 = vmax.f32 %v1359, 0.0
        %v1456 = vmax.f32 %v1362, 0.0
        %v1457 = vmax.f32 %v1367, 0.0
        %v1458 = vmax.f32 %v1370, 0.0
        %v1459 = vmax.f32 %v1375, 0.0
        %v1460 = vmax.f32 %v1378, 0.0
        %v1461 = vmax.f32 %v1383, 0.0
        %v1462 = vmax.f32 %v1386, 0.0
        %v1463 = vmax.f32 %v1391, 0.0
        %v1464 = vmax.f32 %v1394, 0.0
        %v1465 = vmax.f32 %v1399, 0.0
        %v1466 = vmax.f32 %v1402, 0.0
        %v1467 = vmax.f32 %v1407, 0.0
        %v1468 = vmax.f32 %v1410, 0.0
        %v1469 = vmax.f32 %v1415, 0.0
        %v1470 = vmax.f32 %v1418, 0.0
        %v1471 = vmax.f32 %v1423, 0.0
        %v1472 = vmax.f32 %v1426, 0.0
        %v1473 = vmax.f32 %v1431, 0.0
        %v1474 = vmax.f32 %v1434, 0.0
        %v1475 = vmax.f32 %v1439, 0.0
        %v1476 = vmax.f32 %v1442, 0.0
        %v1477 = vadd.f32 %v1445, %v1446
        %v1478 = vadd.f32 %v1477, %v1447
        %v1479 = vadd.f32 %v1478, %v1448
        %v1480 = vadd.f32 %v1479, %v1449
        %v1481 = vadd.f32 %v1480, %v1450
        %v1482 = vadd.f32 %v1481, %v1451
        %v1483 = vadd.f32 %v1482, %v1452
        %v1484 = vadd.f32 %v1483, %v1453
        %v1485 = vadd.f32 %v1484, %v1454
        %v1486 = vadd.f32 %v1485, %v1455
        %v1487 = vadd.f32 %v1486, %v1456
        %v1488 = vadd.f32 %v1487, %v1457
        %v1489 = vadd.f32 %v1488, %v1458
        %v1490 = vadd.f32 %v1489, %v1459
        %v1491 = vadd.f32 %v1490, %v1460
        %v1492 = vadd.f32 %v1491, %v1461
        %v1493 = vadd.f32 %v1492, %v1462
        %v1494 = vadd.f32 %v1493, %v1463
        %v1495 = vadd.f32 %v1494, %v1464
        %v1496 = vadd.f32 %v1495, %v1465
        %v1497 = vadd.f32 %v1496, %v1466
        %v1498 = vadd.f32 %v1497, %v1467
        %v1499 = vadd.f32 %v1498, %v1468
        %v1500 = vadd.f32 %v1499, %v1469
        %v1501 = vadd.f32 %v1500, %v1470
        %v1502 = vadd.f32 %v1501, %v1471
        %v1503 = vadd.f32 %v1502, %v1472
        %v1504 = vadd.f32 %v1503, %v1473
        %v1505 = vadd.f32 %v1504, %v1474
        %v1506 = vadd.f32 %v1505, %v1475
        %v1507 = vadd.f32 %v1506, %v1476
        %v1508 = vrot.slane %v1507, 4
        %v1509 = vadd.f32 %v1507, %v1508
        %v1510 = vrot.slane %v1509, 2
        %v1511 = vadd.f32 %v1509, %v1510
        %v1512 = vrot.slane %v1511, 1
        %v1513 = vadd.f32 %v1511, %v1512
        %1514 = vst [vmem:[#allocation2 + $0x2] sm:$0x1] %v1513
        %v1515 = vld [vmem:[%s315 + $0x180] sm:$0xf]
        %v1516 = vld [vmem:[%s315 + $0x184] sm:$0xf]
        %v1517 = vld [vmem:[%s315 + $0x188] sm:$0xf]
        %v1518 = vld [vmem:[%s315 + $0x18c] sm:$0xf]
        %v1519 = vld [vmem:[%s315 + $0x190] sm:$0xf]
        %v1520 = vld [vmem:[%s315 + $0x194] sm:$0xf]
        %v1521 = vld [vmem:[%s315 + $0x198] sm:$0xf]
        %v1522 = vld [vmem:[%s315 + $0x19c] sm:$0xf]
        %v1523 = vld [vmem:[%s315 + $0x1a0] sm:$0xf]
        %v1524 = vld [vmem:[%s315 + $0x1a4] sm:$0xf]
        %v1525 = vld [vmem:[%s315 + $0x1a8] sm:$0xf]
        %v1526 = vld [vmem:[%s315 + $0x1ac] sm:$0xf]
        %v1527 = vld [vmem:[%s315 + $0x1b0] sm:$0xf]
        %v1528 = vld [vmem:[%s315 + $0x1b4] sm:$0xf]
        %v1529 = vld [vmem:[%s315 + $0x1b8] sm:$0xf]
        %v1530 = vld [vmem:[%s315 + $0x1bc] sm:$0xf]
        %v1531 = vld [vmem:[%s315 + $0x1c0] sm:$0xf]
        %v1532 = vld [vmem:[%s315 + $0x1c4] sm:$0xf]
        %v1533 = vld [vmem:[%s315 + $0x1c8] sm:$0xf]
        %v1534 = vld [vmem:[%s315 + $0x1cc] sm:$0xf]
        %v1535 = vld [vmem:[%s315 + $0x1d0] sm:$0xf]
        %v1536 = vld [vmem:[%s315 + $0x1d4] sm:$0xf]
        %v1537 = vld [vmem:[%s315 + $0x1d8] sm:$0xf]
        %v1538 = vld [vmem:[%s315 + $0x1dc] sm:$0xf]
        %v1539 = vld [vmem:[%s315 + $0x1e0] sm:$0xf]
        %v1540 = vld [vmem:[%s315 + $0x1e4] sm:$0xf]
        %v1541 = vld [vmem:[%s315 + $0x1e8] sm:$0xf]
        %v1542 = vld [vmem:[%s315 + $0x1ec] sm:$0xf]
        %v1543 = vld [vmem:[%s315 + $0x1f0] sm:$0xf]
        %v1544 = vld [vmem:[%s315 + $0x1f4] sm:$0xf]
        %v1545 = vld [vmem:[%s315 + $0x1f8] sm:$0xf]
        %v1546 = vld [vmem:[%s315 + $0x1fc] sm:$0xf]
        %v1579 = vunpack.c.l.b16 %v1515
        %v1580 = vunpack.c.l.b16 %v1516
        %v1581 = vunpack.c.l.b16 %v1517
        %v1582 = vunpack.c.l.b16 %v1518
        %v1583 = vunpack.c.l.b16 %v1519
        %v1584 = vunpack.c.l.b16 %v1520
        %v1585 = vunpack.c.l.b16 %v1521
        %v1586 = vunpack.c.l.b16 %v1522
        %v1587 = vunpack.c.l.b16 %v1523
        %v1588 = vunpack.c.l.b16 %v1524
        %v1589 = vunpack.c.l.b16 %v1525
        %v1590 = vunpack.c.l.b16 %v1526
        %v1591 = vunpack.c.l.b16 %v1527
        %v1592 = vunpack.c.l.b16 %v1528
        %v1593 = vunpack.c.l.b16 %v1529
        %v1594 = vunpack.c.l.b16 %v1530
        %v1595 = vunpack.c.l.b16 %v1531
        %v1596 = vunpack.c.l.b16 %v1532
        %v1597 = vunpack.c.l.b16 %v1533
        %v1598 = vunpack.c.l.b16 %v1534
        %v1599 = vunpack.c.l.b16 %v1535
        %v1600 = vunpack.c.l.b16 %v1536
        %v1601 = vunpack.c.l.b16 %v1537
        %v1602 = vunpack.c.l.b16 %v1538
        %v1603 = vunpack.c.l.b16 %v1539
        %v1604 = vunpack.c.l.b16 %v1540
        %v1605 = vunpack.c.l.b16 %v1541
        %v1606 = vunpack.c.l.b16 %v1542
        %v1607 = vunpack.c.l.b16 %v1543
        %v1608 = vunpack.c.l.b16 %v1544
        %v1609 = vunpack.c.l.b16 %v1545
        %v1610 = vunpack.c.l.b16 %v1546
        %v1611 = vpack.c.b16 %v1580, %v1579
        %v1612 = vpack.c.b16 %v1582, %v1581
        %v1613 = vpack.c.b16 %v1584, %v1583
        %v1614 = vpack.c.b16 %v1586, %v1585
        %v1615 = vpack.c.b16 %v1588, %v1587
        %v1616 = vpack.c.b16 %v1590, %v1589
        %v1617 = vpack.c.b16 %v1592, %v1591
        %v1618 = vpack.c.b16 %v1594, %v1593
        %v1619 = vpack.c.b16 %v1596, %v1595
        %v1620 = vpack.c.b16 %v1598, %v1597
        %v1621 = vpack.c.b16 %v1600, %v1599
        %v1622 = vpack.c.b16 %v1602, %v1601
        %v1623 = vpack.c.b16 %v1604, %v1603
        %v1624 = vpack.c.b16 %v1606, %v1605
        %v1625 = vpack.c.b16 %v1608, %v1607
        %v1626 = vpack.c.b16 %v1610, %v1609
        %v1628 = vsel %vm453, %v1611, 0
        %v1631 = vsel %vm453, %v1612, 0
        %v1634 = vsel %vm453, %v1613, 0
        %v1637 = vsel %vm453, %v1614, 0
        %v1640 = vsel %vm453, %v1615, 0
        %v1643 = vsel %vm453, %v1616, 0
        %v1646 = vsel %vm453, %v1617, 0
        %v1649 = vsel %vm453, %v1618, 0
        %v1652 = vsel %vm453, %v1619, 0
        %v1655 = vsel %vm453, %v1620, 0
        %v1658 = vsel %vm453, %v1621, 0
        %v1661 = vsel %vm453, %v1622, 0
        %v1664 = vsel %vm453, %v1623, 0
        %v1667 = vsel %vm453, %v1624, 0
        %v1670 = vsel %vm453, %v1625, 0
        %v1673 = vsel %vm453, %v1626, 0
        %1675 = vmatprep.subr.bf16.mxu0 0
        %1676 = vmatpush1.bf16.msra.mxu0 %v449
        %1677 = vmatprep.subr.bf16.mxu0 0
        %1678 = vmatpush1.bf16.msra.mxu0 %v450
        %1679 = vmatprep.subr.bf16.mxu0 0
        %1680 = vmatpush1.bf16.msra.mxu0 0
        %1681 = vmatprep.subr.bf16.mxu0 0
        %1682 = vmatpush1.bf16.msra.mxu0 0
        %1683 = vmatprep.subr.bf16.mxu0 0
        %1684 = vmatpush1.bf16.msra.mxu0 0
        %1685 = vmatprep.subr.bf16.mxu0 0
        %1686 = vmatpush1.bf16.msra.mxu0 0
        %1687 = vmatprep.subr.bf16.mxu0 0
        %1688 = vmatpush1.bf16.msra.mxu0 0
        %1689 = vmatprep.subr.bf16.mxu0 0
        %1690 = vmatpush1.bf16.msra.mxu0 0
        %1691 = vmatprep.subr.bf16.mxu0 0
        %1692 = vmatpush1.bf16.msra.mxu0 0
        %1693 = vmatprep.subr.bf16.mxu0 0
        %1694 = vmatpush1.bf16.msra.mxu0 0
        %1695 = vmatprep.subr.bf16.mxu0 0
        %1696 = vmatpush1.bf16.msra.mxu0 0
        %1697 = vmatprep.subr.bf16.mxu0 0
        %1698 = vmatpush1.bf16.msra.mxu0 0
        %1699 = vmatprep.subr.bf16.mxu0 0
        %1700 = vmatpush1.bf16.msra.mxu0 0
        %1701 = vmatprep.subr.bf16.mxu0 0
        %1702 = vmatpush1.bf16.msra.mxu0 0
        %1703 = vmatprep.subr.bf16.mxu0 0
        %1704 = vmatpush1.bf16.msra.mxu0 0
        %1705 = vmatprep.subr.bf16.mxu0 0
        %1706 = vmatpush1.bf16.msra.mxu0 0
        %1707 = vmatprep.mubr.bf16.mxu0 0
        %1708 = vmatmul.mubr.bf16.gmra.mrb[0].mxu0 %v1628
        %v1709 = vpop.f32.mrb[0].mxu0
        %v1710 = vadd.f32 %v359, %v1709
        %v1711 = vpop.f32.mrb[0].mxu0
        %v1712 = vpop.f32.mrb[0].mxu0
        %v1713 = vadd.f32 %v359, %v1712
        %v1714 = vpop.f32.mrb[0].mxu0
        %1715 = vmatprep.mubr.bf16.mxu0 0
        %1716 = vmatmul.mubr.bf16.gmra.mrb[0].mxu0 %v1631
        %v1717 = vpop.f32.mrb[0].mxu0
        %v1718 = vadd.f32 %v359, %v1717
        %v1719 = vpop.f32.mrb[0].mxu0
        %v1720 = vpop.f32.mrb[0].mxu0
        %v1721 = vadd.f32 %v359, %v1720
        %v1722 = vpop.f32.mrb[0].mxu0
        %1723 = vmatprep.mubr.bf16.mxu0 0
        %1724 = vmatmul.mubr.bf16.gmra.mrb[0].mxu0 %v1634
        %v1725 = vpop.f32.mrb[0].mxu0
        %v1726 = vadd.f32 %v359, %v1725
        %v1727 = vpop.f32.mrb[0].mxu0
        %v1728 = vpop.f32.mrb[0].mxu0
        %v1729 = vadd.f32 %v359, %v1728
        %v1730 = vpop.f32.mrb[0].mxu0
        %1731 = vmatprep.mubr.bf16.mxu0 0
        %1732 = vmatmul.mubr.bf16.gmra.mrb[0].mxu0 %v1637
        %v1733 = vpop.f32.mrb[0].mxu0
        %v1734 = vadd.f32 %v359, %v1733
        %v1735 = vpop.f32.mrb[0].mxu0
        %v1736 = vpop.f32.mrb[0].mxu0
        %v1737 = vadd.f32 %v359, %v1736
        %v1738 = vpop.f32.mrb[0].mxu0
        %1739 = vmatprep.mubr.bf16.mxu0 0
        %1740 = vmatmul.mubr.bf16.gmra.mrb[0].mxu0 %v1640
        %v1741 = vpop.f32.mrb[0].mxu0
        %v1742 = vadd.f32 %v359, %v1741
        %v1743 = vpop.f32.mrb[0].mxu0
        %v1744 = vpop.f32.mrb[0].mxu0
        %v1745 = vadd.f32 %v359, %v1744
        %v1746 = vpop.f32.mrb[0].mxu0
        %1747 = vmatprep.mubr.bf16.mxu0 0
        %1748 = vmatmul.mubr.bf16.gmra.mrb[0].mxu0 %v1643
        %v1749 = vpop.f32.mrb[0].mxu0
        %v1750 = vadd.f32 %v359, %v1749
        %v1751 = vpop.f32.mrb[0].mxu0
        %v1752 = vpop.f32.mrb[0].mxu0
        %v1753 = vadd.f32 %v359, %v1752
        %v1754 = vpop.f32.mrb[0].mxu0
        %1755 = vmatprep.mubr.bf16.mxu0 0
        %1756 = vmatmul.mubr.bf16.gmra.mrb[0].mxu0 %v1646
        %v1757 = vpop.f32.mrb[0].mxu0
        %v1758 = vadd.f32 %v359, %v1757
        %v1759 = vpop.f32.mrb[0].mxu0
        %v1760 = vpop.f32.mrb[0].mxu0
        %v1761 = vadd.f32 %v359, %v1760
        %v1762 = vpop.f32.mrb[0].mxu0
        %1763 = vmatprep.mubr.bf16.mxu0 0
        %1764 = vmatmul.mubr.bf16.gmra.mrb[0].mxu0 %v1649
        %v1765 = vpop.f32.mrb[0].mxu0
        %v1766 = vadd.f32 %v359, %v1765
        %v1767 = vpop.f32.mrb[0].mxu0
        %v1768 = vpop.f32.mrb[0].mxu0
        %v1769 = vadd.f32 %v359, %v1768
        %v1770 = vpop.f32.mrb[0].mxu0
        %1771 = vmatprep.mubr.bf16.mxu0 0
        %1772 = vmatmul.mubr.bf16.gmra.mrb[0].mxu0 %v1652
        %v1773 = vpop.f32.mrb[0].mxu0
        %v1774 = vadd.f32 %v359, %v1773
        %v1775 = vpop.f32.mrb[0].mxu0
        %v1776 = vpop.f32.mrb[0].mxu0
        %v1777 = vadd.f32 %v359, %v1776
        %v1778 = vpop.f32.mrb[0].mxu0
        %1779 = vmatprep.mubr.bf16.mxu0 0
        %1780 = vmatmul.mubr.bf16.gmra.mrb[0].mxu0 %v1655
        %v1781 = vpop.f32.mrb[0].mxu0
        %v1782 = vadd.f32 %v359, %v1781
        %v1783 = vpop.f32.mrb[0].mxu0
        %v1784 = vpop.f32.mrb[0].mxu0
        %v1785 = vadd.f32 %v359, %v1784
        %v1786 = vpop.f32.mrb[0].mxu0
        %1787 = vmatprep.mubr.bf16.mxu0 0
        %1788 = vmatmul.mubr.bf16.gmra.mrb[0].mxu0 %v1658
        %v1789 = vpop.f32.mrb[0].mxu0
        %v1790 = vadd.f32 %v359, %v1789
        %v1791 = vpop.f32.mrb[0].mxu0
        %v1792 = vpop.f32.mrb[0].mxu0
        %v1793 = vadd.f32 %v359, %v1792
        %v1794 = vpop.f32.mrb[0].mxu0
        %1795 = vmatprep.mubr.bf16.mxu0 0
        %1796 = vmatmul.mubr.bf16.gmra.mrb[0].mxu0 %v1661
        %v1797 = vpop.f32.mrb[0].mxu0
        %v1798 = vadd.f32 %v359, %v1797
        %v1799 = vpop.f32.mrb[0].mxu0
        %v1800 = vpop.f32.mrb[0].mxu0
        %v1801 = vadd.f32 %v359, %v1800
        %v1802 = vpop.f32.mrb[0].mxu0
        %1803 = vmatprep.mubr.bf16.mxu0 0
        %1804 = vmatmul.mubr.bf16.gmra.mrb[0].mxu0 %v1664
        %v1805 = vpop.f32.mrb[0].mxu0
        %v1806 = vadd.f32 %v359, %v1805
        %v1807 = vpop.f32.mrb[0].mxu0
        %v1808 = vpop.f32.mrb[0].mxu0
        %v1809 = vadd.f32 %v359, %v1808
        %v1810 = vpop.f32.mrb[0].mxu0
        %1811 = vmatprep.mubr.bf16.mxu0 0
        %1812 = vmatmul.mubr.bf16.gmra.mrb[0].mxu0 %v1667
        %v1813 = vpop.f32.mrb[0].mxu0
        %v1814 = vadd.f32 %v359, %v1813
        %v1815 = vpop.f32.mrb[0].mxu0
        %v1816 = vpop.f32.mrb[0].mxu0
        %v1817 = vadd.f32 %v359, %v1816
        %v1818 = vpop.f32.mrb[0].mxu0
        %1819 = vmatprep.mubr.bf16.mxu0 0
        %1820 = vmatmul.mubr.bf16.gmra.mrb[0].mxu0 %v1670
        %v1821 = vpop.f32.mrb[0].mxu0
        %v1822 = vadd.f32 %v359, %v1821
        %v1823 = vpop.f32.mrb[0].mxu0
        %v1824 = vpop.f32.mrb[0].mxu0
        %v1825 = vadd.f32 %v359, %v1824
        %v1826 = vpop.f32.mrb[0].mxu0
        %1827 = vmatprep.mubr.bf16.mxu0 0
        %1828 = vmatmul.mubr.bf16.gmra.mrb[0].mxu0 %v1673
        %v1829 = vpop.f32.mrb[0].mxu0
        %v1830 = vadd.f32 %v359, %v1829
        %v1831 = vpop.f32.mrb[0].mxu0
        %v1832 = vpop.f32.mrb[0].mxu0
        %v1833 = vadd.f32 %v359, %v1832
        %v1834 = vpop.f32.mrb[0].mxu0
        %1835 = vdwg.mxu0
        %v1836 = vmax.f32 %v1710, 0.0
        %v1837 = vmax.f32 %v1713, 0.0
        %v1838 = vmax.f32 %v1718, 0.0
        %v1839 = vmax.f32 %v1721, 0.0
        %v1840 = vmax.f32 %v1726, 0.0
        %v1841 = vmax.f32 %v1729, 0.0
        %v1842 = vmax.f32 %v1734, 0.0
        %v1843 = vmax.f32 %v1737, 0.0
        %v1844 = vmax.f32 %v1742, 0.0
        %v1845 = vmax.f32 %v1745, 0.0
        %v1846 = vmax.f32 %v1750, 0.0
        %v1847 = vmax.f32 %v1753, 0.0
        %v1848 = vmax.f32 %v1758, 0.0
        %v1849 = vmax.f32 %v1761, 0.0
        %v1850 = vmax.f32 %v1766, 0.0
        %v1851 = vmax.f32 %v1769, 0.0
        %v1852 = vmax.f32 %v1774, 0.0
        %v1853 = vmax.f32 %v1777, 0.0
        %v1854 = vmax.f32 %v1782, 0.0
        %v1855 = vmax.f32 %v1785, 0.0
        %v1856 = vmax.f32 %v1790, 0.0
        %v1857 = vmax.f32 %v1793, 0.0
        %v1858 = vmax.f32 %v1798, 0.0
        %v1859 = vmax.f32 %v1801, 0.0
        %v1860 = vmax.f32 %v1806, 0.0
        %v1861 = vmax.f32 %v1809, 0.0
        %v1862 = vmax.f32 %v1814, 0.0
        %v1863 = vmax.f32 %v1817, 0.0
        %v1864 = vmax.f32 %v1822, 0.0
        %v1865 = vmax.f32 %v1825, 0.0
        %v1866 = vmax.f32 %v1830, 0.0
        %v1867 = vmax.f32 %v1833, 0.0
        %v1868 = vadd.f32 %v1836, %v1837
        %v1869 = vadd.f32 %v1868, %v1838
        %v1870 = vadd.f32 %v1869, %v1839
        %v1871 = vadd.f32 %v1870, %v1840
        %v1872 = vadd.f32 %v1871, %v1841
        %v1873 = vadd.f32 %v1872, %v1842
        %v1874 = vadd.f32 %v1873, %v1843
        %v1875 = vadd.f32 %v1874, %v1844
        %v1876 = vadd.f32 %v1875, %v1845
        %v1877 = vadd.f32 %v1876, %v1846
        %v1878 = vadd.f32 %v1877, %v1847
        %v1879 = vadd.f32 %v1878, %v1848
        %v1880 = vadd.f32 %v1879, %v1849
        %v1881 = vadd.f32 %v1880, %v1850
        %v1882 = vadd.f32 %v1881, %v1851
        %v1883 = vadd.f32 %v1882, %v1852
        %v1884 = vadd.f32 %v1883, %v1853
        %v1885 = vadd.f32 %v1884, %v1854
        %v1886 = vadd.f32 %v1885, %v1855
        %v1887 = vadd.f32 %v1886, %v1856
        %v1888 = vadd.f32 %v1887, %v1857
        %v1889 = vadd.f32 %v1888, %v1858
        %v1890 = vadd.f32 %v1889, %v1859
        %v1891 = vadd.f32 %v1890, %v1860
        %v1892 = vadd.f32 %v1891, %v1861
        %v1893 = vadd.f32 %v1892, %v1862
        %v1894 = vadd.f32 %v1893, %v1863
        %v1895 = vadd.f32 %v1894, %v1864
        %v1896 = vadd.f32 %v1895, %v1865
        %v1897 = vadd.f32 %v1896, %v1866
        %v1898 = vadd.f32 %v1897, %v1867
        %v1899 = vrot.slane %v1898, 4
        %v1900 = vadd.f32 %v1898, %v1899
        %v1901 = vrot.slane %v1900, 2
        %v1902 = vadd.f32 %v1900, %v1901
        %v1903 = vrot.slane %v1902, 1
        %v1904 = vadd.f32 %v1902, %v1903
        %1905 = vst [vmem:[#allocation2 + $0x3] sm:$0x1] %v1904
        %v1906 = vld [vmem:[%s315 + $0x200] sm:$0xf]
        %v1907 = vld [vmem:[%s315 + $0x204] sm:$0xf]
        %v1908 = vld [vmem:[%s315 + $0x208] sm:$0xf]
        %v1909 = vld [vmem:[%s315 + $0x20c] sm:$0xf]
        %v1910 = vld [vmem:[%s315 + $0x210] sm:$0xf]
        %v1911 = vld [vmem:[%s315 + $0x214] sm:$0xf]
        %v1912 = vld [vmem:[%s315 + $0x218] sm:$0xf]
        %v1913 = vld [vmem:[%s315 + $0x21c] sm:$0xf]
        %v1914 = vld [vmem:[%s315 + $0x220] sm:$0xf]
        %v1915 = vld [vmem:[%s315 + $0x224] sm:$0xf]
        %v1916 = vld [vmem:[%s315 + $0x228] sm:$0xf]
        %v1917 = vld [vmem:[%s315 + $0x22c] sm:$0xf]
        %v1918 = vld [vmem:[%s315 + $0x230] sm:$0xf]
        %v1919 = vld [vmem:[%s315 + $0x234] sm:$0xf]
        %v1920 = vld [vmem:[%s315 + $0x238] sm:$0xf]
        %v1921 = vld [vmem:[%s315 + $0x23c] sm:$0xf]
        %v1922 = vld [vmem:[%s315 + $0x240] sm:$0xf]
        %v1923 = vld [vmem:[%s315 + $0x244] sm:$0xf]
        %v1924 = vld [vmem:[%s315 + $0x248] sm:$0xf]
        %v1925 = vld [vmem:[%s315 + $0x24c] sm:$0xf]
        %v1926 = vld [vmem:[%s315 + $0x250] sm:$0xf]
        %v1927 = vld [vmem:[%s315 + $0x254] sm:$0xf]
        %v1928 = vld [vmem:[%s315 + $0x258] sm:$0xf]
        %v1929 = vld [vmem:[%s315 + $0x25c] sm:$0xf]
        %v1930 = vld [vmem:[%s315 + $0x260] sm:$0xf]
        %v1931 = vld [vmem:[%s315 + $0x264] sm:$0xf]
        %v1932 = vld [vmem:[%s315 + $0x268] sm:$0xf]
        %v1933 = vld [vmem:[%s315 + $0x26c] sm:$0xf]
        %v1934 = vld [vmem:[%s315 + $0x270] sm:$0xf]
        %v1935 = vld [vmem:[%s315 + $0x274] sm:$0xf]
        %v1936 = vld [vmem:[%s315 + $0x278] sm:$0xf]
        %v1937 = vld [vmem:[%s315 + $0x27c] sm:$0xf]
        %v1970 = vunpack.c.l.b16 %v1906
        %v1971 = vunpack.c.l.b16 %v1907
        %v1972 = vunpack.c.l.b16 %v1908
        %v1973 = vunpack.c.l.b16 %v1909
        %v1974 = vunpack.c.l.b16 %v1910
        %v1975 = vunpack.c.l.b16 %v1911
        %v1976 = vunpack.c.l.b16 %v1912
        %v1977 = vunpack.c.l.b16 %v1913
        %v1978 = vunpack.c.l.b16 %v1914
        %v1979 = vunpack.c.l.b16 %v1915
        %v1980 = vunpack.c.l.b16 %v1916
        %v1981 = vunpack.c.l.b16 %v1917
        %v1982 = vunpack.c.l.b16 %v1918
        %v1983 = vunpack.c.l.b16 %v1919
        %v1984 = vunpack.c.l.b16 %v1920
        %v1985 = vunpack.c.l.b16 %v1921
        %v1986 = vunpack.c.l.b16 %v1922
        %v1987 = vunpack.c.l.b16 %v1923
        %v1988 = vunpack.c.l.b16 %v1924
        %v1989 = vunpack.c.l.b16 %v1925
        %v1990 = vunpack.c.l.b16 %v1926
        %v1991 = vunpack.c.l.b16 %v1927
        %v1992 = vunpack.c.l.b16 %v1928
        %v1993 = vunpack.c.l.b16 %v1929
        %v1994 = vunpack.c.l.b16 %v1930
        %v1995 = vunpack.c.l.b16 %v1931
        %v1996 = vunpack.c.l.b16 %v1932
        %v1997 = vunpack.c.l.b16 %v1933
        %v1998 = vunpack.c.l.b16 %v1934
        %v1999 = vunpack.c.l.b16 %v1935
        %v2000 = vunpack.c.l.b16 %v1936
        %v2001 = vunpack.c.l.b16 %v1937
        %v2002 = vpack.c.b16 %v1971, %v1970
        %v2003 = vpack.c.b16 %v1973, %v1972
        %v2004 = vpack.c.b16 %v1975, %v1974
        %v2005 = vpack.c.b16 %v1977, %v1976
        %v2006 = vpack.c.b16 %v1979, %v1978
        %v2007 = vpack.c.b16 %v1981, %v1980
        %v2008 = vpack.c.b16 %v1983, %v1982
        %v2009 = vpack.c.b16 %v1985, %v1984
        %v2010 = vpack.c.b16 %v1987, %v1986
        %v2011 = vpack.c.b16 %v1989, %v1988
        %v2012 = vpack.c.b16 %v1991, %v1990
        %v2013 = vpack.c.b16 %v1993, %v1992
        %v2014 = vpack.c.b16 %v1995, %v1994
        %v2015 = vpack.c.b16 %v1997, %v1996
        %v2016 = vpack.c.b16 %v1999, %v1998
        %v2017 = vpack.c.b16 %v2001, %v2000
        %v2019 = vsel %vm453, %v2002, 0
        %v2022 = vsel %vm453, %v2003, 0
        %v2025 = vsel %vm453, %v2004, 0
        %v2028 = vsel %vm453, %v2005, 0
        %v2031 = vsel %vm453, %v2006, 0
        %v2034 = vsel %vm453, %v2007, 0
        %v2037 = vsel %vm453, %v2008, 0
        %v2040 = vsel %vm453, %v2009, 0
        %v2043 = vsel %vm453, %v2010, 0
        %v2046 = vsel %vm453, %v2011, 0
        %v2049 = vsel %vm453, %v2012, 0
        %v2052 = vsel %vm453, %v2013, 0
        %v2055 = vsel %vm453, %v2014, 0
        %v2058 = vsel %vm453, %v2015, 0
        %v2061 = vsel %vm453, %v2016, 0
        %v2064 = vsel %vm453, %v2017, 0
        %2066 = vmatprep.subr.bf16.mxu0 0
        %2067 = vmatpush1.bf16.msra.mxu0 %v449
        %2068 = vmatprep.subr.bf16.mxu0 0
        %2069 = vmatpush1.bf16.msra.mxu0 %v450
        %2070 = vmatprep.subr.bf16.mxu0 0
        %2071 = vmatpush1.bf16.msra.mxu0 0
        %2072 = vmatprep.subr.bf16.mxu0 0
        %2073 = vmatpush1.bf16.msra.mxu0 0
        %2074 = vmatprep.subr.bf16.mxu0 0
        %2075 = vmatpush1.bf16.msra.mxu0 0
        %2076 = vmatprep.subr.bf16.mxu0 0
        %2077 = vmatpush1.bf16.msra.mxu0 0
        %2078 = vmatprep.subr.bf16.mxu0 0
        %2079 = vmatpush1.bf16.msra.mxu0 0
        %2080 = vmatprep.subr.bf16.mxu0 0
        %2081 = vmatpush1.bf16.msra.mxu0 0
        %2082 = vmatprep.subr.bf16.mxu0 0
        %2083 = vmatpush1.bf16.msra.mxu0 0
        %2084 = vmatprep.subr.bf16.mxu0 0
        %2085 = vmatpush1.bf16.msra.mxu0 0
        %2086 = vmatprep.subr.bf16.mxu0 0
        %2087 = vmatpush1.bf16.msra.mxu0 0
        %2088 = vmatprep.subr.bf16.mxu0 0
        %2089 = vmatpush1.bf16.msra.mxu0 0
        %2090 = vmatprep.subr.bf16.mxu0 0
        %2091 = vmatpush1.bf16.msra.mxu0 0
        %2092 = vmatprep.subr.bf16.mxu0 0
        %2093 = vmatpush1.bf16.msra.mxu0 0
        %2094 = vmatprep.subr.bf16.mxu0 0
        %2095 = vmatpush1.bf16.msra.mxu0 0
        %2096 = vmatprep.subr.bf16.mxu0 0
        %2097 = vmatpush1.bf16.msra.mxu0 0
        %2098 = vmatprep.mubr.bf16.mxu0 0
        %2099 = vmatmul.mubr.bf16.gmra.mrb[0].mxu0 %v2019
        %v2100 = vpop.f32.mrb[0].mxu0
        %v2101 = vadd.f32 %v359, %v2100
        %v2102 = vpop.f32.mrb[0].mxu0
        %v2103 = vpop.f32.mrb[0].mxu0
        %v2104 = vadd.f32 %v359, %v2103
        %v2105 = vpop.f32.mrb[0].mxu0
        %2106 = vmatprep.mubr.bf16.mxu0 0
        %2107 = vmatmul.mubr.bf16.gmra.mrb[0].mxu0 %v2022
        %v2108 = vpop.f32.mrb[0].mxu0
        %v2109 = vadd.f32 %v359, %v2108
        %v2110 = vpop.f32.mrb[0].mxu0
        %v2111 = vpop.f32.mrb[0].mxu0
        %v2112 = vadd.f32 %v359, %v2111
        %v2113 = vpop.f32.mrb[0].mxu0
        %2114 = vmatprep.mubr.bf16.mxu0 0
        %2115 = vmatmul.mubr.bf16.gmra.mrb[0].mxu0 %v2025
        %v2116 = vpop.f32.mrb[0].mxu0
        %v2117 = vadd.f32 %v359, %v2116
        %v2118 = vpop.f32.mrb[0].mxu0
        %v2119 = vpop.f32.mrb[0].mxu0
        %v2120 = vadd.f32 %v359, %v2119
        %v2121 = vpop.f32.mrb[0].mxu0
        %2122 = vmatprep.mubr.bf16.mxu0 0
        %2123 = vmatmul.mubr.bf16.gmra.mrb[0].mxu0 %v2028
        %v2124 = vpop.f32.mrb[0].mxu0
        %v2125 = vadd.f32 %v359, %v2124
        %v2126 = vpop.f32.mrb[0].mxu0
        %v2127 = vpop.f32.mrb[0].mxu0
        %v2128 = vadd.f32 %v359, %v2127
        %v2129 = vpop.f32.mrb[0].mxu0
        %2130 = vmatprep.mubr.bf16.mxu0 0
        %2131 = vmatmul.mubr.bf16.gmra.mrb[0].mxu0 %v2031
        %v2132 = vpop.f32.mrb[0].mxu0
        %v2133 = vadd.f32 %v359, %v2132
        %v2134 = vpop.f32.mrb[0].mxu0
        %v2135 = vpop.f32.mrb[0].mxu0
        %v2136 = vadd.f32 %v359, %v2135
        %v2137 = vpop.f32.mrb[0].mxu0
        %2138 = vmatprep.mubr.bf16.mxu0 0
        %2139 = vmatmul.mubr.bf16.gmra.mrb[0].mxu0 %v2034
        %v2140 = vpop.f32.mrb[0].mxu0
        %v2141 = vadd.f32 %v359, %v2140
        %v2142 = vpop.f32.mrb[0].mxu0
        %v2143 = vpop.f32.mrb[0].mxu0
        %v2144 = vadd.f32 %v359, %v2143
        %v2145 = vpop.f32.mrb[0].mxu0
        %2146 = vmatprep.mubr.bf16.mxu0 0
        %2147 = vmatmul.mubr.bf16.gmra.mrb[0].mxu0 %v2037
        %v2148 = vpop.f32.mrb[0].mxu0
        %v2149 = vadd.f32 %v359, %v2148
        %v2150 = vpop.f32.mrb[0].mxu0
        %v2151 = vpop.f32.mrb[0].mxu0
        %v2152 = vadd.f32 %v359, %v2151
        %v2153 = vpop.f32.mrb[0].mxu0
        %2154 = vmatprep.mubr.bf16.mxu0 0
        %2155 = vmatmul.mubr.bf16.gmra.mrb[0].mxu0 %v2040
        %v2156 = vpop.f32.mrb[0].mxu0
        %v2157 = vadd.f32 %v359, %v2156
        %v2158 = vpop.f32.mrb[0].mxu0
        %v2159 = vpop.f32.mrb[0].mxu0
        %v2160 = vadd.f32 %v359, %v2159
        %v2161 = vpop.f32.mrb[0].mxu0
        %2162 = vmatprep.mubr.bf16.mxu0 0
        %2163 = vmatmul.mubr.bf16.gmra.mrb[0].mxu0 %v2043
        %v2164 = vpop.f32.mrb[0].mxu0
        %v2165 = vadd.f32 %v359, %v2164
        %v2166 = vpop.f32.mrb[0].mxu0
        %v2167 = vpop.f32.mrb[0].mxu0
        %v2168 = vadd.f32 %v359, %v2167
        %v2169 = vpop.f32.mrb[0].mxu0
        %2170 = vmatprep.mubr.bf16.mxu0 0
        %2171 = vmatmul.mubr.bf16.gmra.mrb[0].mxu0 %v2046
        %v2172 = vpop.f32.mrb[0].mxu0
        %v2173 = vadd.f32 %v359, %v2172
        %v2174 = vpop.f32.mrb[0].mxu0
        %v2175 = vpop.f32.mrb[0].mxu0
        %v2176 = vadd.f32 %v359, %v2175
        %v2177 = vpop.f32.mrb[0].mxu0
        %2178 = vmatprep.mubr.bf16.mxu0 0
        %2179 = vmatmul.mubr.bf16.gmra.mrb[0].mxu0 %v2049
        %v2180 = vpop.f32.mrb[0].mxu0
        %v2181 = vadd.f32 %v359, %v2180
        %v2182 = vpop.f32.mrb[0].mxu0
        %v2183 = vpop.f32.mrb[0].mxu0
        %v2184 = vadd.f32 %v359, %v2183
        %v2185 = vpop.f32.mrb[0].mxu0
        %2186 = vmatprep.mubr.bf16.mxu0 0
        %2187 = vmatmul.mubr.bf16.gmra.mrb[0].mxu0 %v2052
        %v2188 = vpop.f32.mrb[0].mxu0
        %v2189 = vadd.f32 %v359, %v2188
        %v2190 = vpop.f32.mrb[0].mxu0
        %v2191 = vpop.f32.mrb[0].mxu0
        %v2192 = vadd.f32 %v359, %v2191
        %v2193 = vpop.f32.mrb[0].mxu0
        %2194 = vmatprep.mubr.bf16.mxu0 0
        %2195 = vmatmul.mubr.bf16.gmra.mrb[0].mxu0 %v2055
        %v2196 = vpop.f32.mrb[0].mxu0
        %v2197 = vadd.f32 %v359, %v2196
        %v2198 = vpop.f32.mrb[0].mxu0
        %v2199 = vpop.f32.mrb[0].mxu0
        %v2200 = vadd.f32 %v359, %v2199
        %v2201 = vpop.f32.mrb[0].mxu0
        %2202 = vmatprep.mubr.bf16.mxu0 0
        %2203 = vmatmul.mubr.bf16.gmra.mrb[0].mxu0 %v2058
        %v2204 = vpop.f32.mrb[0].mxu0
        %v2205 = vadd.f32 %v359, %v2204
        %v2206 = vpop.f32.mrb[0].mxu0
        %v2207 = vpop.f32.mrb[0].mxu0
        %v2208 = vadd.f32 %v359, %v2207
        %v2209 = vpop.f32.mrb[0].mxu0
        %2210 = vmatprep.mubr.bf16.mxu0 0
        %2211 = vmatmul.mubr.bf16.gmra.mrb[0].mxu0 %v2061
        %v2212 = vpop.f32.mrb[0].mxu0
        %v2213 = vadd.f32 %v359, %v2212
        %v2214 = vpop.f32.mrb[0].mxu0
        %v2215 = vpop.f32.mrb[0].mxu0
        %v2216 = vadd.f32 %v359, %v2215
        %v2217 = vpop.f32.mrb[0].mxu0
        %2218 = vmatprep.mubr.bf16.mxu0 0
        %2219 = vmatmul.mubr.bf16.gmra.mrb[0].mxu0 %v2064
        %v2220 = vpop.f32.mrb[0].mxu0
        %v2221 = vadd.f32 %v359, %v2220
        %v2222 = vpop.f32.mrb[0].mxu0
        %v2223 = vpop.f32.mrb[0].mxu0
        %v2224 = vadd.f32 %v359, %v2223
        %v2225 = vpop.f32.mrb[0].mxu0
        %2226 = vdwg.mxu0
        %v2227 = vmax.f32 %v2101, 0.0
        %v2228 = vmax.f32 %v2104, 0.0
        %v2229 = vmax.f32 %v2109, 0.0
        %v2230 = vmax.f32 %v2112, 0.0
        %v2231 = vmax.f32 %v2117, 0.0
        %v2232 = vmax.f32 %v2120, 0.0
        %v2233 = vmax.f32 %v2125, 0.0
        %v2234 = vmax.f32 %v2128, 0.0
        %v2235 = vmax.f32 %v2133, 0.0
        %v2236 = vmax.f32 %v2136, 0.0
        %v2237 = vmax.f32 %v2141, 0.0
        %v2238 = vmax.f32 %v2144, 0.0
        %v2239 = vmax.f32 %v2149, 0.0
        %v2240 = vmax.f32 %v2152, 0.0
        %v2241 = vmax.f32 %v2157, 0.0
        %v2242 = vmax.f32 %v2160, 0.0
        %v2243 = vmax.f32 %v2165, 0.0
        %v2244 = vmax.f32 %v2168, 0.0
        %v2245 = vmax.f32 %v2173, 0.0
        %v2246 = vmax.f32 %v2176, 0.0
        %v2247 = vmax.f32 %v2181, 0.0
        %v2248 = vmax.f32 %v2184, 0.0
        %v2249 = vmax.f32 %v2189, 0.0
        %v2250 = vmax.f32 %v2192, 0.0
        %v2251 = vmax.f32 %v2197, 0.0
        %v2252 = vmax.f32 %v2200, 0.0
        %v2253 = vmax.f32 %v2205, 0.0
        %v2254 = vmax.f32 %v2208, 0.0
        %v2255 = vmax.f32 %v2213, 0.0
        %v2256 = vmax.f32 %v2216, 0.0
        %v2257 = vmax.f32 %v2221, 0.0
        %v2258 = vmax.f32 %v2224, 0.0
        %v2259 = vadd.f32 %v2227, %v2228
        %v2260 = vadd.f32 %v2259, %v2229
        %v2261 = vadd.f32 %v2260, %v2230
        %v2262 = vadd.f32 %v2261, %v2231
        %v2263 = vadd.f32 %v2262, %v2232
        %v2264 = vadd.f32 %v2263, %v2233
        %v2265 = vadd.f32 %v2264, %v2234
        %v2266 = vadd.f32 %v2265, %v2235
        %v2267 = vadd.f32 %v2266, %v2236
        %v2268 = vadd.f32 %v2267, %v2237
        %v2269 = vadd.f32 %v2268, %v2238
        %v2270 = vadd.f32 %v2269, %v2239
        %v2271 = vadd.f32 %v2270, %v2240
        %v2272 = vadd.f32 %v2271, %v2241
        %v2273 = vadd.f32 %v2272, %v2242
        %v2274 = vadd.f32 %v2273, %v2243
        %v2275 = vadd.f32 %v2274, %v2244
        %v2276 = vadd.f32 %v2275, %v2245
        %v2277 = vadd.f32 %v2276, %v2246
        %v2278 = vadd.f32 %v2277, %v2247
        %v2279 = vadd.f32 %v2278, %v2248
        %v2280 = vadd.f32 %v2279, %v2249
        %v2281 = vadd.f32 %v2280, %v2250
        %v2282 = vadd.f32 %v2281, %v2251
        %v2283 = vadd.f32 %v2282, %v2252
        %v2284 = vadd.f32 %v2283, %v2253
        %v2285 = vadd.f32 %v2284, %v2254
        %v2286 = vadd.f32 %v2285, %v2255
        %v2287 = vadd.f32 %v2286, %v2256
        %v2288 = vadd.f32 %v2287, %v2257
        %v2289 = vadd.f32 %v2288, %v2258
        %v2290 = vrot.slane %v2289, 4
        %v2291 = vadd.f32 %v2289, %v2290
        %v2292 = vrot.slane %v2291, 2
        %v2293 = vadd.f32 %v2291, %v2292
        %v2294 = vrot.slane %v2293, 1
        %v2295 = vadd.f32 %v2293, %v2294
        %2296 = vst [vmem:[#allocation2 + $0x4] sm:$0x1] %v2295
        %v2297 = vld [vmem:[%s315 + $0x280] sm:$0xf]
        %v2298 = vld [vmem:[%s315 + $0x284] sm:$0xf]
        %v2299 = vld [vmem:[%s315 + $0x288] sm:$0xf]
        %v2300 = vld [vmem:[%s315 + $0x28c] sm:$0xf]
        %v2301 = vld [vmem:[%s315 + $0x290] sm:$0xf]
        %v2302 = vld [vmem:[%s315 + $0x294] sm:$0xf]
        %v2303 = vld [vmem:[%s315 + $0x298] sm:$0xf]
        %v2304 = vld [vmem:[%s315 + $0x29c] sm:$0xf]
        %v2305 = vld [vmem:[%s315 + $0x2a0] sm:$0xf]
        %v2306 = vld [vmem:[%s315 + $0x2a4] sm:$0xf]
        %v2307 = vld [vmem:[%s315 + $0x2a8] sm:$0xf]
        %v2308 = vld [vmem:[%s315 + $0x2ac] sm:$0xf]
        %v2309 = vld [vmem:[%s315 + $0x2b0] sm:$0xf]
        %v2310 = vld [vmem:[%s315 + $0x2b4] sm:$0xf]
        %v2311 = vld [vmem:[%s315 + $0x2b8] sm:$0xf]
        %v2312 = vld [vmem:[%s315 + $0x2bc] sm:$0xf]
        %v2313 = vld [vmem:[%s315 + $0x2c0] sm:$0xf]
        %v2314 = vld [vmem:[%s315 + $0x2c4] sm:$0xf]
        %v2315 = vld [vmem:[%s315 + $0x2c8] sm:$0xf]
        %v2316 = vld [vmem:[%s315 + $0x2cc] sm:$0xf]
        %v2317 = vld [vmem:[%s315 + $0x2d0] sm:$0xf]
        %v2318 = vld [vmem:[%s315 + $0x2d4] sm:$0xf]
        %v2319 = vld [vmem:[%s315 + $0x2d8] sm:$0xf]
        %v2320 = vld [vmem:[%s315 + $0x2dc] sm:$0xf]
        %v2321 = vld [vmem:[%s315 + $0x2e0] sm:$0xf]
        %v2322 = vld [vmem:[%s315 + $0x2e4] sm:$0xf]
        %v2323 = vld [vmem:[%s315 + $0x2e8] sm:$0xf]
        %v2324 = vld [vmem:[%s315 + $0x2ec] sm:$0xf]
        %v2325 = vld [vmem:[%s315 + $0x2f0] sm:$0xf]
        %v2326 = vld [vmem:[%s315 + $0x2f4] sm:$0xf]
        %v2327 = vld [vmem:[%s315 + $0x2f8] sm:$0xf]
        %v2328 = vld [vmem:[%s315 + $0x2fc] sm:$0xf]
        %v2361 = vunpack.c.l.b16 %v2297
        %v2362 = vunpack.c.l.b16 %v2298
        %v2363 = vunpack.c.l.b16 %v2299
        %v2364 = vunpack.c.l.b16 %v2300
        %v2365 = vunpack.c.l.b16 %v2301
        %v2366 = vunpack.c.l.b16 %v2302
        %v2367 = vunpack.c.l.b16 %v2303
        %v2368 = vunpack.c.l.b16 %v2304
        %v2369 = vunpack.c.l.b16 %v2305
        %v2370 = vunpack.c.l.b16 %v2306
        %v2371 = vunpack.c.l.b16 %v2307
        %v2372 = vunpack.c.l.b16 %v2308
        %v2373 = vunpack.c.l.b16 %v2309
        %v2374 = vunpack.c.l.b16 %v2310
        %v2375 = vunpack.c.l.b16 %v2311
        %v2376 = vunpack.c.l.b16 %v2312
        %v2377 = vunpack.c.l.b16 %v2313
        %v2378 = vunpack.c.l.b16 %v2314
        %v2379 = vunpack.c.l.b16 %v2315
        %v2380 = vunpack.c.l.b16 %v2316
        %v2381 = vunpack.c.l.b16 %v2317
        %v2382 = vunpack.c.l.b16 %v2318
        %v2383 = vunpack.c.l.b16 %v2319
        %v2384 = vunpack.c.l.b16 %v2320
        %v2385 = vunpack.c.l.b16 %v2321
        %v2386 = vunpack.c.l.b16 %v2322
        %v2387 = vunpack.c.l.b16 %v2323
        %v2388 = vunpack.c.l.b16 %v2324
        %v2389 = vunpack.c.l.b16 %v2325
        %v2390 = vunpack.c.l.b16 %v2326
        %v2391 = vunpack.c.l.b16 %v2327
        %v2392 = vunpack.c.l.b16 %v2328
        %v2393 = vpack.c.b16 %v2362, %v2361
        %v2394 = vpack.c.b16 %v2364, %v2363
        %v2395 = vpack.c.b16 %v2366, %v2365
        %v2396 = vpack.c.b16 %v2368, %v2367
        %v2397 = vpack.c.b16 %v2370, %v2369
        %v2398 = vpack.c.b16 %v2372, %v2371
        %v2399 = vpack.c.b16 %v2374, %v2373
        %v2400 = vpack.c.b16 %v2376, %v2375
        %v2401 = vpack.c.b16 %v2378, %v2377
        %v2402 = vpack.c.b16 %v2380, %v2379
        %v2403 = vpack.c.b16 %v2382, %v2381
        %v2404 = vpack.c.b16 %v2384, %v2383
        %v2405 = vpack.c.b16 %v2386, %v2385
        %v2406 = vpack.c.b16 %v2388, %v2387
        %v2407 = vpack.c.b16 %v2390, %v2389
        %v2408 = vpack.c.b16 %v2392, %v2391
        %v2410 = vsel %vm453, %v2393, 0
        %v2413 = vsel %vm453, %v2394, 0
        %v2416 = vsel %vm453, %v2395, 0
        %v2419 = vsel %vm453, %v2396, 0
        %v2422 = vsel %vm453, %v2397, 0
        %v2425 = vsel %vm453, %v2398, 0
        %v2428 = vsel %vm453, %v2399, 0
        %v2431 = vsel %vm453, %v2400, 0
        %v2434 = vsel %vm453, %v2401, 0
        %v2437 = vsel %vm453, %v2402, 0
        %v2440 = vsel %vm453, %v2403, 0
        %v2443 = vsel %vm453, %v2404, 0
        %v2446 = vsel %vm453, %v2405, 0
        %v2449 = vsel %vm453, %v2406, 0
        %v2452 = vsel %vm453, %v2407, 0
        %v2455 = vsel %vm453, %v2408, 0
        %2457 = vmatprep.subr.bf16.mxu0 0
        %2458 = vmatpush1.bf16.msra.mxu0 %v449
        %2459 = vmatprep.subr.bf16.mxu0 0
        %2460 = vmatpush1.bf16.msra.mxu0 %v450
        %2461 = vmatprep.subr.bf16.mxu0 0
        %2462 = vmatpush1.bf16.msra.mxu0 0
        %2463 = vmatprep.subr.bf16.mxu0 0
        %2464 = vmatpush1.bf16.msra.mxu0 0
        %2465 = vmatprep.subr.bf16.mxu0 0
        %2466 = vmatpush1.bf16.msra.mxu0 0
        %2467 = vmatprep.subr.bf16.mxu0 0
        %2468 = vmatpush1.bf16.msra.mxu0 0
        %2469 = vmatprep.subr.bf16.mxu0 0
        %2470 = vmatpush1.bf16.msra.mxu0 0
        %2471 = vmatprep.subr.bf16.mxu0 0
        %2472 = vmatpush1.bf16.msra.mxu0 0
        %2473 = vmatprep.subr.bf16.mxu0 0
        %2474 = vmatpush1.bf16.msra.mxu0 0
        %2475 = vmatprep.subr.bf16.mxu0 0
        %2476 = vmatpush1.bf16.msra.mxu0 0
        %2477 = vmatprep.subr.bf16.mxu0 0
        %2478 = vmatpush1.bf16.msra.mxu0 0
        %2479 = vmatprep.subr.bf16.mxu0 0
        %2480 = vmatpush1.bf16.msra.mxu0 0
        %2481 = vmatprep.subr.bf16.mxu0 0
        %2482 = vmatpush1.bf16.msra.mxu0 0
        %2483 = vmatprep.subr.bf16.mxu0 0
        %2484 = vmatpush1.bf16.msra.mxu0 0
        %2485 = vmatprep.subr.bf16.mxu0 0
        %2486 = vmatpush1.bf16.msra.mxu0 0
        %2487 = vmatprep.subr.bf16.mxu0 0
        %2488 = vmatpush1.bf16.msra.mxu0 0
        %2489 = vmatprep.mubr.bf16.mxu0 0
        %2490 = vmatmul.mubr.bf16.gmra.mrb[0].mxu0 %v2410
        %v2491 = vpop.f32.mrb[0].mxu0
        %v2492 = vadd.f32 %v359, %v2491
        %v2493 = vpop.f32.mrb[0].mxu0
        %v2494 = vpop.f32.mrb[0].mxu0
        %v2495 = vadd.f32 %v359, %v2494
        %v2496 = vpop.f32.mrb[0].mxu0
        %2497 = vmatprep.mubr.bf16.mxu0 0
        %2498 = vmatmul.mubr.bf16.gmra.mrb[0].mxu0 %v2413
        %v2499 = vpop.f32.mrb[0].mxu0
        %v2500 = vadd.f32 %v359, %v2499
        %v2501 = vpop.f32.mrb[0].mxu0
        %v2502 = vpop.f32.mrb[0].mxu0
        %v2503 = vadd.f32 %v359, %v2502
        %v2504 = vpop.f32.mrb[0].mxu0
        %2505 = vmatprep.mubr.bf16.mxu0 0
        %2506 = vmatmul.mubr.bf16.gmra.mrb[0].mxu0 %v2416
        %v2507 = vpop.f32.mrb[0].mxu0
        %v2508 = vadd.f32 %v359, %v2507
        %v2509 = vpop.f32.mrb[0].mxu0
        %v2510 = vpop.f32.mrb[0].mxu0
        %v2511 = vadd.f32 %v359, %v2510
        %v2512 = vpop.f32.mrb[0].mxu0
        %2513 = vmatprep.mubr.bf16.mxu0 0
        %2514 = vmatmul.mubr.bf16.gmra.mrb[0].mxu0 %v2419
        %v2515 = vpop.f32.mrb[0].mxu0
        %v2516 = vadd.f32 %v359, %v2515
        %v2517 = vpop.f32.mrb[0].mxu0
        %v2518 = vpop.f32.mrb[0].mxu0
        %v2519 = vadd.f32 %v359, %v2518
        %v2520 = vpop.f32.mrb[0].mxu0
        %2521 = vmatprep.mubr.bf16.mxu0 0
        %2522 = vmatmul.mubr.bf16.gmra.mrb[0].mxu0 %v2422
        %v2523 = vpop.f32.mrb[0].mxu0
        %v2524 = vadd.f32 %v359, %v2523
        %v2525 = vpop.f32.mrb[0].mxu0
        %v2526 = vpop.f32.mrb[0].mxu0
        %v2527 = vadd.f32 %v359, %v2526
        %v2528 = vpop.f32.mrb[0].mxu0
        %2529 = vmatprep.mubr.bf16.mxu0 0
        %2530 = vmatmul.mubr.bf16.gmra.mrb[0].mxu0 %v2425
        %v2531 = vpop.f32.mrb[0].mxu0
        %v2532 = vadd.f32 %v359, %v2531
        %v2533 = vpop.f32.mrb[0].mxu0
        %v2534 = vpop.f32.mrb[0].mxu0
        %v2535 = vadd.f32 %v359, %v2534
        %v2536 = vpop.f32.mrb[0].mxu0
        %2537 = vmatprep.mubr.bf16.mxu0 0
        %2538 = vmatmul.mubr.bf16.gmra.mrb[0].mxu0 %v2428
        %v2539 = vpop.f32.mrb[0].mxu0
        %v2540 = vadd.f32 %v359, %v2539
        %v2541 = vpop.f32.mrb[0].mxu0
        %v2542 = vpop.f32.mrb[0].mxu0
        %v2543 = vadd.f32 %v359, %v2542
        %v2544 = vpop.f32.mrb[0].mxu0
        %2545 = vmatprep.mubr.bf16.mxu0 0
        %2546 = vmatmul.mubr.bf16.gmra.mrb[0].mxu0 %v2431
        %v2547 = vpop.f32.mrb[0].mxu0
        %v2548 = vadd.f32 %v359, %v2547
        %v2549 = vpop.f32.mrb[0].mxu0
        %v2550 = vpop.f32.mrb[0].mxu0
        %v2551 = vadd.f32 %v359, %v2550
        %v2552 = vpop.f32.mrb[0].mxu0
        %2553 = vmatprep.mubr.bf16.mxu0 0
        %2554 = vmatmul.mubr.bf16.gmra.mrb[0].mxu0 %v2434
        %v2555 = vpop.f32.mrb[0].mxu0
        %v2556 = vadd.f32 %v359, %v2555
        %v2557 = vpop.f32.mrb[0].mxu0
        %v2558 = vpop.f32.mrb[0].mxu0
        %v2559 = vadd.f32 %v359, %v2558
        %v2560 = vpop.f32.mrb[0].mxu0
        %2561 = vmatprep.mubr.bf16.mxu0 0
        %2562 = vmatmul.mubr.bf16.gmra.mrb[0].mxu0 %v2437
        %v2563 = vpop.f32.mrb[0].mxu0
        %v2564 = vadd.f32 %v359, %v2563
        %v2565 = vpop.f32.mrb[0].mxu0
        %v2566 = vpop.f32.mrb[0].mxu0
        %v2567 = vadd.f32 %v359, %v2566
        %v2568 = vpop.f32.mrb[0].mxu0
        %2569 = vmatprep.mubr.bf16.mxu0 0
        %2570 = vmatmul.mubr.bf16.gmra.mrb[0].mxu0 %v2440
        %v2571 = vpop.f32.mrb[0].mxu0
        %v2572 = vadd.f32 %v359, %v2571
        %v2573 = vpop.f32.mrb[0].mxu0
        %v2574 = vpop.f32.mrb[0].mxu0
        %v2575 = vadd.f32 %v359, %v2574
        %v2576 = vpop.f32.mrb[0].mxu0
        %2577 = vmatprep.mubr.bf16.mxu0 0
        %2578 = vmatmul.mubr.bf16.gmra.mrb[0].mxu0 %v2443
        %v2579 = vpop.f32.mrb[0].mxu0
        %v2580 = vadd.f32 %v359, %v2579
        %v2581 = vpop.f32.mrb[0].mxu0
        %v2582 = vpop.f32.mrb[0].mxu0
        %v2583 = vadd.f32 %v359, %v2582
        %v2584 = vpop.f32.mrb[0].mxu0
        %2585 = vmatprep.mubr.bf16.mxu0 0
        %2586 = vmatmul.mubr.bf16.gmra.mrb[0].mxu0 %v2446
        %v2587 = vpop.f32.mrb[0].mxu0
        %v2588 = vadd.f32 %v359, %v2587
        %v2589 = vpop.f32.mrb[0].mxu0
        %v2590 = vpop.f32.mrb[0].mxu0
        %v2591 = vadd.f32 %v359, %v2590
        %v2592 = vpop.f32.mrb[0].mxu0
        %2593 = vmatprep.mubr.bf16.mxu0 0
        %2594 = vmatmul.mubr.bf16.gmra.mrb[0].mxu0 %v2449
        %v2595 = vpop.f32.mrb[0].mxu0
        %v2596 = vadd.f32 %v359, %v2595
        %v2597 = vpop.f32.mrb[0].mxu0
        %v2598 = vpop.f32.mrb[0].mxu0
        %v2599 = vadd.f32 %v359, %v2598
        %v2600 = vpop.f32.mrb[0].mxu0
        %2601 = vmatprep.mubr.bf16.mxu0 0
        %2602 = vmatmul.mubr.bf16.gmra.mrb[0].mxu0 %v2452
        %v2603 = vpop.f32.mrb[0].mxu0
        %v2604 = vadd.f32 %v359, %v2603
        %v2605 = vpop.f32.mrb[0].mxu0
        %v2606 = vpop.f32.mrb[0].mxu0
        %v2607 = vadd.f32 %v359, %v2606
        %v2608 = vpop.f32.mrb[0].mxu0
        %2609 = vmatprep.mubr.bf16.mxu0 0
        %2610 = vmatmul.mubr.bf16.gmra.mrb[0].mxu0 %v2455
        %v2611 = vpop.f32.mrb[0].mxu0
        %v2612 = vadd.f32 %v359, %v2611
        %v2613 = vpop.f32.mrb[0].mxu0
        %v2614 = vpop.f32.mrb[0].mxu0
        %v2615 = vadd.f32 %v359, %v2614
        %v2616 = vpop.f32.mrb[0].mxu0
        %2617 = vdwg.mxu0
        %v2618 = vmax.f32 %v2492, 0.0
        %v2619 = vmax.f32 %v2495, 0.0
        %v2620 = vmax.f32 %v2500, 0.0
        %v2621 = vmax.f32 %v2503, 0.0
        %v2622 = vmax.f32 %v2508, 0.0
        %v2623 = vmax.f32 %v2511, 0.0
        %v2624 = vmax.f32 %v2516, 0.0
        %v2625 = vmax.f32 %v2519, 0.0
        %v2626 = vmax.f32 %v2524, 0.0
        %v2627 = vmax.f32 %v2527, 0.0
        %v2628 = vmax.f32 %v2532, 0.0
        %v2629 = vmax.f32 %v2535, 0.0
        %v2630 = vmax.f32 %v2540, 0.0
        %v2631 = vmax.f32 %v2543, 0.0
        %v2632 = vmax.f32 %v2548, 0.0
        %v2633 = vmax.f32 %v2551, 0.0
        %v2634 = vmax.f32 %v2556, 0.0
        %v2635 = vmax.f32 %v2559, 0.0
        %v2636 = vmax.f32 %v2564, 0.0
        %v2637 = vmax.f32 %v2567, 0.0
        %v2638 = vmax.f32 %v2572, 0.0
        %v2639 = vmax.f32 %v2575, 0.0
        %v2640 = vmax.f32 %v2580, 0.0
        %v2641 = vmax.f32 %v2583, 0.0
        %v2642 = vmax.f32 %v2588, 0.0
        %v2643 = vmax.f32 %v2591, 0.0
        %v2644 = vmax.f32 %v2596, 0.0
        %v2645 = vmax.f32 %v2599, 0.0
        %v2646 = vmax.f32 %v2604, 0.0
        %v2647 = vmax.f32 %v2607, 0.0
        %v2648 = vmax.f32 %v2612, 0.0
        %v2649 = vmax.f32 %v2615, 0.0
        %v2650 = vadd.f32 %v2618, %v2619
        %v2651 = vadd.f32 %v2650, %v2620
        %v2652 = vadd.f32 %v2651, %v2621
        %v2653 = vadd.f32 %v2652, %v2622
        %v2654 = vadd.f32 %v2653, %v2623
        %v2655 = vadd.f32 %v2654, %v2624
        %v2656 = vadd.f32 %v2655, %v2625
        %v2657 = vadd.f32 %v2656, %v2626
        %v2658 = vadd.f32 %v2657, %v2627
        %v2659 = vadd.f32 %v2658, %v2628
        %v2660 = vadd.f32 %v2659, %v2629
        %v2661 = vadd.f32 %v2660, %v2630
        %v2662 = vadd.f32 %v2661, %v2631
        %v2663 = vadd.f32 %v2662, %v2632
        %v2664 = vadd.f32 %v2663, %v2633
        %v2665 = vadd.f32 %v2664, %v2634
        %v2666 = vadd.f32 %v2665, %v2635
        %v2667 = vadd.f32 %v2666, %v2636
        %v2668 = vadd.f32 %v2667, %v2637
        %v2669 = vadd.f32 %v2668, %v2638
        %v2670 = vadd.f32 %v2669, %v2639
        %v2671 = vadd.f32 %v2670, %v2640
        %v2672 = vadd.f32 %v2671, %v2641
        %v2673 = vadd.f32 %v2672, %v2642
        %v2674 = vadd.f32 %v2673, %v2643
        %v2675 = vadd.f32 %v2674, %v2644
        %v2676 = vadd.f32 %v2675, %v2645
        %v2677 = vadd.f32 %v2676, %v2646
        %v2678 = vadd.f32 %v2677, %v2647
        %v2679 = vadd.f32 %v2678, %v2648
        %v2680 = vadd.f32 %v2679, %v2649
        %v2681 = vrot.slane %v2680, 4
        %v2682 = vadd.f32 %v2680, %v2681
        %v2683 = vrot.slane %v2682, 2
        %v2684 = vadd.f32 %v2682, %v2683
        %v2685 = vrot.slane %v2684, 1
        %v2686 = vadd.f32 %v2684, %v2685
        %2687 = vst [vmem:[#allocation2 + $0x5] sm:$0x1] %v2686
        %v2688 = vld [vmem:[%s315 + $0x300] sm:$0xf]
        %v2689 = vld [vmem:[%s315 + $0x304] sm:$0xf]
        %v2690 = vld [vmem:[%s315 + $0x308] sm:$0xf]
        %v2691 = vld [vmem:[%s315 + $0x30c] sm:$0xf]
        %v2692 = vld [vmem:[%s315 + $0x310] sm:$0xf]
        %v2693 = vld [vmem:[%s315 + $0x314] sm:$0xf]
        %v2694 = vld [vmem:[%s315 + $0x318] sm:$0xf]
        %v2695 = vld [vmem:[%s315 + $0x31c] sm:$0xf]
        %v2696 = vld [vmem:[%s315 + $0x320] sm:$0xf]
        %v2697 = vld [vmem:[%s315 + $0x324] sm:$0xf]
        %v2698 = vld [vmem:[%s315 + $0x328] sm:$0xf]
        %v2699 = vld [vmem:[%s315 + $0x32c] sm:$0xf]
        %v2700 = vld [vmem:[%s315 + $0x330] sm:$0xf]
        %v2701 = vld [vmem:[%s315 + $0x334] sm:$0xf]
        %v2702 = vld [vmem:[%s315 + $0x338] sm:$0xf]
        %v2703 = vld [vmem:[%s315 + $0x33c] sm:$0xf]
        %v2704 = vld [vmem:[%s315 + $0x340] sm:$0xf]
        %v2705 = vld [vmem:[%s315 + $0x344] sm:$0xf]
        %v2706 = vld [vmem:[%s315 + $0x348] sm:$0xf]
        %v2707 = vld [vmem:[%s315 + $0x34c] sm:$0xf]
        %v2708 = vld [vmem:[%s315 + $0x350] sm:$0xf]
        %v2709 = vld [vmem:[%s315 + $0x354] sm:$0xf]
        %v2710 = vld [vmem:[%s315 + $0x358] sm:$0xf]
        %v2711 = vld [vmem:[%s315 + $0x35c] sm:$0xf]
        %v2712 = vld [vmem:[%s315 + $0x360] sm:$0xf]
        %v2713 = vld [vmem:[%s315 + $0x364] sm:$0xf]
        %v2714 = vld [vmem:[%s315 + $0x368] sm:$0xf]
        %v2715 = vld [vmem:[%s315 + $0x36c] sm:$0xf]
        %v2716 = vld [vmem:[%s315 + $0x370] sm:$0xf]
        %v2717 = vld [vmem:[%s315 + $0x374] sm:$0xf]
        %v2718 = vld [vmem:[%s315 + $0x378] sm:$0xf]
        %v2719 = vld [vmem:[%s315 + $0x37c] sm:$0xf]
        %v2752 = vunpack.c.l.b16 %v2688
        %v2753 = vunpack.c.l.b16 %v2689
        %v2754 = vunpack.c.l.b16 %v2690
        %v2755 = vunpack.c.l.b16 %v2691
        %v2756 = vunpack.c.l.b16 %v2692
        %v2757 = vunpack.c.l.b16 %v2693
        %v2758 = vunpack.c.l.b16 %v2694
        %v2759 = vunpack.c.l.b16 %v2695
        %v2760 = vunpack.c.l.b16 %v2696
        %v2761 = vunpack.c.l.b16 %v2697
        %v2762 = vunpack.c.l.b16 %v2698
        %v2763 = vunpack.c.l.b16 %v2699
        %v2764 = vunpack.c.l.b16 %v2700
        %v2765 = vunpack.c.l.b16 %v2701
        %v2766 = vunpack.c.l.b16 %v2702
        %v2767 = vunpack.c.l.b16 %v2703
        %v2768 = vunpack.c.l.b16 %v2704
        %v2769 = vunpack.c.l.b16 %v2705
        %v2770 = vunpack.c.l.b16 %v2706
        %v2771 = vunpack.c.l.b16 %v2707
        %v2772 = vunpack.c.l.b16 %v2708
        %v2773 = vunpack.c.l.b16 %v2709
        %v2774 = vunpack.c.l.b16 %v2710
        %v2775 = vunpack.c.l.b16 %v2711
        %v2776 = vunpack.c.l.b16 %v2712
        %v2777 = vunpack.c.l.b16 %v2713
        %v2778 = vunpack.c.l.b16 %v2714
        %v2779 = vunpack.c.l.b16 %v2715
        %v2780 = vunpack.c.l.b16 %v2716
        %v2781 = vunpack.c.l.b16 %v2717
        %v2782 = vunpack.c.l.b16 %v2718
        %v2783 = vunpack.c.l.b16 %v2719
        %v2784 = vpack.c.b16 %v2753, %v2752
        %v2785 = vpack.c.b16 %v2755, %v2754
        %v2786 = vpack.c.b16 %v2757, %v2756
        %v2787 = vpack.c.b16 %v2759, %v2758
        %v2788 = vpack.c.b16 %v2761, %v2760
        %v2789 = vpack.c.b16 %v2763, %v2762
        %v2790 = vpack.c.b16 %v2765, %v2764
        %v2791 = vpack.c.b16 %v2767, %v2766
        %v2792 = vpack.c.b16 %v2769, %v2768
        %v2793 = vpack.c.b16 %v2771, %v2770
        %v2794 = vpack.c.b16 %v2773, %v2772
        %v2795 = vpack.c.b16 %v2775, %v2774
        %v2796 = vpack.c.b16 %v2777, %v2776
        %v2797 = vpack.c.b16 %v2779, %v2778
        %v2798 = vpack.c.b16 %v2781, %v2780
        %v2799 = vpack.c.b16 %v2783, %v2782
        %v2801 = vsel %vm453, %v2784, 0
        %v2804 = vsel %vm453, %v2785, 0
        %v2807 = vsel %vm453, %v2786, 0
        %v2810 = vsel %vm453, %v2787, 0
        %v2813 = vsel %vm453, %v2788, 0
        %v2816 = vsel %vm453, %v2789, 0
        %v2819 = vsel %vm453, %v2790, 0
        %v2822 = vsel %vm453, %v2791, 0
        %v2825 = vsel %vm453, %v2792, 0
        %v2828 = vsel %vm453, %v2793, 0
        %v2831 = vsel %vm453, %v2794, 0
        %v2834 = vsel %vm453, %v2795, 0
        %v2837 = vsel %vm453, %v2796, 0
        %v2840 = vsel %vm453, %v2797, 0
        %v2843 = vsel %vm453, %v2798, 0
        %v2846 = vsel %vm453, %v2799, 0
        %2848 = vmatprep.subr.bf16.mxu0 0
        %2849 = vmatpush1.bf16.msra.mxu0 %v449
        %2850 = vmatprep.subr.bf16.mxu0 0
        %2851 = vmatpush1.bf16.msra.mxu0 %v450
        %2852 = vmatprep.subr.bf16.mxu0 0
        %2853 = vmatpush1.bf16.msra.mxu0 0
        %2854 = vmatprep.subr.bf16.mxu0 0
        %2855 = vmatpush1.bf16.msra.mxu0 0
        %2856 = vmatprep.subr.bf16.mxu0 0
        %2857 = vmatpush1.bf16.msra.mxu0 0
        %2858 = vmatprep.subr.bf16.mxu0 0
        %2859 = vmatpush1.bf16.msra.mxu0 0
        %2860 = vmatprep.subr.bf16.mxu0 0
        %2861 = vmatpush1.bf16.msra.mxu0 0
        %2862 = vmatprep.subr.bf16.mxu0 0
        %2863 = vmatpush1.bf16.msra.mxu0 0
        %2864 = vmatprep.subr.bf16.mxu0 0
        %2865 = vmatpush1.bf16.msra.mxu0 0
        %2866 = vmatprep.subr.bf16.mxu0 0
        %2867 = vmatpush1.bf16.msra.mxu0 0
        %2868 = vmatprep.subr.bf16.mxu0 0
        %2869 = vmatpush1.bf16.msra.mxu0 0
        %2870 = vmatprep.subr.bf16.mxu0 0
        %2871 = vmatpush1.bf16.msra.mxu0 0
        %2872 = vmatprep.subr.bf16.mxu0 0
        %2873 = vmatpush1.bf16.msra.mxu0 0
        %2874 = vmatprep.subr.bf16.mxu0 0
        %2875 = vmatpush1.bf16.msra.mxu0 0
        %2876 = vmatprep.subr.bf16.mxu0 0
        %2877 = vmatpush1.bf16.msra.mxu0 0
        %2878 = vmatprep.subr.bf16.mxu0 0
        %2879 = vmatpush1.bf16.msra.mxu0 0
        %2880 = vmatprep.mubr.bf16.mxu0 0
        %2881 = vmatmul.mubr.bf16.gmra.mrb[0].mxu0 %v2801
        %v2882 = vpop.f32.mrb[0].mxu0
        %v2883 = vadd.f32 %v359, %v2882
        %v2884 = vpop.f32.mrb[0].mxu0
        %v2885 = vpop.f32.mrb[0].mxu0
        %v2886 = vadd.f32 %v359, %v2885
        %v2887 = vpop.f32.mrb[0].mxu0
        %2888 = vmatprep.mubr.bf16.mxu0 0
        %2889 = vmatmul.mubr.bf16.gmra.mrb[0].mxu0 %v2804
        %v2890 = vpop.f32.mrb[0].mxu0
        %v2891 = vadd.f32 %v359, %v2890
        %v2892 = vpop.f32.mrb[0].mxu0
        %v2893 = vpop.f32.mrb[0].mxu0
        %v2894 = vadd.f32 %v359, %v2893
        %v2895 = vpop.f32.mrb[0].mxu0
        %2896 = vmatprep.mubr.bf16.mxu0 0
        %2897 = vmatmul.mubr.bf16.gmra.mrb[0].mxu0 %v2807
        %v2898 = vpop.f32.mrb[0].mxu0
        %v2899 = vadd.f32 %v359, %v2898
        %v2900 = vpop.f32.mrb[0].mxu0
        %v2901 = vpop.f32.mrb[0].mxu0
        %v2902 = vadd.f32 %v359, %v2901
        %v2903 = vpop.f32.mrb[0].mxu0
        %2904 = vmatprep.mubr.bf16.mxu0 0
        %2905 = vmatmul.mubr.bf16.gmra.mrb[0].mxu0 %v2810
        %v2906 = vpop.f32.mrb[0].mxu0
        %v2907 = vadd.f32 %v359, %v2906
        %v2908 = vpop.f32.mrb[0].mxu0
        %v2909 = vpop.f32.mrb[0].mxu0
        %v2910 = vadd.f32 %v359, %v2909
        %v2911 = vpop.f32.mrb[0].mxu0
        %2912 = vmatprep.mubr.bf16.mxu0 0
        %2913 = vmatmul.mubr.bf16.gmra.mrb[0].mxu0 %v2813
        %v2914 = vpop.f32.mrb[0].mxu0
        %v2915 = vadd.f32 %v359, %v2914
        %v2916 = vpop.f32.mrb[0].mxu0
        %v2917 = vpop.f32.mrb[0].mxu0
        %v2918 = vadd.f32 %v359, %v2917
        %v2919 = vpop.f32.mrb[0].mxu0
        %2920 = vmatprep.mubr.bf16.mxu0 0
        %2921 = vmatmul.mubr.bf16.gmra.mrb[0].mxu0 %v2816
        %v2922 = vpop.f32.mrb[0].mxu0
        %v2923 = vadd.f32 %v359, %v2922
        %v2924 = vpop.f32.mrb[0].mxu0
        %v2925 = vpop.f32.mrb[0].mxu0
        %v2926 = vadd.f32 %v359, %v2925
        %v2927 = vpop.f32.mrb[0].mxu0
        %2928 = vmatprep.mubr.bf16.mxu0 0
        %2929 = vmatmul.mubr.bf16.gmra.mrb[0].mxu0 %v2819
        %v2930 = vpop.f32.mrb[0].mxu0
        %v2931 = vadd.f32 %v359, %v2930
        %v2932 = vpop.f32.mrb[0].mxu0
        %v2933 = vpop.f32.mrb[0].mxu0
        %v2934 = vadd.f32 %v359, %v2933
        %v2935 = vpop.f32.mrb[0].mxu0
        %2936 = vmatprep.mubr.bf16.mxu0 0
        %2937 = vmatmul.mubr.bf16.gmra.mrb[0].mxu0 %v2822
        %v2938 = vpop.f32.mrb[0].mxu0
        %v2939 = vadd.f32 %v359, %v2938
        %v2940 = vpop.f32.mrb[0].mxu0
        %v2941 = vpop.f32.mrb[0].mxu0
        %v2942 = vadd.f32 %v359, %v2941
        %v2943 = vpop.f32.mrb[0].mxu0
        %2944 = vmatprep.mubr.bf16.mxu0 0
        %2945 = vmatmul.mubr.bf16.gmra.mrb[0].mxu0 %v2825
        %v2946 = vpop.f32.mrb[0].mxu0
        %v2947 = vadd.f32 %v359, %v2946
        %v2948 = vpop.f32.mrb[0].mxu0
        %v2949 = vpop.f32.mrb[0].mxu0
        %v2950 = vadd.f32 %v359, %v2949
        %v2951 = vpop.f32.mrb[0].mxu0
        %2952 = vmatprep.mubr.bf16.mxu0 0
        %2953 = vmatmul.mubr.bf16.gmra.mrb[0].mxu0 %v2828
        %v2954 = vpop.f32.mrb[0].mxu0
        %v2955 = vadd.f32 %v359, %v2954
        %v2956 = vpop.f32.mrb[0].mxu0
        %v2957 = vpop.f32.mrb[0].mxu0
        %v2958 = vadd.f32 %v359, %v2957
        %v2959 = vpop.f32.mrb[0].mxu0
        %2960 = vmatprep.mubr.bf16.mxu0 0
        %2961 = vmatmul.mubr.bf16.gmra.mrb[0].mxu0 %v2831
        %v2962 = vpop.f32.mrb[0].mxu0
        %v2963 = vadd.f32 %v359, %v2962
        %v2964 = vpop.f32.mrb[0].mxu0
        %v2965 = vpop.f32.mrb[0].mxu0
        %v2966 = vadd.f32 %v359, %v2965
        %v2967 = vpop.f32.mrb[0].mxu0
        %2968 = vmatprep.mubr.bf16.mxu0 0
        %2969 = vmatmul.mubr.bf16.gmra.mrb[0].mxu0 %v2834
        %v2970 = vpop.f32.mrb[0].mxu0
        %v2971 = vadd.f32 %v359, %v2970
        %v2972 = vpop.f32.mrb[0].mxu0
        %v2973 = vpop.f32.mrb[0].mxu0
        %v2974 = vadd.f32 %v359, %v2973
        %v2975 = vpop.f32.mrb[0].mxu0
        %2976 = vmatprep.mubr.bf16.mxu0 0
        %2977 = vmatmul.mubr.bf16.gmra.mrb[0].mxu0 %v2837
        %v2978 = vpop.f32.mrb[0].mxu0
        %v2979 = vadd.f32 %v359, %v2978
        %v2980 = vpop.f32.mrb[0].mxu0
        %v2981 = vpop.f32.mrb[0].mxu0
        %v2982 = vadd.f32 %v359, %v2981
        %v2983 = vpop.f32.mrb[0].mxu0
        %2984 = vmatprep.mubr.bf16.mxu0 0
        %2985 = vmatmul.mubr.bf16.gmra.mrb[0].mxu0 %v2840
        %v2986 = vpop.f32.mrb[0].mxu0
        %v2987 = vadd.f32 %v359, %v2986
        %v2988 = vpop.f32.mrb[0].mxu0
        %v2989 = vpop.f32.mrb[0].mxu0
        %v2990 = vadd.f32 %v359, %v2989
        %v2991 = vpop.f32.mrb[0].mxu0
        %2992 = vmatprep.mubr.bf16.mxu0 0
        %2993 = vmatmul.mubr.bf16.gmra.mrb[0].mxu0 %v2843
        %v2994 = vpop.f32.mrb[0].mxu0
        %v2995 = vadd.f32 %v359, %v2994
        %v2996 = vpop.f32.mrb[0].mxu0
        %v2997 = vpop.f32.mrb[0].mxu0
        %v2998 = vadd.f32 %v359, %v2997
        %v2999 = vpop.f32.mrb[0].mxu0
        %3000 = vmatprep.mubr.bf16.mxu0 0
        %3001 = vmatmul.mubr.bf16.gmra.mrb[0].mxu0 %v2846
        %v3002 = vpop.f32.mrb[0].mxu0
        %v3003 = vadd.f32 %v359, %v3002
        %v3004 = vpop.f32.mrb[0].mxu0
        %v3005 = vpop.f32.mrb[0].mxu0
        %v3006 = vadd.f32 %v359, %v3005
        %v3007 = vpop.f32.mrb[0].mxu0
        %3008 = vdwg.mxu0
        %v3009 = vmax.f32 %v2883, 0.0
        %v3010 = vmax.f32 %v2886, 0.0
        %v3011 = vmax.f32 %v2891, 0.0
        %v3012 = vmax.f32 %v2894, 0.0
        %v3013 = vmax.f32 %v2899, 0.0
        %v3014 = vmax.f32 %v2902, 0.0
        %v3015 = vmax.f32 %v2907, 0.0
        %v3016 = vmax.f32 %v2910, 0.0
        %v3017 = vmax.f32 %v2915, 0.0
        %v3018 = vmax.f32 %v2918, 0.0
        %v3019 = vmax.f32 %v2923, 0.0
        %v3020 = vmax.f32 %v2926, 0.0
        %v3021 = vmax.f32 %v2931, 0.0
        %v3022 = vmax.f32 %v2934, 0.0
        %v3023 = vmax.f32 %v2939, 0.0
        %v3024 = vmax.f32 %v2942, 0.0
        %v3025 = vmax.f32 %v2947, 0.0
        %v3026 = vmax.f32 %v2950, 0.0
        %v3027 = vmax.f32 %v2955, 0.0
        %v3028 = vmax.f32 %v2958, 0.0
        %v3029 = vmax.f32 %v2963, 0.0
        %v3030 = vmax.f32 %v2966, 0.0
        %v3031 = vmax.f32 %v2971, 0.0
        %v3032 = vmax.f32 %v2974, 0.0
        %v3033 = vmax.f32 %v2979, 0.0
        %v3034 = vmax.f32 %v2982, 0.0
        %v3035 = vmax.f32 %v2987, 0.0
        %v3036 = vmax.f32 %v2990, 0.0
        %v3037 = vmax.f32 %v2995, 0.0
        %v3038 = vmax.f32 %v2998, 0.0
        %v3039 = vmax.f32 %v3003, 0.0
        %v3040 = vmax.f32 %v3006, 0.0
        %v3041 = vadd.f32 %v3009, %v3010
        %v3042 = vadd.f32 %v3041, %v3011
        %v3043 = vadd.f32 %v3042, %v3012
        %v3044 = vadd.f32 %v3043, %v3013
        %v3045 = vadd.f32 %v3044, %v3014
        %v3046 = vadd.f32 %v3045, %v3015
        %v3047 = vadd.f32 %v3046, %v3016
        %v3048 = vadd.f32 %v3047, %v3017
        %v3049 = vadd.f32 %v3048, %v3018
        %v3050 = vadd.f32 %v3049, %v3019
        %v3051 = vadd.f32 %v3050, %v3020
        %v3052 = vadd.f32 %v3051, %v3021
        %v3053 = vadd.f32 %v3052, %v3022
        %v3054 = vadd.f32 %v3053, %v3023
        %v3055 = vadd.f32 %v3054, %v3024
        %v3056 = vadd.f32 %v3055, %v3025
        %v3057 = vadd.f32 %v3056, %v3026
        %v3058 = vadd.f32 %v3057, %v3027
        %v3059 = vadd.f32 %v3058, %v3028
        %v3060 = vadd.f32 %v3059, %v3029
        %v3061 = vadd.f32 %v3060, %v3030
        %v3062 = vadd.f32 %v3061, %v3031
        %v3063 = vadd.f32 %v3062, %v3032
        %v3064 = vadd.f32 %v3063, %v3033
        %v3065 = vadd.f32 %v3064, %v3034
        %v3066 = vadd.f32 %v3065, %v3035
        %v3067 = vadd.f32 %v3066, %v3036
        %v3068 = vadd.f32 %v3067, %v3037
        %v3069 = vadd.f32 %v3068, %v3038
        %v3070 = vadd.f32 %v3069, %v3039
        %v3071 = vadd.f32 %v3070, %v3040
        %v3072 = vrot.slane %v3071, 4
        %v3073 = vadd.f32 %v3071, %v3072
        %v3074 = vrot.slane %v3073, 2
        %v3075 = vadd.f32 %v3073, %v3074
        %v3076 = vrot.slane %v3075, 1
        %v3077 = vadd.f32 %v3075, %v3076
        %3078 = vst [vmem:[#allocation2 + $0x6] sm:$0x1] %v3077
        %v3079 = vld [vmem:[%s315 + $0x380] sm:$0xf]
        %v3080 = vld [vmem:[%s315 + $0x384] sm:$0xf]
        %v3081 = vld [vmem:[%s315 + $0x388] sm:$0xf]
        %v3082 = vld [vmem:[%s315 + $0x38c] sm:$0xf]
        %v3083 = vld [vmem:[%s315 + $0x390] sm:$0xf]
        %v3084 = vld [vmem:[%s315 + $0x394] sm:$0xf]
        %v3085 = vld [vmem:[%s315 + $0x398] sm:$0xf]
        %v3086 = vld [vmem:[%s315 + $0x39c] sm:$0xf]
        %v3087 = vld [vmem:[%s315 + $0x3a0] sm:$0xf]
        %v3088 = vld [vmem:[%s315 + $0x3a4] sm:$0xf]
        %v3089 = vld [vmem:[%s315 + $0x3a8] sm:$0xf]
        %v3090 = vld [vmem:[%s315 + $0x3ac] sm:$0xf]
        %v3091 = vld [vmem:[%s315 + $0x3b0] sm:$0xf]
        %v3092 = vld [vmem:[%s315 + $0x3b4] sm:$0xf]
        %v3093 = vld [vmem:[%s315 + $0x3b8] sm:$0xf]
        %v3094 = vld [vmem:[%s315 + $0x3bc] sm:$0xf]
        %v3095 = vld [vmem:[%s315 + $0x3c0] sm:$0xf]
        %v3096 = vld [vmem:[%s315 + $0x3c4] sm:$0xf]
        %v3097 = vld [vmem:[%s315 + $0x3c8] sm:$0xf]
        %v3098 = vld [vmem:[%s315 + $0x3cc] sm:$0xf]
        %v3099 = vld [vmem:[%s315 + $0x3d0] sm:$0xf]
        %v3100 = vld [vmem:[%s315 + $0x3d4] sm:$0xf]
        %v3101 = vld [vmem:[%s315 + $0x3d8] sm:$0xf]
        %v3102 = vld [vmem:[%s315 + $0x3dc] sm:$0xf]
        %v3103 = vld [vmem:[%s315 + $0x3e0] sm:$0xf]
        %v3104 = vld [vmem:[%s315 + $0x3e4] sm:$0xf]
        %v3105 = vld [vmem:[%s315 + $0x3e8] sm:$0xf]
        %v3106 = vld [vmem:[%s315 + $0x3ec] sm:$0xf]
        %v3107 = vld [vmem:[%s315 + $0x3f0] sm:$0xf]
        %v3108 = vld [vmem:[%s315 + $0x3f4] sm:$0xf]
        %v3109 = vld [vmem:[%s315 + $0x3f8] sm:$0xf]
        %v3110 = vld [vmem:[%s315 + $0x3fc] sm:$0xf]
        %v3143 = vunpack.c.l.b16 %v3079
        %v3144 = vunpack.c.l.b16 %v3080
        %v3145 = vunpack.c.l.b16 %v3081
        %v3146 = vunpack.c.l.b16 %v3082
        %v3147 = vunpack.c.l.b16 %v3083
        %v3148 = vunpack.c.l.b16 %v3084
        %v3149 = vunpack.c.l.b16 %v3085
        %v3150 = vunpack.c.l.b16 %v3086
        %v3151 = vunpack.c.l.b16 %v3087
        %v3152 = vunpack.c.l.b16 %v3088
        %v3153 = vunpack.c.l.b16 %v3089
        %v3154 = vunpack.c.l.b16 %v3090
        %v3155 = vunpack.c.l.b16 %v3091
        %v3156 = vunpack.c.l.b16 %v3092
        %v3157 = vunpack.c.l.b16 %v3093
        %v3158 = vunpack.c.l.b16 %v3094
        %v3159 = vunpack.c.l.b16 %v3095
        %v3160 = vunpack.c.l.b16 %v3096
        %v3161 = vunpack.c.l.b16 %v3097
        %v3162 = vunpack.c.l.b16 %v3098
        %v3163 = vunpack.c.l.b16 %v3099
        %v3164 = vunpack.c.l.b16 %v3100
        %v3165 = vunpack.c.l.b16 %v3101
        %v3166 = vunpack.c.l.b16 %v3102
        %v3167 = vunpack.c.l.b16 %v3103
        %v3168 = vunpack.c.l.b16 %v3104
        %v3169 = vunpack.c.l.b16 %v3105
        %v3170 = vunpack.c.l.b16 %v3106
        %v3171 = vunpack.c.l.b16 %v3107
        %v3172 = vunpack.c.l.b16 %v3108
        %v3173 = vunpack.c.l.b16 %v3109
        %v3174 = vunpack.c.l.b16 %v3110
        %v3175 = vpack.c.b16 %v3144, %v3143
        %v3176 = vpack.c.b16 %v3146, %v3145
        %v3177 = vpack.c.b16 %v3148, %v3147
        %v3178 = vpack.c.b16 %v3150, %v3149
        %v3179 = vpack.c.b16 %v3152, %v3151
        %v3180 = vpack.c.b16 %v3154, %v3153
        %v3181 = vpack.c.b16 %v3156, %v3155
        %v3182 = vpack.c.b16 %v3158, %v3157
        %v3183 = vpack.c.b16 %v3160, %v3159
        %v3184 = vpack.c.b16 %v3162, %v3161
        %v3185 = vpack.c.b16 %v3164, %v3163
        %v3186 = vpack.c.b16 %v3166, %v3165
        %v3187 = vpack.c.b16 %v3168, %v3167
        %v3188 = vpack.c.b16 %v3170, %v3169
        %v3189 = vpack.c.b16 %v3172, %v3171
        %v3190 = vpack.c.b16 %v3174, %v3173
        %v3192 = vsel %vm453, %v3175, 0
        %v3195 = vsel %vm453, %v3176, 0
        %v3198 = vsel %vm453, %v3177, 0
        %v3201 = vsel %vm453, %v3178, 0
        %v3204 = vsel %vm453, %v3179, 0
        %v3207 = vsel %vm453, %v3180, 0
        %v3210 = vsel %vm453, %v3181, 0
        %v3213 = vsel %vm453, %v3182, 0
        %v3216 = vsel %vm453, %v3183, 0
        %v3219 = vsel %vm453, %v3184, 0
        %v3222 = vsel %vm453, %v3185, 0
        %v3225 = vsel %vm453, %v3186, 0
        %v3228 = vsel %vm453, %v3187, 0
        %v3231 = vsel %vm453, %v3188, 0
        %v3234 = vsel %vm453, %v3189, 0
        %v3237 = vsel %vm453, %v3190, 0
        %3239 = vmatprep.subr.bf16.mxu0 0
        %3240 = vmatpush1.bf16.msra.mxu0 %v449
        %3241 = vmatprep.subr.bf16.mxu0 0
        %3242 = vmatpush1.bf16.msra.mxu0 %v450
        %3243 = vmatprep.subr.bf16.mxu0 0
        %3244 = vmatpush1.bf16.msra.mxu0 0
        %3245 = vmatprep.subr.bf16.mxu0 0
        %3246 = vmatpush1.bf16.msra.mxu0 0
        %3247 = vmatprep.subr.bf16.mxu0 0
        %3248 = vmatpush1.bf16.msra.mxu0 0
        %3249 = vmatprep.subr.bf16.mxu0 0
        %3250 = vmatpush1.bf16.msra.mxu0 0
        %3251 = vmatprep.subr.bf16.mxu0 0
        %3252 = vmatpush1.bf16.msra.mxu0 0
        %3253 = vmatprep.subr.bf16.mxu0 0
        %3254 = vmatpush1.bf16.msra.mxu0 0
        %3255 = vmatprep.subr.bf16.mxu0 0
        %3256 = vmatpush1.bf16.msra.mxu0 0
        %3257 = vmatprep.subr.bf16.mxu0 0
        %3258 = vmatpush1.bf16.msra.mxu0 0
        %3259 = vmatprep.subr.bf16.mxu0 0
        %3260 = vmatpush1.bf16.msra.mxu0 0
        %3261 = vmatprep.subr.bf16.mxu0 0
        %3262 = vmatpush1.bf16.msra.mxu0 0
        %3263 = vmatprep.subr.bf16.mxu0 0
        %3264 = vmatpush1.bf16.msra.mxu0 0
        %3265 = vmatprep.subr.bf16.mxu0 0
        %3266 = vmatpush1.bf16.msra.mxu0 0
        %3267 = vmatprep.subr.bf16.mxu0 0
        %3268 = vmatpush1.bf16.msra.mxu0 0
        %3269 = vmatprep.subr.bf16.mxu0 0
        %3270 = vmatpush1.bf16.msra.mxu0 0
        %3271 = vmatprep.mubr.bf16.mxu0 0
        %3272 = vmatmul.mubr.bf16.gmra.mrb[0].mxu0 %v3192
        %v3273 = vpop.f32.mrb[0].mxu0
        %v3274 = vadd.f32 %v359, %v3273
        %v3275 = vpop.f32.mrb[0].mxu0
        %v3276 = vpop.f32.mrb[0].mxu0
        %v3277 = vadd.f32 %v359, %v3276
        %v3278 = vpop.f32.mrb[0].mxu0
        %3279 = vmatprep.mubr.bf16.mxu0 0
        %3280 = vmatmul.mubr.bf16.gmra.mrb[0].mxu0 %v3195
        %v3281 = vpop.f32.mrb[0].mxu0
        %v3282 = vadd.f32 %v359, %v3281
        %v3283 = vpop.f32.mrb[0].mxu0
        %v3284 = vpop.f32.mrb[0].mxu0
        %v3285 = vadd.f32 %v359, %v3284
        %v3286 = vpop.f32.mrb[0].mxu0
        %3287 = vmatprep.mubr.bf16.mxu0 0
        %3288 = vmatmul.mubr.bf16.gmra.mrb[0].mxu0 %v3198
        %v3289 = vpop.f32.mrb[0].mxu0
        %v3290 = vadd.f32 %v359, %v3289
        %v3291 = vpop.f32.mrb[0].mxu0
        %v3292 = vpop.f32.mrb[0].mxu0
        %v3293 = vadd.f32 %v359, %v3292
        %v3294 = vpop.f32.mrb[0].mxu0
        %3295 = vmatprep.mubr.bf16.mxu0 0
        %3296 = vmatmul.mubr.bf16.gmra.mrb[0].mxu0 %v3201
        %v3297 = vpop.f32.mrb[0].mxu0
        %v3298 = vadd.f32 %v359, %v3297
        %v3299 = vpop.f32.mrb[0].mxu0
        %v3300 = vpop.f32.mrb[0].mxu0
        %v3301 = vadd.f32 %v359, %v3300
        %v3302 = vpop.f32.mrb[0].mxu0
        %3303 = vmatprep.mubr.bf16.mxu0 0
        %3304 = vmatmul.mubr.bf16.gmra.mrb[0].mxu0 %v3204
        %v3305 = vpop.f32.mrb[0].mxu0
        %v3306 = vadd.f32 %v359, %v3305
        %v3307 = vpop.f32.mrb[0].mxu0
        %v3308 = vpop.f32.mrb[0].mxu0
        %v3309 = vadd.f32 %v359, %v3308
        %v3310 = vpop.f32.mrb[0].mxu0
        %3311 = vmatprep.mubr.bf16.mxu0 0
        %3312 = vmatmul.mubr.bf16.gmra.mrb[0].mxu0 %v3207
        %v3313 = vpop.f32.mrb[0].mxu0
        %v3314 = vadd.f32 %v359, %v3313
        %v3315 = vpop.f32.mrb[0].mxu0
        %v3316 = vpop.f32.mrb[0].mxu0
        %v3317 = vadd.f32 %v359, %v3316
        %v3318 = vpop.f32.mrb[0].mxu0
        %3319 = vmatprep.mubr.bf16.mxu0 0
        %3320 = vmatmul.mubr.bf16.gmra.mrb[0].mxu0 %v3210
        %v3321 = vpop.f32.mrb[0].mxu0
        %v3322 = vadd.f32 %v359, %v3321
        %v3323 = vpop.f32.mrb[0].mxu0
        %v3324 = vpop.f32.mrb[0].mxu0
        %v3325 = vadd.f32 %v359, %v3324
        %v3326 = vpop.f32.mrb[0].mxu0
        %3327 = vmatprep.mubr.bf16.mxu0 0
        %3328 = vmatmul.mubr.bf16.gmra.mrb[0].mxu0 %v3213
        %v3329 = vpop.f32.mrb[0].mxu0
        %v3330 = vadd.f32 %v359, %v3329
        %v3331 = vpop.f32.mrb[0].mxu0
        %v3332 = vpop.f32.mrb[0].mxu0
        %v3333 = vadd.f32 %v359, %v3332
        %v3334 = vpop.f32.mrb[0].mxu0
        %3335 = vmatprep.mubr.bf16.mxu0 0
        %3336 = vmatmul.mubr.bf16.gmra.mrb[0].mxu0 %v3216
        %v3337 = vpop.f32.mrb[0].mxu0
        %v3338 = vadd.f32 %v359, %v3337
        %v3339 = vpop.f32.mrb[0].mxu0
        %v3340 = vpop.f32.mrb[0].mxu0
        %v3341 = vadd.f32 %v359, %v3340
        %v3342 = vpop.f32.mrb[0].mxu0
        %3343 = vmatprep.mubr.bf16.mxu0 0
        %3344 = vmatmul.mubr.bf16.gmra.mrb[0].mxu0 %v3219
        %v3345 = vpop.f32.mrb[0].mxu0
        %v3346 = vadd.f32 %v359, %v3345
        %v3347 = vpop.f32.mrb[0].mxu0
        %v3348 = vpop.f32.mrb[0].mxu0
        %v3349 = vadd.f32 %v359, %v3348
        %v3350 = vpop.f32.mrb[0].mxu0
        %3351 = vmatprep.mubr.bf16.mxu0 0
        %3352 = vmatmul.mubr.bf16.gmra.mrb[0].mxu0 %v3222
        %v3353 = vpop.f32.mrb[0].mxu0
        %v3354 = vadd.f32 %v359, %v3353
        %v3355 = vpop.f32.mrb[0].mxu0
        %v3356 = vpop.f32.mrb[0].mxu0
        %v3357 = vadd.f32 %v359, %v3356
        %v3358 = vpop.f32.mrb[0].mxu0
        %3359 = vmatprep.mubr.bf16.mxu0 0
        %3360 = vmatmul.mubr.bf16.gmra.mrb[0].mxu0 %v3225
        %v3361 = vpop.f32.mrb[0].mxu0
        %v3362 = vadd.f32 %v359, %v3361
        %v3363 = vpop.f32.mrb[0].mxu0
        %v3364 = vpop.f32.mrb[0].mxu0
        %v3365 = vadd.f32 %v359, %v3364
        %v3366 = vpop.f32.mrb[0].mxu0
        %3367 = vmatprep.mubr.bf16.mxu0 0
        %3368 = vmatmul.mubr.bf16.gmra.mrb[0].mxu0 %v3228
        %v3369 = vpop.f32.mrb[0].mxu0
        %v3370 = vadd.f32 %v359, %v3369
        %v3371 = vpop.f32.mrb[0].mxu0
        %v3372 = vpop.f32.mrb[0].mxu0
        %v3373 = vadd.f32 %v359, %v3372
        %v3374 = vpop.f32.mrb[0].mxu0
        %3375 = vmatprep.mubr.bf16.mxu0 0
        %3376 = vmatmul.mubr.bf16.gmra.mrb[0].mxu0 %v3231
        %v3377 = vpop.f32.mrb[0].mxu0
        %v3378 = vadd.f32 %v359, %v3377
        %v3379 = vpop.f32.mrb[0].mxu0
        %v3380 = vpop.f32.mrb[0].mxu0
        %v3381 = vadd.f32 %v359, %v3380
        %v3382 = vpop.f32.mrb[0].mxu0
        %3383 = vmatprep.mubr.bf16.mxu0 0
        %3384 = vmatmul.mubr.bf16.gmra.mrb[0].mxu0 %v3234
        %v3385 = vpop.f32.mrb[0].mxu0
        %v3386 = vadd.f32 %v359, %v3385
        %v3387 = vpop.f32.mrb[0].mxu0
        %v3388 = vpop.f32.mrb[0].mxu0
        %v3389 = vadd.f32 %v359, %v3388
        %v3390 = vpop.f32.mrb[0].mxu0
        %3391 = vmatprep.mubr.bf16.mxu0 0
        %3392 = vmatmul.mubr.bf16.gmra.mrb[0].mxu0 %v3237
        %v3393 = vpop.f32.mrb[0].mxu0
        %v3394 = vadd.f32 %v359, %v3393
        %v3395 = vpop.f32.mrb[0].mxu0
        %v3396 = vpop.f32.mrb[0].mxu0
        %v3397 = vadd.f32 %v359, %v3396
        %v3398 = vpop.f32.mrb[0].mxu0
        %3399 = vdwg.mxu0
        %v3400 = vmax.f32 %v3274, 0.0
        %v3401 = vmax.f32 %v3277, 0.0
        %v3402 = vmax.f32 %v3282, 0.0
        %v3403 = vmax.f32 %v3285, 0.0
        %v3404 = vmax.f32 %v3290, 0.0
        %v3405 = vmax.f32 %v3293, 0.0
        %v3406 = vmax.f32 %v3298, 0.0
        %v3407 = vmax.f32 %v3301, 0.0
        %v3408 = vmax.f32 %v3306, 0.0
        %v3409 = vmax.f32 %v3309, 0.0
        %v3410 = vmax.f32 %v3314, 0.0
        %v3411 = vmax.f32 %v3317, 0.0
        %v3412 = vmax.f32 %v3322, 0.0
        %v3413 = vmax.f32 %v3325, 0.0
        %v3414 = vmax.f32 %v3330, 0.0
        %v3415 = vmax.f32 %v3333, 0.0
        %v3416 = vmax.f32 %v3338, 0.0
        %v3417 = vmax.f32 %v3341, 0.0
        %v3418 = vmax.f32 %v3346, 0.0
        %v3419 = vmax.f32 %v3349, 0.0
        %v3420 = vmax.f32 %v3354, 0.0
        %v3421 = vmax.f32 %v3357, 0.0
        %v3422 = vmax.f32 %v3362, 0.0
        %v3423 = vmax.f32 %v3365, 0.0
        %v3424 = vmax.f32 %v3370, 0.0
        %v3425 = vmax.f32 %v3373, 0.0
        %v3426 = vmax.f32 %v3378, 0.0
        %v3427 = vmax.f32 %v3381, 0.0
        %v3428 = vmax.f32 %v3386, 0.0
        %v3429 = vmax.f32 %v3389, 0.0
        %v3430 = vmax.f32 %v3394, 0.0
        %v3431 = vmax.f32 %v3397, 0.0
        %v3432 = vadd.f32 %v3400, %v3401
        %v3433 = vadd.f32 %v3432, %v3402
        %v3434 = vadd.f32 %v3433, %v3403
        %v3435 = vadd.f32 %v3434, %v3404
        %v3436 = vadd.f32 %v3435, %v3405
        %v3437 = vadd.f32 %v3436, %v3406
        %v3438 = vadd.f32 %v3437, %v3407
        %v3439 = vadd.f32 %v3438, %v3408
        %v3440 = vadd.f32 %v3439, %v3409
        %v3441 = vadd.f32 %v3440, %v3410
        %v3442 = vadd.f32 %v3441, %v3411
        %v3443 = vadd.f32 %v3442, %v3412
        %v3444 = vadd.f32 %v3443, %v3413
        %v3445 = vadd.f32 %v3444, %v3414
        %v3446 = vadd.f32 %v3445, %v3415
        %v3447 = vadd.f32 %v3446, %v3416
        %v3448 = vadd.f32 %v3447, %v3417
        %v3449 = vadd.f32 %v3448, %v3418
        %v3450 = vadd.f32 %v3449, %v3419
        %v3451 = vadd.f32 %v3450, %v3420
        %v3452 = vadd.f32 %v3451, %v3421
        %v3453 = vadd.f32 %v3452, %v3422
        %v3454 = vadd.f32 %v3453, %v3423
        %v3455 = vadd.f32 %v3454, %v3424
        %v3456 = vadd.f32 %v3455, %v3425
        %v3457 = vadd.f32 %v3456, %v3426
        %v3458 = vadd.f32 %v3457, %v3427
        %v3459 = vadd.f32 %v3458, %v3428
        %v3460 = vadd.f32 %v3459, %v3429
        %v3461 = vadd.f32 %v3460, %v3430
        %v3462 = vadd.f32 %v3461, %v3431
        %v3463 = vrot.slane %v3462, 4
        %v3464 = vadd.f32 %v3462, %v3463
        %v3465 = vrot.slane %v3464, 2
        %v3466 = vadd.f32 %v3464, %v3465
        %v3467 = vrot.slane %v3466, 1
        %v3468 = vadd.f32 %v3466, %v3467
        %3469 = vst [vmem:[#allocation2 + $0x7] sm:$0x1] %v3468
        %v3470 = vld [vmem:[#allocation2] sm:$0xff]
        %v3471 = vmul.f32 %v3470, 0.00390625
        %v3472 = vpack.c.bf16 %v3471, %v3471
        %v3473 = vld [vmem:[%s3] sm:$0xf]
        %v3474 = vld [vmem:[%s3 + $0x4] sm:$0xf]
        %v3475 = vld [vmem:[%s3 + $0x8] sm:$0xf]
        %v3476 = vld [vmem:[%s3 + $0xc] sm:$0xf]
        %v3477 = vld [vmem:[%s3 + $0x10] sm:$0xf]
        %v3478 = vld [vmem:[%s3 + $0x14] sm:$0xf]
        %v3479 = vld [vmem:[%s3 + $0x18] sm:$0xf]
        %v3480 = vld [vmem:[%s3 + $0x1c] sm:$0xf]
        %v3481 = vld [vmem:[%s3 + $0x20] sm:$0xf]
        %v3482 = vld [vmem:[%s3 + $0x24] sm:$0xf]
        %v3483 = vld [vmem:[%s3 + $0x28] sm:$0xf]
        %v3484 = vld [vmem:[%s3 + $0x2c] sm:$0xf]
        %v3485 = vld [vmem:[%s3 + $0x30] sm:$0xf]
        %v3486 = vld [vmem:[%s3 + $0x34] sm:$0xf]
        %v3487 = vld [vmem:[%s3 + $0x38] sm:$0xf]
        %v3488 = vld [vmem:[%s3 + $0x3c] sm:$0xf]
        %v3489 = vld [vmem:[%s4] sm:$0x1]
        %v3491 = vlaneseq
        %v3492 = vshrl.u32 %v3491, 7
        %v3493 = vsub.s32 0, %v3492
        %v3494 = vrot.slane %v3489, %v3493
        %v3512 = vunpack.c.l.b16 %v3473
        %v3513 = vunpack.c.l.b16 %v3474
        %v3514 = vunpack.c.l.b16 %v3475
        %v3515 = vunpack.c.l.b16 %v3476
        %v3516 = vunpack.c.l.b16 %v3477
        %v3517 = vunpack.c.l.b16 %v3478
        %v3518 = vunpack.c.l.b16 %v3479
        %v3519 = vunpack.c.l.b16 %v3480
        %v3520 = vunpack.c.l.b16 %v3481
        %v3521 = vunpack.c.l.b16 %v3482
        %v3522 = vunpack.c.l.b16 %v3483
        %v3523 = vunpack.c.l.b16 %v3484
        %v3524 = vunpack.c.l.b16 %v3485
        %v3525 = vunpack.c.l.b16 %v3486
        %v3526 = vunpack.c.l.b16 %v3487
        %v3527 = vunpack.c.l.b16 %v3488
        %v3528 = vpack.c.b16 %v3513, %v3512
        %v3529 = vpack.c.b16 %v3515, %v3514
        %v3530 = vpack.c.b16 %v3517, %v3516
        %v3531 = vpack.c.b16 %v3519, %v3518
        %v3532 = vpack.c.b16 %v3521, %v3520
        %v3533 = vpack.c.b16 %v3523, %v3522
        %v3534 = vpack.c.b16 %v3525, %v3524
        %v3535 = vpack.c.b16 %v3527, %v3526
        %3544 = vmatprep.subr.bf16.mxu0 0
        %3545 = vmatpush1.bf16.msra.mxu0 %v3528
        %3546 = vmatprep.subr.bf16.mxu0 0
        %3547 = vmatpush1.bf16.msra.mxu0 %v3529
        %3548 = vmatprep.subr.bf16.mxu0 0
        %3549 = vmatpush1.bf16.msra.mxu0 %v3530
        %3550 = vmatprep.subr.bf16.mxu0 0
        %3551 = vmatpush1.bf16.msra.mxu0 %v3531
        %3552 = vmatprep.subr.bf16.mxu0 0
        %3553 = vmatpush1.bf16.msra.mxu0 %v3532
        %3554 = vmatprep.subr.bf16.mxu0 0
        %3555 = vmatpush1.bf16.msra.mxu0 %v3533
        %3556 = vmatprep.subr.bf16.mxu0 0
        %3557 = vmatpush1.bf16.msra.mxu0 %v3534
        %3558 = vmatprep.subr.bf16.mxu0 0
        %3559 = vmatpush1.bf16.msra.mxu0 %v3535
        %3560 = vmatprep.subr.bf16.mxu0 0
        %3561 = vmatpush1.bf16.msra.mxu0 0
        %3562 = vmatprep.subr.bf16.mxu0 0
        %3563 = vmatpush1.bf16.msra.mxu0 0
        %3564 = vmatprep.subr.bf16.mxu0 0
        %3565 = vmatpush1.bf16.msra.mxu0 0
        %3566 = vmatprep.subr.bf16.mxu0 0
        %3567 = vmatpush1.bf16.msra.mxu0 0
        %3568 = vmatprep.subr.bf16.mxu0 0
        %3569 = vmatpush1.bf16.msra.mxu0 0
        %3570 = vmatprep.subr.bf16.mxu0 0
        %3571 = vmatpush1.bf16.msra.mxu0 0
        %3572 = vmatprep.subr.bf16.mxu0 0
        %3573 = vmatpush1.bf16.msra.mxu0 0
        %3574 = vmatprep.subr.bf16.mxu0 0
        %3575 = vmatpush1.bf16.msra.mxu0 0
        %3576 = vmatprep.mubr.bf16.mxu0 0
        %3577 = vmatmul.mubr.bf16.gmra.mrb[0].mxu0 %v3472
        %v3578 = vpop.f32.mrb[0].mxu0
        %v3579 = vadd.f32 %v3494, %v3578
        %v3580 = vpop.f32.mrb[0].mxu0
        %v3581 = vpop.f32.mrb[0].mxu0
        %v3582 = vpop.f32.mrb[0].mxu0
        %3583 = vdwg.mxu0
        %3584 = vst [vmem:[%s303] sm:$0xff] %v3579
        %v3585 = vld [vmem:[%s5] sm:$0xf]
        %v3586 = vld [vmem:[%s5 + $0x4] sm:$0xf]
        %v3587 = vld [vmem:[%s5 + $0x8] sm:$0xf]
        %v3588 = vld [vmem:[%s5 + $0xc] sm:$0xf]
        %v3589 = vld [vmem:[%s5 + $0x10] sm:$0xf]
        %v3590 = vld [vmem:[%s5 + $0x14] sm:$0xf]
        %v3591 = vld [vmem:[%s5 + $0x18] sm:$0xf]
        %v3592 = vld [vmem:[%s5 + $0x1c] sm:$0xf]
        %v3593 = vld [vmem:[%s5 + $0x20] sm:$0xf]
        %v3594 = vld [vmem:[%s5 + $0x24] sm:$0xf]
        %v3595 = vld [vmem:[%s5 + $0x28] sm:$0xf]
        %v3596 = vld [vmem:[%s5 + $0x2c] sm:$0xf]
        %v3597 = vld [vmem:[%s5 + $0x30] sm:$0xf]
        %v3598 = vld [vmem:[%s5 + $0x34] sm:$0xf]
        %v3599 = vld [vmem:[%s5 + $0x38] sm:$0xf]
        %v3600 = vld [vmem:[%s5 + $0x3c] sm:$0xf]
        %v3601 = vld [vmem:[%s6] sm:$0x1]
        %v3603 = vlaneseq
        %v3604 = vshrl.u32 %v3603, 7
        %v3605 = vsub.s32 0, %v3604
        %v3606 = vrot.slane %v3601, %v3605
        %v3624 = vunpack.c.l.b16 %v3585
        %v3625 = vunpack.c.l.b16 %v3586
        %v3626 = vunpack.c.l.b16 %v3587
        %v3627 = vunpack.c.l.b16 %v3588
        %v3628 = vunpack.c.l.b16 %v3589
        %v3629 = vunpack.c.l.b16 %v3590
        %v3630 = vunpack.c.l.b16 %v3591
        %v3631 = vunpack.c.l.b16 %v3592
        %v3632 = vunpack.c.l.b16 %v3593
        %v3633 = vunpack.c.l.b16 %v3594
        %v3634 = vunpack.c.l.b16 %v3595
        %v3635 = vunpack.c.l.b16 %v3596
        %v3636 = vunpack.c.l.b16 %v3597
        %v3637 = vunpack.c.l.b16 %v3598
        %v3638 = vunpack.c.l.b16 %v3599
        %v3639 = vunpack.c.l.b16 %v3600
        %v3640 = vpack.c.b16 %v3625, %v3624
        %v3641 = vpack.c.b16 %v3627, %v3626
        %v3642 = vpack.c.b16 %v3629, %v3628
        %v3643 = vpack.c.b16 %v3631, %v3630
        %v3644 = vpack.c.b16 %v3633, %v3632
        %v3645 = vpack.c.b16 %v3635, %v3634
        %v3646 = vpack.c.b16 %v3637, %v3636
        %v3647 = vpack.c.b16 %v3639, %v3638
        %3656 = vmatprep.subr.bf16.mxu0 0
        %3657 = vmatpush1.bf16.msra.mxu0 %v3640
        %3658 = vmatprep.subr.bf16.mxu0 0
        %3659 = vmatpush1.bf16.msra.mxu0 %v3641
        %3660 = vmatprep.subr.bf16.mxu0 0
        %3661 = vmatpush1.bf16.msra.mxu0 %v3642
        %3662 = vmatprep.subr.bf16.mxu0 0
        %3663 = vmatpush1.bf16.msra.mxu0 %v3643
        %3664 = vmatprep.subr.bf16.mxu0 0
        %3665 = vmatpush1.bf16.msra.mxu0 %v3644
        %3666 = vmatprep.subr.bf16.mxu0 0
        %3667 = vmatpush1.bf16.msra.mxu0 %v3645
        %3668 = vmatprep.subr.bf16.mxu0 0
        %3669 = vmatpush1.bf16.msra.mxu0 %v3646
        %3670 = vmatprep.subr.bf16.mxu0 0
        %3671 = vmatpush1.bf16.msra.mxu0 %v3647
        %3672 = vmatprep.subr.bf16.mxu0 0
        %3673 = vmatpush1.bf16.msra.mxu0 0
        %3674 = vmatprep.subr.bf16.mxu0 0
        %3675 = vmatpush1.bf16.msra.mxu0 0
        %3676 = vmatprep.subr.bf16.mxu0 0
        %3677 = vmatpush1.bf16.msra.mxu0 0
        %3678 = vmatprep.subr.bf16.mxu0 0
        %3679 = vmatpush1.bf16.msra.mxu0 0
        %3680 = vmatprep.subr.bf16.mxu0 0
        %3681 = vmatpush1.bf16.msra.mxu0 0
        %3682 = vmatprep.subr.bf16.mxu0 0
        %3683 = vmatpush1.bf16.msra.mxu0 0
        %3684 = vmatprep.subr.bf16.mxu0 0
        %3685 = vmatpush1.bf16.msra.mxu0 0
        %3686 = vmatprep.subr.bf16.mxu0 0
        %3687 = vmatpush1.bf16.msra.mxu0 0
        %3688 = vmatprep.mubr.bf16.mxu0 0
        %3689 = vmatmul.mubr.bf16.gmra.mrb[0].mxu0 %v3472
        %v3690 = vpop.f32.mrb[0].mxu0
        %v3691 = vadd.f32 %v3606, %v3690
        %v3692 = vpop.f32.mrb[0].mxu0
        %v3693 = vpop.f32.mrb[0].mxu0
        %v3694 = vpop.f32.mrb[0].mxu0
        %3695 = vdwg.mxu0
        %v3696 = vmul.f32 %v3691, %v3691
        %3697 = vadd.xlane.f32.xlu0 %v3696
        %v3698 = vpop.xlane.xlu0 %3697
        %v3699 = vmax.f32 %v3698, 1e-24
        %v3700 = vrsqrt.pop %v3699
        %v3701 = vmul.f32 %v3691, %v3700
        %3702 = vst [vmem:[%s310] sm:$0xff] %v3701
        %s3703 = sand.u32 %s186, 1
        %s3704 = scalar_lea.sflag [#allocation4], %s3703
        %s3705 = sand.u32 %s186, 1
        %s3706 = smul.addr %s3705, 8
        %s3707 = scalar_lea.vmem [#allocation3], %s3706
        %s3708 = sand.u32 %s212, 1
        %s3709 = scalar_lea.sflag [#allocation6], %s3708
        %s3710 = sand.u32 %s212, 1
        %s3711 = smul.addr %s3710, 8
        %s3712 = scalar_lea.vmem [#allocation5], %s3711
        // Predicated region
        $region49: #{tpu_custom_call.1} parent=47 // pred_check
          %p3713 = pneg %p196
        $region50: #{tpu_custom_call.1} parent=47 // pred_check_branch
          %3715 = sbr.rel (%p3713) target = $region52
        $region51: #{tpu_custom_call.1} parent=47 // pred_region
          %s3717 = ssub.s32 128, 128
          %3718 = vsyncadd %s3704, %s3717
          %s3719 = smul.addr %s26, 128
          %s3720 = scalar_lea.hbm %s7, %s3719
          %s3722 = sshll.u32 %s3707, 4
          %s3723 = int_to_ptr.vmem [resolvable:$true] %s3722
          %3725 = dma.vmem_to_hbm [thread:$0]  %s3723, 128, %s3720, %s3704
        $region52: #{tpu_custom_call.1} parent=47 // pred_fallthru
          _
        // Predicated region
        $region53: #{tpu_custom_call.1} parent=47 // pred_check
          %p3726 = pneg %p222
        $region54: #{tpu_custom_call.1} parent=47 // pred_check_branch
          %3728 = sbr.rel (%p3726) target = $region56
        $region55: #{tpu_custom_call.1} parent=47 // pred_region
          %s3730 = ssub.s32 128, 128
          %3731 = vsyncadd %s3709, %s3730
          %s3732 = smul.addr %s26, 128
          %s3733 = scalar_lea.hbm %s8, %s3732
          %s3735 = sshll.u32 %s3712, 4
          %s3736 = int_to_ptr.vmem [resolvable:$true] %s3735
          %3738 = dma.vmem_to_hbm [thread:$0]  %s3736, 128, %s3733, %s3709
        $region56: #{tpu_custom_call.1} parent=47 // pred_fallthru
          _
      $region48: #{tpu_custom_call.1} parent=5 // pred_fallthru
        _
      %p3739 = scmp.le.s32.totalorder 2, %s21
      // Predicated region
      $region57: #{tpu_custom_call.1} parent=5 // pred_check
        %p3740 = pneg %p3739
      $region58: #{tpu_custom_call.1} parent=5 // pred_check_branch
        %3742 = sbr.rel (%p3740) target = $region60
      $region59: #{tpu_custom_call.1} parent=5 // pred_region
        %s3743 = ssub.s32 %s21, 2
        // Predicated region
        $region61: #{tpu_custom_call.1} parent=59 // pred_check
          %p3744 = pneg %p202
        $region62: #{tpu_custom_call.1} parent=59 // pred_check_branch
          %3746 = sbr.rel (%p3744) target = $region64
        $region63: #{tpu_custom_call.1} parent=59 // pred_region
          %s3747 = sand.u32 %s187, 1
          %s3748 = scalar_lea.sflag [#allocation4], %s3747
          %s3749 = sand.u32 %s187, 1
          %s3750 = smul.addr %s3749, 8
          %s3751 = scalar_lea.vmem [#allocation3], %s3750
          %3752 = dma.done %s3748, 128
        $region64: #{tpu_custom_call.1} parent=59 // pred_fallthru
          _
        // Predicated region
        $region65: #{tpu_custom_call.1} parent=59 // pred_check
          %p3753 = pneg %p228
        $region66: #{tpu_custom_call.1} parent=59 // pred_check_branch
          %3755 = sbr.rel (%p3753) target = $region68
        $region67: #{tpu_custom_call.1} parent=59 // pred_region
          %s3756 = sand.u32 %s213, 1
          %s3757 = scalar_lea.sflag [#allocation6], %s3756
          %s3758 = sand.u32 %s213, 1
          %s3759 = smul.addr %s3758, 8
          %s3760 = scalar_lea.vmem [#allocation5], %s3759
          %3761 = dma.done %s3757, 128
        $region68: #{tpu_custom_call.1} parent=59 // pred_fallthru
          _
      $region60: #{tpu_custom_call.1} parent=5 // pred_fallthru
        _
    $region6: #{tpu_custom_call.1} parent=1 // loop_footer
      %s25 = sadd.s32 1, %s21
    $region7: #{tpu_custom_call.1} parent=1 // loop_footer_branch
      %20 = sbr.rel target = $region3
    $region8: #{tpu_custom_call.1} parent=1 // loop_exit
      _
    %3762 = vsyncpa [#allocation4], 1
    %s3763 = scalar_lea.sflag [#allocation4], 1
    %3764 = vsyncpa %s3763, 1
    %3765 = vsyncpa [#allocation6], 1
    %s3766 = scalar_lea.sflag [#allocation6], 1
    %3767 = vsyncpa %s3766, 1

</llo_original>
